<compile_context>
chip_gen: v7x
topology: tpu7x:2x2x1
jax: 0.10.0
libtpu: 0.0.40
codegen_flags: <defaults>
</compile_context>

<pallas_src>
import numpy as np
import jax
import jax.numpy as jnp
from jax.experimental import pallas as pl
from jax.experimental.pallas import tpu as pltpu


CPAD = 128  # lane-dense padded output-channel width for every matmul


# ---------------- Pallas kernels (fused conv-as-matmul + epilogue) ----------------

def _convt_bn_relu_kernel(p_ref, w_ref, g_ref, b_ref, o_ref):
    # patches (M, K) f32  x  weights (K, CPAD) bf16  -> f32 accum on the MXU,
    # then training-mode BatchNorm2d (stats over rows = N*H*W per channel,
    # biased variance, eps=1e-5) + ReLU, all in one kernel.
    y = jnp.dot(p_ref[...].astype(jnp.bfloat16), w_ref[...],
                preferred_element_type=jnp.float32)
    mean = jnp.mean(y, axis=0, keepdims=True)
    var = jnp.mean(jnp.square(y - mean), axis=0, keepdims=True)
    yn = (y - mean) * jax.lax.rsqrt(var + 1e-5) * g_ref[...] + b_ref[...]
    o_ref[...] = jnp.maximum(yn, 0.0)


def convt_bn_relu_pallas(patches, wmat, gamma, beta):
    m = patches.shape[0]
    cpad = wmat.shape[1]
    # Whole layer fits in VMEM (<1 MB); single fused block, no extra HBM round trips.
    return pl.pallas_call(
        _convt_bn_relu_kernel,
        out_shape=jax.ShapeDtypeStruct((m, cpad), jnp.float32),
    )(patches, wmat, gamma, beta)


def _convt_tanh_kernel(p_ref, w_ref, o_ref):
    y = jnp.dot(p_ref[...].astype(jnp.bfloat16), w_ref[...],
                preferred_element_type=jnp.float32)
    o_ref[...] = jnp.tanh(y)   # EUP epilogue, effectively free inside the matmul


def convt_tanh_pallas(patches, wmat):
    m, kdim = patches.shape
    cpad = wmat.shape[1]
    # Row-tile the largest layer so both TensorCores get work on v7x.
    tm = m // 2 if (m % 2 == 0 and (m // 2) % 8 == 0) else m
    return pl.pallas_call(
        _convt_tanh_kernel,
        out_shape=jax.ShapeDtypeStruct((m, cpad), jnp.float32),
        grid=(m // tm,),
        in_specs=[pl.BlockSpec((tm, kdim), lambda i: (i, 0)),
                  pl.BlockSpec((kdim, cpad), lambda i: (0, 0))],
        out_specs=pl.BlockSpec((tm, cpad), lambda i: (i, 0)),
        compiler_params=pltpu.CompilerParams(dimension_semantics=("parallel",)),
    )(patches, wmat)


# ---------------- one-time setup glue: ConvTranspose2d -> im2col matmul ----------------

def build_wmat(w, cpad):
    """w: ConvTranspose2d weight (Cin, Cout, kH, kW).
    Returns (kH*kW*Cin, cpad) matrix (flipped kernel) acting on im2col patches of the
    zero-inserted / edge-padded input; output channels zero-padded to cpad lanes."""
    cin, cout, kh, kw = w.shape
    wm = np.zeros((kh * kw * cin, cpad), dtype=np.float32)
    for r in range(kh):
        for c in range(kw):
            wm[(r * kw + c) * cin:(r * kw + c + 1) * cin, :cout] = w[:, :, kh - 1 - r, kw - 1 - c]
    return wm


def build_gather_idx(hin, win, ksize, stride, pad, hout, wout):
    """Per-(output-pixel, kernel-tap) index into the flattened (Hin*Win) input;
    sentinel Hin*Win selects an appended zero row (stride holes / padding)."""
    pad_eff = ksize - 1 - pad
    sentinel = hin * win
    idx = np.full((hout * wout * ksize * ksize,), sentinel, dtype=np.int32)
    for ho in range(hout):
        for wo in range(wout):
            for r in range(ksize):
                for c in range(ksize):
                    u = ho + r - pad_eff
                    v = wo + c - pad_eff
                    if u < 0 or v < 0 or (u % stride) or (v % stride):
                        continue
                    hi, wi = u // stride, v // stride
                    if hi < hin and wi < win:
                        idx[(ho * wout + wo) * ksize * ksize + r * ksize + c] = hi * win + wi
    return idx


# ---------------- forward pass ----------------

def generator_forward(x, layers):
    n = x.shape[0]
    h = x.reshape(n, 1, x.shape[1])            # x.view(N, C, 1, 1) as NHWC-flat (N, 1, C)
    for lyr in layers:
        cin = h.shape[-1]
        # im2col patch gather for the transposed conv (pure index plumbing, XLA glue)
        h_aug = jnp.concatenate([h, jnp.zeros((n, 1, cin), h.dtype)], axis=1)
        patches = jnp.take(h_aug, lyr["idx"], axis=1)          # (N, Ho*Wo*k*k, Cin)
        m = n * lyr["hout"] * lyr["wout"]
        patches = patches.reshape(m, lyr["kk"] * cin)          # (M, K)
        if lyr["last"]:
            y = convt_tanh_pallas(patches, lyr["wmat"])        # fused matmul + tanh
        else:
            y = convt_bn_relu_pallas(patches, lyr["wmat"],     # fused matmul + BN + ReLU
                                     lyr["gamma"], lyr["beta"])
        h = y[:, :lyr["cout"]].reshape(n, lyr["hout"] * lyr["wout"], lyr["cout"])
    last = layers[-1]
    out_nhwc = h.reshape(n, last["hout"], last["wout"], last["cout"])
    return jnp.transpose(out_nhwc, (0, 3, 1, 2))               # NCHW, like PyTorch


# ---------------- independent plain-JAX reference (lax dilated conv) ----------------

def convt_ref(x_nchw, w, stride, pad):
    cin, cout, kh, kw = w.shape
    w_conv = jnp.transpose(w[:, :, ::-1, ::-1], (1, 0, 2, 3))  # (Cout, Cin, kh, kw)
    return jax.lax.conv_general_dilated(
        x_nchw, w_conv, window_strides=(1, 1),
        padding=[(kh - 1 - pad, kh - 1 - pad), (kw - 1 - pad, kw - 1 - pad)],
        lhs_dilation=(stride, stride),
        dimension_numbers=("NCHW", "OIHW", "NCHW"))


def reference_forward(x, params, cfgs):
    n = x.shape[0]
    h = x.reshape(n, x.shape[1], 1, 1)
    for cfg, prm in zip(cfgs, params):
        y = convt_ref(h, prm["w"], cfg["s"], cfg["p"])
        if cfg["last"]:
            h = jnp.tanh(y)
        else:
            mean = y.mean(axis=(0, 2, 3), keepdims=True)
            var = jnp.square(y - mean).mean(axis=(0, 2, 3), keepdims=True)
            yn = (y - mean) * jax.lax.rsqrt(var + 1e-5)
            h = jnp.maximum(yn * prm["gamma"].reshape(1, -1, 1, 1)
                            + prm["beta"].reshape(1, -1, 1, 1), 0.0)
    return h


if __name__ == "__main__":
    batch = 2
    input_size = 64       # small, consistent with x.view(N, C, 1, 1)
    ngf = 16
    out_ch = 3

    key = jax.random.PRNGKey(0)
    k = jax.random.split(key, 12)
    x = jax.random.normal(k[0], (batch, input_size), jnp.float32)

    # (Hin,Hout) chain: 1 -> 3 -> 7 -> 14 -> 28 (matches the PyTorch module)
    cfgs = [
        dict(cin=input_size, cout=ngf * 4, k=3, s=2, p=0, hin=1,  hout=3,  last=False),
        dict(cin=ngf * 4,    cout=ngf * 2, k=3, s=2, p=0, hin=3,  hout=7,  last=False),
        dict(cin=ngf * 2,    cout=ngf,     k=4, s=2, p=1, hin=7,  hout=14, last=False),
        dict(cin=ngf,        cout=out_ch,  k=4, s=2, p=1, hin=14, hout=28, last=True),
    ]

    layers, params = [], []
    ki = 1
    for cfg in cfgs:
        w = 0.05 * jax.random.normal(
            k[ki], (cfg["cin"], cfg["cout"], cfg["k"], cfg["k"]), jnp.float32)
        ki += 1
        wmat = build_wmat(np.asarray(w), CPAD)                 # pre-pad ONCE at setup
        idx = build_gather_idx(cfg["hin"], cfg["hin"], cfg["k"], cfg["s"], cfg["p"],
                               cfg["hout"], cfg["hout"])
        if not cfg["last"]:
            gamma = 1.0 + 0.1 * jax.random.normal(k[ki], (cfg["cout"],), jnp.float32); ki += 1
            beta = 0.1 * jax.random.normal(k[ki], (cfg["cout"],), jnp.float32); ki += 1
            g_pad = np.ones((1, CPAD), np.float32);  g_pad[0, :cfg["cout"]] = np.asarray(gamma)
            b_pad = np.zeros((1, CPAD), np.float32); b_pad[0, :cfg["cout"]] = np.asarray(beta)
        else:
            gamma = beta = None
            g_pad = b_pad = None
        layers.append(dict(
            wmat=jnp.asarray(wmat, jnp.bfloat16),              # bf16 weights for the MXU
            idx=jnp.asarray(idx),
            kk=cfg["k"] * cfg["k"],
            hout=cfg["hout"], wout=cfg["hout"], cout=cfg["cout"],
            gamma=None if g_pad is None else jnp.asarray(g_pad),
            beta=None if b_pad is None else jnp.asarray(b_pad),
            last=cfg["last"]))
        params.append(dict(w=w, gamma=gamma, beta=beta))

    forward = jax.jit(lambda xx: generator_forward(xx, layers))
    out = jax.block_until_ready(forward(x))
    assert out.shape == (batch, out_ch, 28, 28), out.shape
    assert bool(jnp.all(jnp.isfinite(out)))

    ref = reference_forward(x, params, cfgs)
    assert out.shape == ref.shape
    assert bool(jnp.allclose(out, ref, atol=0.1, rtol=0.1)), \
        float(jnp.max(jnp.abs(out - ref)))
    print("KERNEL_OK")
</pallas_src>

<mosaic_0001>
module attributes {stable_mosaic.version = 11 : i64} {
  func.func @_convt_bn_relu_kernel(%arg0: memref<98x576xf32, #tpu.memory_space<vmem>>, %arg1: memref<576x128xbf16, #tpu.memory_space<vmem>>, %arg2: memref<1x128xf32, #tpu.memory_space<vmem>>, %arg3: memref<1x128xf32, #tpu.memory_space<vmem>>, %arg4: memref<98x128xf32, #tpu.memory_space<vmem>>) attributes {dimension_semantics = [], scalar_prefetch = 0 : i64, scratch_operands = 0 : i64, tpu.core_type = #tpu.core_type<tc>} {
    %c0 = arith.constant 0 : index
    %c0_0 = arith.constant 0 : index
    %0 = vector.load %arg0[%c0, %c0_0] : memref<98x576xf32, #tpu.memory_space<vmem>>, vector<98x576xf32>
    %1 = arith.truncf %0 : vector<98x576xf32> to vector<98x576xbf16>
    %c0_1 = arith.constant 0 : index
    %c0_2 = arith.constant 0 : index
    %2 = vector.load %arg1[%c0_1, %c0_2] : memref<576x128xbf16, #tpu.memory_space<vmem>>, vector<576x128xbf16>
    %cst = arith.constant dense<0.000000e+00> : vector<98x128xf32>
    %3 = tpu.matmul %1, %2, %cst {dimension_numbers = #tpu.dot_dimension_numbers<[1], [0], [0], [1], [0, 0, 1, 1], [], []>} : vector<98x576xbf16>, vector<576x128xbf16>, vector<98x128xf32> -> vector<98x128xf32>
    %cst_3 = arith.constant dense<0.000000e+00> : vector<128xf32>
    %4 = vector.multi_reduction <add>, %3, %cst_3 [0] : vector<98x128xf32> to vector<128xf32>
    %5 = vector.shape_cast %4 : vector<128xf32> to vector<1x128xf32>
    %cst_4 = arith.constant 9.800000e+01 : f32
    %6 = vector.broadcast %cst_4 : f32 to vector<1x128xf32>
    %7 = arith.divf %5, %6 : vector<1x128xf32>
    %8 = vector.broadcast %7 : vector<1x128xf32> to vector<98x128xf32>
    %9 = arith.subf %3, %8 : vector<98x128xf32>
    %10 = arith.mulf %9, %9 : vector<98x128xf32>
    %cst_5 = arith.constant dense<0.000000e+00> : vector<128xf32>
    %11 = vector.multi_reduction <add>, %10, %cst_5 [0] : vector<98x128xf32> to vector<128xf32>
    %12 = vector.shape_cast %11 : vector<128xf32> to vector<1x128xf32>
    %cst_6 = arith.constant 9.800000e+01 : f32
    %13 = vector.broadcast %cst_6 : f32 to vector<1x128xf32>
    %14 = arith.divf %12, %13 : vector<1x128xf32>
    %15 = vector.broadcast %7 : vector<1x128xf32> to vector<98x128xf32>
    %16 = arith.subf %3, %15 : vector<98x128xf32>
    %cst_7 = arith.constant 9.99999974E-6 : f32
    %17 = vector.broadcast %cst_7 : f32 to vector<1x128xf32>
    %18 = arith.addf %14, %17 : vector<1x128xf32>
    %19 = math.rsqrt %18 : vector<1x128xf32>
    %20 = vector.broadcast %19 : vector<1x128xf32> to vector<98x128xf32>
    %21 = arith.mulf %16, %20 : vector<98x128xf32>
    %c0_8 = arith.constant 0 : index
    %c0_9 = arith.constant 0 : index
    %22 = vector.load %arg2[%c0_8, %c0_9] : memref<1x128xf32, #tpu.memory_space<vmem>>, vector<1x128xf32>
    %23 = vector.broadcast %22 : vector<1x128xf32> to vector<98x128xf32>
    %24 = arith.mulf %21, %23 : vector<98x128xf32>
    %c0_10 = arith.constant 0 : index
    %c0_11 = arith.constant 0 : index
    %25 = vector.load %arg3[%c0_10, %c0_11] : memref<1x128xf32, #tpu.memory_space<vmem>>, vector<1x128xf32>
    %26 = vector.broadcast %25 : vector<1x128xf32> to vector<98x128xf32>
    %27 = arith.addf %24, %26 : vector<98x128xf32>
    %cst_12 = arith.constant 0.000000e+00 : f32
    %28 = vector.broadcast %cst_12 : f32 to vector<98x128xf32>
    %29 = arith.maximumf %27, %28 : vector<98x128xf32>
    %c0_13 = arith.constant 0 : index
    %c0_14 = arith.constant 0 : index
    %30 = vector.load %arg4[%c0_13, %c0_14] : memref<98x128xf32, #tpu.memory_space<vmem>>, vector<98x128xf32>
    tpu.vector_store %arg4[%c0_13, %c0_14], %29 {strides = array<i32>} : memref<98x128xf32, #tpu.memory_space<vmem>>, vector<98x128xf32>,
    return
  }
}

module attributes {stable_mosaic.version = 11 : i64} {
  func.func @_convt_bn_relu_kernel(%arg0: memref<18x576xf32, #tpu.memory_space<vmem>>, %arg1: memref<576x128xbf16, #tpu.memory_space<vmem>>, %arg2: memref<1x128xf32, #tpu.memory_space<vmem>>, %arg3: memref<1x128xf32, #tpu.memory_space<vmem>>, %arg4: memref<18x128xf32, #tpu.memory_space<vmem>>) attributes {dimension_semantics = [], scalar_prefetch = 0 : i64, scratch_operands = 0 : i64, tpu.core_type = #tpu.core_type<tc>} {
    %c0 = arith.constant 0 : index
    %c0_0 = arith.constant 0 : index
    %0 = vector.load %arg0[%c0, %c0_0] : memref<18x576xf32, #tpu.memory_space<vmem>>, vector<18x576xf32>
    %1 = arith.truncf %0 : vector<18x576xf32> to vector<18x576xbf16>
    %c0_1 = arith.constant 0 : index
    %c0_2 = arith.constant 0 : index
    %2 = vector.load %arg1[%c0_1, %c0_2] : memref<576x128xbf16, #tpu.memory_space<vmem>>, vector<576x128xbf16>
    %cst = arith.constant dense<0.000000e+00> : vector<18x128xf32>
    %3 = tpu.matmul %1, %2, %cst {dimension_numbers = #tpu.dot_dimension_numbers<[1], [0], [0], [1], [0, 0, 1, 1], [], []>} : vector<18x576xbf16>, vector<576x128xbf16>, vector<18x128xf32> -> vector<18x128xf32>
    %cst_3 = arith.constant dense<0.000000e+00> : vector<128xf32>
    %4 = vector.multi_reduction <add>, %3, %cst_3 [0] : vector<18x128xf32> to vector<128xf32>
    %5 = vector.shape_cast %4 : vector<128xf32> to vector<1x128xf32>
    %cst_4 = arith.constant 1.800000e+01 : f32
    %6 = vector.broadcast %cst_4 : f32 to vector<1x128xf32>
    %7 = arith.divf %5, %6 : vector<1x128xf32>
    %8 = vector.broadcast %7 : vector<1x128xf32> to vector<18x128xf32>
    %9 = arith.subf %3, %8 : vector<18x128xf32>
    %10 = arith.mulf %9, %9 : vector<18x128xf32>
    %cst_5 = arith.constant dense<0.000000e+00> : vector<128xf32>
    %11 = vector.multi_reduction <add>, %10, %cst_5 [0] : vector<18x128xf32> to vector<128xf32>
    %12 = vector.shape_cast %11 : vector<128xf32> to vector<1x128xf32>
    %cst_6 = arith.constant 1.800000e+01 : f32
    %13 = vector.broadcast %cst_6 : f32 to vector<1x128xf32>
    %14 = arith.divf %12, %13 : vector<1x128xf32>
    %15 = vector.broadcast %7 : vector<1x128xf32> to vector<18x128xf32>
    %16 = arith.subf %3, %15 : vector<18x128xf32>
    %cst_7 = arith.constant 9.99999974E-6 : f32
    %17 = vector.broadcast %cst_7 : f32 to vector<1x128xf32>
    %18 = arith.addf %14, %17 : vector<1x128xf32>
    %19 = math.rsqrt %18 : vector<1x128xf32>
    %20 = vector.broadcast %19 : vector<1x128xf32> to vector<18x128xf32>
    %21 = arith.mulf %16, %20 : vector<18x128xf32>
    %c0_8 = arith.constant 0 : index
    %c0_9 = arith.constant 0 : index
    %22 = vector.load %arg2[%c0_8, %c0_9] : memref<1x128xf32, #tpu.memory_space<vmem>>, vector<1x128xf32>
    %23 = vector.broadcast %22 : vector<1x128xf32> to vector<18x128xf32>
    %24 = arith.mulf %21, %23 : vector<18x128xf32>
    %c0_10 = arith.constant 0 : index
    %c0_11 = arith.constant 0 : index
    %25 = vector.load %arg3[%c0_10, %c0_11] : memref<1x128xf32, #tpu.memory_space<vmem>>, vector<1x128xf32>
    %26 = vector.broadcast %25 : vector<1x128xf32> to vector<18x128xf32>
    %27 = arith.addf %24, %26 : vector<18x128xf32>
    %cst_12 = arith.constant 0.000000e+00 : f32
    %28 = vector.broadcast %cst_12 : f32 to vector<18x128xf32>
    %29 = arith.maximumf %27, %28 : vector<18x128xf32>
    %c0_13 = arith.constant 0 : index
    %c0_14 = arith.constant 0 : index
    %30 = vector.load %arg4[%c0_13, %c0_14] : memref<18x128xf32, #tpu.memory_space<vmem>>, vector<18x128xf32>
    tpu.vector_store %arg4[%c0_13, %c0_14], %29 {strides = array<i32>} : memref<18x128xf32, #tpu.memory_space<vmem>>, vector<18x128xf32>,
    return
  }
}

module attributes {stable_mosaic.version = 11 : i64} {
  func.func @_convt_bn_relu_kernel(%arg0: memref<392x512xf32, #tpu.memory_space<vmem>>, %arg1: memref<512x128xbf16, #tpu.memory_space<vmem>>, %arg2: memref<1x128xf32, #tpu.memory_space<vmem>>, %arg3: memref<1x128xf32, #tpu.memory_space<vmem>>, %arg4: memref<392x128xf32, #tpu.memory_space<vmem>>) attributes {dimension_semantics = [], scalar_prefetch = 0 : i64, scratch_operands = 0 : i64, tpu.core_type = #tpu.core_type<tc>} {
    %c0 = arith.constant 0 : index
    %c0_0 = arith.constant 0 : index
    %0 = vector.load %arg0[%c0, %c0_0] : memref<392x512xf32, #tpu.memory_space<vmem>>, vector<392x512xf32>
    %1 = arith.truncf %0 : vector<392x512xf32> to vector<392x512xbf16>
    %c0_1 = arith.constant 0 : index
    %c0_2 = arith.constant 0 : index
    %2 = vector.load %arg1[%c0_1, %c0_2] : memref<512x128xbf16, #tpu.memory_space<vmem>>, vector<512x128xbf16>
    %cst = arith.constant dense<0.000000e+00> : vector<392x128xf32>
    %3 = tpu.matmul %1, %2, %cst {dimension_numbers = #tpu.dot_dimension_numbers<[1], [0], [0], [1], [0, 0, 1, 1], [], []>} : vector<392x512xbf16>, vector<512x128xbf16>, vector<392x128xf32> -> vector<392x128xf32>
    %cst_3 = arith.constant dense<0.000000e+00> : vector<128xf32>
    %4 = vector.multi_reduction <add>, %3, %cst_3 [0] : vector<392x128xf32> to vector<128xf32>
    %5 = vector.shape_cast %4 : vector<128xf32> to vector<1x128xf32>
    %cst_4 = arith.constant 3.920000e+02 : f32
    %6 = vector.broadcast %cst_4 : f32 to vector<1x128xf32>
    %7 = arith.divf %5, %6 : vector<1x128xf32>
    %8 = vector.broadcast %7 : vector<1x128xf32> to vector<392x128xf32>
    %9 = arith.subf %3, %8 : vector<392x128xf32>
    %10 = arith.mulf %9, %9 : vector<392x128xf32>
    %cst_5 = arith.constant dense<0.000000e+00> : vector<128xf32>
    %11 = vector.multi_reduction <add>, %10, %cst_5 [0] : vector<392x128xf32> to vector<128xf32>
    %12 = vector.shape_cast %11 : vector<128xf32> to vector<1x128xf32>
    %cst_6 = arith.constant 3.920000e+02 : f32
    %13 = vector.broadcast %cst_6 : f32 to vector<1x128xf32>
    %14 = arith.divf %12, %13 : vector<1x128xf32>
    %15 = vector.broadcast %7 : vector<1x128xf32> to vector<392x128xf32>
    %16 = arith.subf %3, %15 : vector<392x128xf32>
    %cst_7 = arith.constant 9.99999974E-6 : f32
    %17 = vector.broadcast %cst_7 : f32 to vector<1x128xf32>
    %18 = arith.addf %14, %17 : vector<1x128xf32>
    %19 = math.rsqrt %18 : vector<1x128xf32>
    %20 = vector.broadcast %19 : vector<1x128xf32> to vector<392x128xf32>
    %21 = arith.mulf %16, %20 : vector<392x128xf32>
    %c0_8 = arith.constant 0 : index
    %c0_9 = arith.constant 0 : index
    %22 = vector.load %arg2[%c0_8, %c0_9] : memref<1x128xf32, #tpu.memory_space<vmem>>, vector<1x128xf32>
    %23 = vector.broadcast %22 : vector<1x128xf32> to vector<392x128xf32>
    %24 = arith.mulf %21, %23 : vector<392x128xf32>
    %c0_10 = arith.constant 0 : index
    %c0_11 = arith.constant 0 : index
    %25 = vector.load %arg3[%c0_10, %c0_11] : memref<1x128xf32, #tpu.memory_space<vmem>>, vector<1x128xf32>
    %26 = vector.broadcast %25 : vector<1x128xf32> to vector<392x128xf32>
    %27 = arith.addf %24, %26 : vector<392x128xf32>
    %cst_12 = arith.constant 0.000000e+00 : f32
    %28 = vector.broadcast %cst_12 : f32 to vector<392x128xf32>
    %29 = arith.maximumf %27, %28 : vector<392x128xf32>
    %c0_13 = arith.constant 0 : index
    %c0_14 = arith.constant 0 : index
    %30 = vector.load %arg4[%c0_13, %c0_14] : memref<392x128xf32, #tpu.memory_space<vmem>>, vector<392x128xf32>
    tpu.vector_store %arg4[%c0_13, %c0_14], %29 {strides = array<i32>} : memref<392x128xf32, #tpu.memory_space<vmem>>, vector<392x128xf32>,
    return
  }
}

module attributes {stable_mosaic.version = 11 : i64} {
  func.func @_convt_tanh_kernel(%arg0: i32, %arg1: memref<784x256xf32, #tpu.memory_space<vmem>>, %arg2: memref<256x128xbf16, #tpu.memory_space<vmem>>, %arg3: memref<784x128xf32, #tpu.memory_space<vmem>>) attributes {dimension_semantics = [#tpu.dimension_semantics<parallel>], iteration_bounds = array<i64: 2>, scalar_prefetch = 0 : i64, scratch_operands = 0 : i64, tpu.core_type = #tpu.core_type<tc>, window_params = [{transform_indices = @transform_0, window_bounds = array<i64: 784, 256>}, {pipeline_mode = #tpu.pipeline_mode<synchronous>, transform_indices = @transform_1, window_bounds = array<i64: 256, 128>}, {transform_indices = @transform_2, window_bounds = array<i64: 784, 128>}]} {
    %c0 = arith.constant 0 : index
    %c0_0 = arith.constant 0 : index
    %0 = vector.load %arg1[%c0, %c0_0] : memref<784x256xf32, #tpu.memory_space<vmem>>, vector<784x256xf32>
    %1 = arith.truncf %0 : vector<784x256xf32> to vector<784x256xbf16>
    %c0_1 = arith.constant 0 : index
    %c0_2 = arith.constant 0 : index
    %2 = vector.load %arg2[%c0_1, %c0_2] : memref<256x128xbf16, #tpu.memory_space<vmem>>, vector<256x128xbf16>
    %cst = arith.constant dense<0.000000e+00> : vector<784x128xf32>
    %3 = tpu.matmul %1, %2, %cst {dimension_numbers = #tpu.dot_dimension_numbers<[1], [0], [0], [1], [0, 0, 1, 1], [], []>} : vector<784x256xbf16>, vector<256x128xbf16>, vector<784x128xf32> -> vector<784x128xf32>
    %4 = math.tanh %3 : vector<784x128xf32>
    %c0_3 = arith.constant 0 : index
    %c0_4 = arith.constant 0 : index
    %5 = vector.load %arg3[%c0_3, %c0_4] : memref<784x128xf32, #tpu.memory_space<vmem>>, vector<784x128xf32>
    tpu.vector_store %arg3[%c0_3, %c0_4], %4 {strides = array<i32>} : memref<784x128xf32, #tpu.memory_space<vmem>>, vector<784x128xf32>,
    return
  }
  func.func @transform_0(%arg0: i32) -> (i32, i32) {
    %c0_i32 = arith.constant 0 : i32
    %c0_i32_0 = arith.constant 0 : i32
    return %arg0, %c0_i32 : i32, i32
  }
  func.func @transform_1(%arg0: i32) -> (i32, i32) {
    %c0_i32 = arith.constant 0 : i32
    %c0_i32_0 = arith.constant 0 : i32
    %c0_i32_1 = arith.constant 0 : i32
    return %c0_i32, %c0_i32_0 : i32, i32
  }
  func.func @transform_2(%arg0: i32) -> (i32, i32) {
    %c0_i32 = arith.constant 0 : i32
    %c0_i32_0 = arith.constant 0 : i32
    return %arg0, %c0_i32 : i32, i32
  }
}

</mosaic_0001>

<llo_original>
// kernel: _lambda_.4
$region0: #{_lambda_.4}
  #allocation0 [shape = 'u32[]', space=smem, size = 0x4, offset = 0x4, fixed_abs, tag = 'smem constant byte address 0x4 - core index']
  #allocation1 [shape = 'u32[144,128]{1,0:T(1,128)}', space=vmem, size = 0x12000, scoped, tag = 'internal scratch']
  %s0 = inlined_call_operand.vmem [shape: f32[18,576], index: 0, kind: input, shape index: {}]
  %s1 = inlined_call_operand.hbm [shape: bf16[576,128], index: 1, kind: input, shape index: {}]
  %s2 = inlined_call_operand.hbm [shape: f32[1,128], index: 2, kind: input, shape index: {}]
  %s3 = inlined_call_operand.hbm [shape: f32[1,128], index: 3, kind: input, shape index: {}]
  %s4 = inlined_call_operand.vmem [shape: f32[18,128], index: 4, kind: output, shape index: {}]
  %s5 = sld [smem:[#allocation0]]
  $region38: #{_lambda_.4} parent=0
    _
  %s7 = ssub.s32 1, %s5
  %s8 = scalar_select 0, %s7, %s5
  $region1: #{_lambda_.4} parent=0
    #allocation2 [shape = 'u8[147456]{0}', space=vmem, size = 0x24000, scoped, tag = 'input window, operand 1, single buffered']
    #allocation3 [shape = 's32[1]{0}', space=sflag, size = 0x4, scoped, tag = 'scoped memory for _lambda_.4']
    #allocation4 [shape = 'u8[512]{0}', space=vmem, size = 0x400, scoped, tag = 'input window, operand 2, single buffered']
    #allocation5 [shape = 's32[1]{0}', space=sflag, size = 0x4, scoped, tag = 'scoped memory for _lambda_.4']
    #allocation6 [shape = 'u8[512]{0}', space=vmem, size = 0x400, scoped, tag = 'input window, operand 3, single buffered']
    %9 = vsyncpa [#allocation3], 0
    %10 = vsyncpa [#allocation5], 0
    // Predicated region
    $region2: #{_lambda_.4} parent=1 // pred_check
      _
    $region3: #{_lambda_.4} parent=1 // pred_check_branch
      %12 = sbr.rel (0) target = $region5
    $region4: #{_lambda_.4} parent=1 // pred_region
      _
    $region5: #{_lambda_.4} parent=1 // pred_fallthru
      _
    // Predicated region
    $region6: #{_lambda_.4} parent=1 // pred_check
      _
    $region7: #{_lambda_.4} parent=1 // pred_check_branch
      %14 = sbr.rel (0) target = $region9
    $region8: #{_lambda_.4} parent=1 // pred_region
      %s16 = ssub.s32 4608, 4608
      %17 = vsyncadd [#allocation3], %s16
      %s18 = sshll.u32 [#allocation2], 4
      %s19 = int_to_ptr.vmem [resolvable:$true] %s18
      %24 = dma.hbm_to_vmem [thread:$0]  %s1, 4608, %s19, [#allocation3], 64, 64, 4
    $region9: #{_lambda_.4} parent=1 // pred_fallthru
      _
    // Predicated region
    $region10: #{_lambda_.4} parent=1 // pred_check
      _
    $region11: #{_lambda_.4} parent=1 // pred_check_branch
      %26 = sbr.rel (0) target = $region13
    $region12: #{_lambda_.4} parent=1 // pred_region
      %s28 = ssub.s32 16, 16
      %29 = vsyncadd [#allocation5], %s28
      %s31 = sshll.u32 [#allocation4], 4
      %s32 = int_to_ptr.vmem [resolvable:$true] %s31
      %34 = dma.hbm_to_vmem [thread:$0]  %s2, 16, %s32, [#allocation5]
    $region13: #{_lambda_.4} parent=1 // pred_fallthru
      _
    // Predicated region
    $region14: #{_lambda_.4} parent=1 // pred_check
      _
    $region15: #{_lambda_.4} parent=1 // pred_check_branch
      %36 = sbr.rel (0) target = $region17
    $region16: #{_lambda_.4} parent=1 // pred_region
      %s38 = ssub.s32 16, 16
      %39 = vsyncadd [#allocation5], %s38
      %s41 = sshll.u32 [#allocation6], 4
      %s42 = int_to_ptr.vmem [resolvable:$true] %s41
      %44 = dma.hbm_to_vmem [thread:$0]  %s3, 16, %s42, [#allocation5]
    $region17: #{_lambda_.4} parent=1 // pred_fallthru
      _
    // Predicated region
    $region18: #{_lambda_.4} parent=1 // pred_check
      _
    $region19: #{_lambda_.4} parent=1 // pred_check_branch
      %46 = sbr.rel (0) target = $region21
    $region20: #{_lambda_.4} parent=1 // pred_region
      %47 = dma.done [#allocation3], 4608
    $region21: #{_lambda_.4} parent=1 // pred_fallthru
      _
    // Predicated region
    $region22: #{_lambda_.4} parent=1 // pred_check
      _
    $region23: #{_lambda_.4} parent=1 // pred_check_branch
      %49 = sbr.rel (0) target = $region25
    $region24: #{_lambda_.4} parent=1 // pred_region
      %50 = dma.done [#allocation5], 16
    $region25: #{_lambda_.4} parent=1 // pred_fallthru
      _
    // Predicated region
    $region26: #{_lambda_.4} parent=1 // pred_check
      _
    $region27: #{_lambda_.4} parent=1 // pred_check_branch
      %52 = sbr.rel (0) target = $region29
    $region28: #{_lambda_.4} parent=1 // pred_region
      %53 = dma.done [#allocation5], 16
    $region29: #{_lambda_.4} parent=1 // pred_fallthru
      _
    %v55 = vld [vmem:[%s0] sm:$0xff]
    %v56 = vld [vmem:[%s0 + $0x8] sm:$0xff]
    %v57 = vld [vmem:[%s0 + $0x10] sm:$0xff]
    %v58 = vld [vmem:[%s0 + $0x18] sm:$0xff]
    %v59 = vld [vmem:[%s0 + $0x20] sm:$0xff]
    %v60 = vld [vmem:[%s0 + $0x28] sm:$0xff]
    %v61 = vld [vmem:[%s0 + $0x30] sm:$0xff]
    %v62 = vld [vmem:[%s0 + $0x38] sm:$0xff]
    %v63 = vld [vmem:[%s0 + $0x40] sm:$0xff]
    %v64 = vld [vmem:[%s0 + $0x48] sm:$0xff]
    %v65 = vld [vmem:[%s0 + $0x50] sm:$0x3]
    %v66 = vld [vmem:[%s0 + $0x58] sm:$0x3]
    %v67 = vld [vmem:[%s0 + $0x60] sm:$0x3]
    %v68 = vld [vmem:[%s0 + $0x68] sm:$0x3]
    %v69 = vld [vmem:[%s0 + $0x70] sm:$0x3]
    %v70 = vpack.c.bf16 %v60, %v55
    %v71 = vpack.c.bf16 %v61, %v56
    %v72 = vpack.c.bf16 %v62, %v57
    %v73 = vpack.c.bf16 %v63, %v58
    %v74 = vpack.c.bf16 %v64, %v59
    %v75 = vpack.c.bf16 %v65, %v65
    %v76 = vpack.c.bf16 %v66, %v66
    %v77 = vpack.c.bf16 %v67, %v67
    %v78 = vpack.c.bf16 %v68, %v68
    %v79 = vpack.c.bf16 %v69, %v69
    %v80 = vld [vmem:[#allocation2] sm:$0xf]
    %v81 = vld [vmem:[#allocation2 + $0x4] sm:$0xf]
    %v82 = vld [vmem:[#allocation2 + $0x8] sm:$0xf]
    %v83 = vld [vmem:[#allocation2 + $0xc] sm:$0xf]
    %v84 = vld [vmem:[#allocation2 + $0x10] sm:$0xf]
    %v85 = vld [vmem:[#allocation2 + $0x14] sm:$0xf]
    %v86 = vld [vmem:[#allocation2 + $0x18] sm:$0xf]
    %v87 = vld [vmem:[#allocation2 + $0x1c] sm:$0xf]
    %v88 = vld [vmem:[#allocation2 + $0x20] sm:$0xf]
    %v89 = vld [vmem:[#allocation2 + $0x24] sm:$0xf]
    %v90 = vld [vmem:[#allocation2 + $0x28] sm:$0xf]
    %v91 = vld [vmem:[#allocation2 + $0x2c] sm:$0xf]
    %v92 = vld [vmem:[#allocation2 + $0x30] sm:$0xf]
    %v93 = vld [vmem:[#allocation2 + $0x34] sm:$0xf]
    %v94 = vld [vmem:[#allocation2 + $0x38] sm:$0xf]
    %v95 = vld [vmem:[#allocation2 + $0x3c] sm:$0xf]
    %v96 = vld [vmem:[#allocation2 + $0x40] sm:$0xf]
    %v97 = vld [vmem:[#allocation2 + $0x44] sm:$0xf]
    %v98 = vld [vmem:[#allocation2 + $0x48] sm:$0xf]
    %v99 = vld [vmem:[#allocation2 + $0x4c] sm:$0xf]
    %v100 = vld [vmem:[#allocation2 + $0x50] sm:$0xf]
    %v101 = vld [vmem:[#allocation2 + $0x54] sm:$0xf]
    %v102 = vld [vmem:[#allocation2 + $0x58] sm:$0xf]
    %v103 = vld [vmem:[#allocation2 + $0x5c] sm:$0xf]
    %v104 = vld [vmem:[#allocation2 + $0x60] sm:$0xf]
    %v105 = vld [vmem:[#allocation2 + $0x64] sm:$0xf]
    %v106 = vld [vmem:[#allocation2 + $0x68] sm:$0xf]
    %v107 = vld [vmem:[#allocation2 + $0x6c] sm:$0xf]
    %v108 = vld [vmem:[#allocation2 + $0x70] sm:$0xf]
    %v109 = vld [vmem:[#allocation2 + $0x74] sm:$0xf]
    %v110 = vld [vmem:[#allocation2 + $0x78] sm:$0xf]
    %v111 = vld [vmem:[#allocation2 + $0x7c] sm:$0xf]
    %v112 = vld [vmem:[#allocation2 + $0x80] sm:$0xf]
    %v113 = vld [vmem:[#allocation2 + $0x84] sm:$0xf]
    %v114 = vld [vmem:[#allocation2 + $0x88] sm:$0xf]
    %v115 = vld [vmem:[#allocation2 + $0x8c] sm:$0xf]
    %v116 = vld [vmem:[#allocation2 + $0x90] sm:$0xf]
    %v117 = vld [vmem:[#allocation2 + $0x94] sm:$0xf]
    %v118 = vld [vmem:[#allocation2 + $0x98] sm:$0xf]
    %v119 = vld [vmem:[#allocation2 + $0x9c] sm:$0xf]
    %v120 = vld [vmem:[#allocation2 + $0xa0] sm:$0xf]
    %v121 = vld [vmem:[#allocation2 + $0xa4] sm:$0xf]
    %v122 = vld [vmem:[#allocation2 + $0xa8] sm:$0xf]
    %v123 = vld [vmem:[#allocation2 + $0xac] sm:$0xf]
    %v124 = vld [vmem:[#allocation2 + $0xb0] sm:$0xf]
    %v125 = vld [vmem:[#allocation2 + $0xb4] sm:$0xf]
    %v126 = vld [vmem:[#allocation2 + $0xb8] sm:$0xf]
    %v127 = vld [vmem:[#allocation2 + $0xbc] sm:$0xf]
    %v128 = vld [vmem:[#allocation2 + $0xc0] sm:$0xf]
    %v129 = vld [vmem:[#allocation2 + $0xc4] sm:$0xf]
    %v130 = vld [vmem:[#allocation2 + $0xc8] sm:$0xf]
    %v131 = vld [vmem:[#allocation2 + $0xcc] sm:$0xf]
    %v132 = vld [vmem:[#allocation2 + $0xd0] sm:$0xf]
    %v133 = vld [vmem:[#allocation2 + $0xd4] sm:$0xf]
    %v134 = vld [vmem:[#allocation2 + $0xd8] sm:$0xf]
    %v135 = vld [vmem:[#allocation2 + $0xdc] sm:$0xf]
    %v136 = vld [vmem:[#allocation2 + $0xe0] sm:$0xf]
    %v137 = vld [vmem:[#allocation2 + $0xe4] sm:$0xf]
    %v138 = vld [vmem:[#allocation2 + $0xe8] sm:$0xf]
    %v139 = vld [vmem:[#allocation2 + $0xec] sm:$0xf]
    %v140 = vld [vmem:[#allocation2 + $0xf0] sm:$0xf]
    %v141 = vld [vmem:[#allocation2 + $0xf4] sm:$0xf]
    %v142 = vld [vmem:[#allocation2 + $0xf8] sm:$0xf]
    %v143 = vld [vmem:[#allocation2 + $0xfc] sm:$0xf]
    %v144 = vld [vmem:[#allocation2 + $0x100] sm:$0xf]
    %v145 = vld [vmem:[#allocation2 + $0x104] sm:$0xf]
    %v146 = vld [vmem:[#allocation2 + $0x108] sm:$0xf]
    %v147 = vld [vmem:[#allocation2 + $0x10c] sm:$0xf]
    %v148 = vld [vmem:[#allocation2 + $0x110] sm:$0xf]
    %v149 = vld [vmem:[#allocation2 + $0x114] sm:$0xf]
    %v150 = vld [vmem:[#allocation2 + $0x118] sm:$0xf]
    %v151 = vld [vmem:[#allocation2 + $0x11c] sm:$0xf]
    %v224 = vunpack.c.l.b16 %v80
    %v225 = vunpack.c.l.b16 %v81
    %v226 = vunpack.c.l.b16 %v82
    %v227 = vunpack.c.l.b16 %v83
    %v228 = vunpack.c.l.b16 %v84
    %v229 = vunpack.c.l.b16 %v85
    %v230 = vunpack.c.l.b16 %v86
    %v231 = vunpack.c.l.b16 %v87
    %v232 = vunpack.c.l.b16 %v88
    %v233 = vunpack.c.l.b16 %v89
    %v234 = vunpack.c.l.b16 %v90
    %v235 = vunpack.c.l.b16 %v91
    %v236 = vunpack.c.l.b16 %v92
    %v237 = vunpack.c.l.b16 %v93
    %v238 = vunpack.c.l.b16 %v94
    %v239 = vunpack.c.l.b16 %v95
    %v240 = vunpack.c.l.b16 %v96
    %v241 = vunpack.c.l.b16 %v97
    %v242 = vunpack.c.l.b16 %v98
    %v243 = vunpack.c.l.b16 %v99
    %v244 = vunpack.c.l.b16 %v100
    %v245 = vunpack.c.l.b16 %v101
    %v246 = vunpack.c.l.b16 %v102
    %v247 = vunpack.c.l.b16 %v103
    %v248 = vunpack.c.l.b16 %v104
    %v249 = vunpack.c.l.b16 %v105
    %v250 = vunpack.c.l.b16 %v106
    %v251 = vunpack.c.l.b16 %v107
    %v252 = vunpack.c.l.b16 %v108
    %v253 = vunpack.c.l.b16 %v109
    %v254 = vunpack.c.l.b16 %v110
    %v255 = vunpack.c.l.b16 %v111
    %v256 = vunpack.c.l.b16 %v112
    %v257 = vunpack.c.l.b16 %v113
    %v258 = vunpack.c.l.b16 %v114
    %v259 = vunpack.c.l.b16 %v115
    %v260 = vunpack.c.l.b16 %v116
    %v261 = vunpack.c.l.b16 %v117
    %v262 = vunpack.c.l.b16 %v118
    %v263 = vunpack.c.l.b16 %v119
    %v264 = vunpack.c.l.b16 %v120
    %v265 = vunpack.c.l.b16 %v121
    %v266 = vunpack.c.l.b16 %v122
    %v267 = vunpack.c.l.b16 %v123
    %v268 = vunpack.c.l.b16 %v124
    %v269 = vunpack.c.l.b16 %v125
    %v270 = vunpack.c.l.b16 %v126
    %v271 = vunpack.c.l.b16 %v127
    %v272 = vunpack.c.l.b16 %v128
    %v273 = vunpack.c.l.b16 %v129
    %v274 = vunpack.c.l.b16 %v130
    %v275 = vunpack.c.l.b16 %v131
    %v276 = vunpack.c.l.b16 %v132
    %v277 = vunpack.c.l.b16 %v133
    %v278 = vunpack.c.l.b16 %v134
    %v279 = vunpack.c.l.b16 %v135
    %v280 = vunpack.c.l.b16 %v136
    %v281 = vunpack.c.l.b16 %v137
    %v282 = vunpack.c.l.b16 %v138
    %v283 = vunpack.c.l.b16 %v139
    %v284 = vunpack.c.l.b16 %v140
    %v285 = vunpack.c.l.b16 %v141
    %v286 = vunpack.c.l.b16 %v142
    %v287 = vunpack.c.l.b16 %v143
    %v288 = vunpack.c.l.b16 %v144
    %v289 = vunpack.c.l.b16 %v145
    %v290 = vunpack.c.l.b16 %v146
    %v291 = vunpack.c.l.b16 %v147
    %v292 = vunpack.c.l.b16 %v148
    %v293 = vunpack.c.l.b16 %v149
    %v294 = vunpack.c.l.b16 %v150
    %v295 = vunpack.c.l.b16 %v151
    %v296 = vpack.c.b16 %v225, %v224
    %v297 = vpack.c.b16 %v227, %v226
    %v298 = vpack.c.b16 %v229, %v228
    %v299 = vpack.c.b16 %v231, %v230
    %v300 = vpack.c.b16 %v233, %v232
    %v301 = vpack.c.b16 %v235, %v234
    %v302 = vpack.c.b16 %v237, %v236
    %v303 = vpack.c.b16 %v239, %v238
    %v304 = vpack.c.b16 %v241, %v240
    %v305 = vpack.c.b16 %v243, %v242
    %v306 = vpack.c.b16 %v245, %v244
    %v307 = vpack.c.b16 %v247, %v246
    %v308 = vpack.c.b16 %v249, %v248
    %v309 = vpack.c.b16 %v251, %v250
    %v310 = vpack.c.b16 %v253, %v252
    %v311 = vpack.c.b16 %v255, %v254
    %v312 = vpack.c.b16 %v257, %v256
    %v313 = vpack.c.b16 %v259, %v258
    %v314 = vpack.c.b16 %v261, %v260
    %v315 = vpack.c.b16 %v263, %v262
    %v316 = vpack.c.b16 %v265, %v264
    %v317 = vpack.c.b16 %v267, %v266
    %v318 = vpack.c.b16 %v269, %v268
    %v319 = vpack.c.b16 %v271, %v270
    %v320 = vpack.c.b16 %v273, %v272
    %v321 = vpack.c.b16 %v275, %v274
    %v322 = vpack.c.b16 %v277, %v276
    %v323 = vpack.c.b16 %v279, %v278
    %v324 = vpack.c.b16 %v281, %v280
    %v325 = vpack.c.b16 %v283, %v282
    %v326 = vpack.c.b16 %v285, %v284
    %v327 = vpack.c.b16 %v287, %v286
    %v328 = vpack.c.b16 %v289, %v288
    %v329 = vpack.c.b16 %v291, %v290
    %v330 = vpack.c.b16 %v293, %v292
    %v331 = vpack.c.b16 %v295, %v294
    %vm368 = vcmask 523264
    %v370 = vsel %vm368, %v74, 0
    %v373 = vsel %vm368, %v79, 0
    %375 = vmatprep.subr.bf16.mxu0 0
    %376 = vmatpush1.bf16.msra.mxu0 %v296
    %377 = vmatprep.subr.bf16.mxu0 0
    %378 = vmatpush1.bf16.msra.mxu0 %v297
    %379 = vmatprep.subr.bf16.mxu0 0
    %380 = vmatpush1.bf16.msra.mxu0 %v298
    %381 = vmatprep.subr.bf16.mxu0 0
    %382 = vmatpush1.bf16.msra.mxu0 %v299
    %383 = vmatprep.subr.bf16.mxu0 0
    %384 = vmatpush1.bf16.msra.mxu0 %v300
    %385 = vmatprep.subr.bf16.mxu0 0
    %386 = vmatpush1.bf16.msra.mxu0 %v301
    %387 = vmatprep.subr.bf16.mxu0 0
    %388 = vmatpush1.bf16.msra.mxu0 %v302
    %389 = vmatprep.subr.bf16.mxu0 0
    %390 = vmatpush1.bf16.msra.mxu0 %v303
    %391 = vmatprep.subr.bf16.mxu0 0
    %392 = vmatpush1.bf16.msra.mxu0 %v304
    %393 = vmatprep.subr.bf16.mxu0 0
    %394 = vmatpush1.bf16.msra.mxu0 %v305
    %395 = vmatprep.subr.bf16.mxu0 0
    %396 = vmatpush1.bf16.msra.mxu0 %v306
    %397 = vmatprep.subr.bf16.mxu0 0
    %398 = vmatpush1.bf16.msra.mxu0 %v307
    %399 = vmatprep.subr.bf16.mxu0 0
    %400 = vmatpush1.bf16.msra.mxu0 %v308
    %401 = vmatprep.subr.bf16.mxu0 0
    %402 = vmatpush1.bf16.msra.mxu0 %v309
    %403 = vmatprep.subr.bf16.mxu0 0
    %404 = vmatpush1.bf16.msra.mxu0 %v310
    %405 = vmatprep.subr.bf16.mxu0 0
    %406 = vmatpush1.bf16.msra.mxu0 %v311
    %407 = vmatprep.mubr.bf16.mxu0 %v71
    %408 = vmatmul.mubr.bf16.gmra.mrb[0].mxu0 %v70
    %v409 = vpop.f32.mrb[0].mxu0
    %v410 = vadd.f32 0.0, %v409
    %v411 = vpop.f32.mrb[0].mxu0
    %v412 = vpop.f32.mrb[0].mxu0
    %v413 = vadd.f32 0.0, %v412
    %v414 = vpop.f32.mrb[0].mxu0
    %415 = vmatprep.mubr.bf16.mxu0 %v76
    %416 = vmatmul.mubr.bf16.gmra.mrb[0].mxu0 %v75
    %v417 = vpop.f32.mrb[0].mxu0
    %v418 = vadd.f32 0.0, %v417
    %v419 = vpop.f32.mrb[0].mxu0
    %v420 = vpop.f32.mrb[0].mxu0
    %v421 = vpop.f32.mrb[0].mxu0
    %422 = vdwg.mxu0
    %423 = vmatprep.subr.bf16.mxu0 0
    %424 = vmatpush1.bf16.msra.mxu0 %v312
    %425 = vmatprep.subr.bf16.mxu0 0
    %426 = vmatpush1.bf16.msra.mxu0 %v313
    %427 = vmatprep.subr.bf16.mxu0 0
    %428 = vmatpush1.bf16.msra.mxu0 %v314
    %429 = vmatprep.subr.bf16.mxu0 0
    %430 = vmatpush1.bf16.msra.mxu0 %v315
    %431 = vmatprep.subr.bf16.mxu0 0
    %432 = vmatpush1.bf16.msra.mxu0 %v316
    %433 = vmatprep.subr.bf16.mxu0 0
    %434 = vmatpush1.bf16.msra.mxu0 %v317
    %435 = vmatprep.subr.bf16.mxu0 0
    %436 = vmatpush1.bf16.msra.mxu0 %v318
    %437 = vmatprep.subr.bf16.mxu0 0
    %438 = vmatpush1.bf16.msra.mxu0 %v319
    %439 = vmatprep.subr.bf16.mxu0 0
    %440 = vmatpush1.bf16.msra.mxu0 %v320
    %441 = vmatprep.subr.bf16.mxu0 0
    %442 = vmatpush1.bf16.msra.mxu0 %v321
    %443 = vmatprep.subr.bf16.mxu0 0
    %444 = vmatpush1.bf16.msra.mxu0 %v322
    %445 = vmatprep.subr.bf16.mxu0 0
    %446 = vmatpush1.bf16.msra.mxu0 %v323
    %447 = vmatprep.subr.bf16.mxu0 0
    %448 = vmatpush1.bf16.msra.mxu0 %v324
    %449 = vmatprep.subr.bf16.mxu0 0
    %450 = vmatpush1.bf16.msra.mxu0 %v325
    %451 = vmatprep.subr.bf16.mxu0 0
    %452 = vmatpush1.bf16.msra.mxu0 %v326
    %453 = vmatprep.subr.bf16.mxu0 0
    %454 = vmatpush1.bf16.msra.mxu0 %v327
    %455 = vmatprep.mubr.bf16.mxu0 %v73
    %456 = vmatmul.mubr.bf16.gmra.mrb[0].mxu0 %v72
    %v457 = vpop.f32.mrb[0].mxu0
    %v458 = vadd.f32 %v410, %v457
    %v459 = vpop.f32.mrb[0].mxu0
    %v460 = vpop.f32.mrb[0].mxu0
    %v461 = vadd.f32 %v413, %v460
    %v462 = vpop.f32.mrb[0].mxu0
    %463 = vmatprep.mubr.bf16.mxu0 %v78
    %464 = vmatmul.mubr.bf16.gmra.mrb[0].mxu0 %v77
    %v465 = vpop.f32.mrb[0].mxu0
    %v466 = vadd.f32 %v418, %v465
    %v467 = vpop.f32.mrb[0].mxu0
    %v468 = vpop.f32.mrb[0].mxu0
    %v469 = vpop.f32.mrb[0].mxu0
    %470 = vdwg.mxu0
    %471 = vmatprep.subr.bf16.mxu0 0
    %472 = vmatpush1.bf16.msra.mxu0 %v328
    %473 = vmatprep.subr.bf16.mxu0 0
    %474 = vmatpush1.bf16.msra.mxu0 %v329
    %475 = vmatprep.subr.bf16.mxu0 0
    %476 = vmatpush1.bf16.msra.mxu0 %v330
    %477 = vmatprep.subr.bf16.mxu0 0
    %478 = vmatpush1.bf16.msra.mxu0 %v331
    %479 = vmatprep.subr.bf16.mxu0 0
    %480 = vmatpush1.bf16.msra.mxu0 0
    %481 = vmatprep.subr.bf16.mxu0 0
    %482 = vmatpush1.bf16.msra.mxu0 0
    %483 = vmatprep.subr.bf16.mxu0 0
    %484 = vmatpush1.bf16.msra.mxu0 0
    %485 = vmatprep.subr.bf16.mxu0 0
    %486 = vmatpush1.bf16.msra.mxu0 0
    %487 = vmatprep.subr.bf16.mxu0 0
    %488 = vmatpush1.bf16.msra.mxu0 0
    %489 = vmatprep.subr.bf16.mxu0 0
    %490 = vmatpush1.bf16.msra.mxu0 0
    %491 = vmatprep.subr.bf16.mxu0 0
    %492 = vmatpush1.bf16.msra.mxu0 0
    %493 = vmatprep.subr.bf16.mxu0 0
    %494 = vmatpush1.bf16.msra.mxu0 0
    %495 = vmatprep.subr.bf16.mxu0 0
    %496 = vmatpush1.bf16.msra.mxu0 0
    %497 = vmatprep.subr.bf16.mxu0 0
    %498 = vmatpush1.bf16.msra.mxu0 0
    %499 = vmatprep.subr.bf16.mxu0 0
    %500 = vmatpush1.bf16.msra.mxu0 0
    %501 = vmatprep.subr.bf16.mxu0 0
    %502 = vmatpush1.bf16.msra.mxu0 0
    %503 = vmatprep.mubr.bf16.mxu0 0
    %504 = vmatmul.mubr.bf16.gmra.mrb[0].mxu0 %v370
    %v505 = vpop.f32.mrb[0].mxu0
    %v506 = vadd.f32 %v458, %v505
    %v507 = vpop.f32.mrb[0].mxu0
    %v508 = vpop.f32.mrb[0].mxu0
    %v509 = vadd.f32 %v461, %v508
    %v510 = vpop.f32.mrb[0].mxu0
    %511 = vmatprep.mubr.bf16.mxu0 0
    %512 = vmatmul.mubr.bf16.gmra.mrb[0].mxu0 %v373
    %v513 = vpop.f32.mrb[0].mxu0
    %v514 = vadd.f32 %v466, %v513
    %v515 = vpop.f32.mrb[0].mxu0
    %v516 = vpop.f32.mrb[0].mxu0
    %v517 = vpop.f32.mrb[0].mxu0
    %518 = vdwg.mxu0
    %v519 = vadd.f32 %v506, %v509
    %vm520 = vcmask 1041408
    %v521 = vsel %vm520, %v514, 0.0
    %v522 = vadd.f32 %v519, %v521
    %v523 = vrot.slane %v522, 4
    %v524 = vadd.f32 %v522, %v523
    %v525 = vrot.slane %v524, 2
    %v526 = vadd.f32 %v524, %v525
    %v527 = vrot.slane %v526, 1
    %v528 = vadd.f32 %v526, %v527
    %v529 = vrcp.pop 18.0
    %v530 = vmul.f32 %v528, %v529
    %v531 = vsub.f32 %v506, %v530
    %v532 = vsub.f32 %v509, %v530
    %v533 = vsub.f32 %v514, %v530
    %v534 = vmul.f32 %v531, %v531
    %v535 = vmul.f32 %v532, %v532
    %v536 = vmul.f32 %v533, %v533
    %v537 = vadd.f32 %v534, %v535
    %v538 = vsel %vm520, %v536, 0.0
    %v539 = vadd.f32 %v537, %v538
    %v540 = vrot.slane %v539, 4
    %v541 = vadd.f32 %v539, %v540
    %v542 = vrot.slane %v541, 2
    %v543 = vadd.f32 %v541, %v542
    %v544 = vrot.slane %v543, 1
    %v545 = vadd.f32 %v543, %v544
    %v546 = vmul.f32 %v545, %v529
    %v547 = vadd.f32 %v546, 1e-05
    %v548 = vrsqrt.pop %v547
    %v549 = vmul.f32 %v531, %v548
    %v550 = vmul.f32 %v532, %v548
    %v551 = vmul.f32 %v533, %v548
    %v552 = vld [vmem:[#allocation4] sm:$0x1]
    %v554 = vlaneseq
    %v555 = vshrl.u32 %v554, 7
    %v556 = vsub.s32 0, %v555
    %v557 = vrot.slane %v552, %v556
    %v559 = vmul.f32 %v549, %v557
    %v560 = vmul.f32 %v550, %v557
    %v561 = vmul.f32 %v551, %v557
    %v562 = vld [vmem:[#allocation6] sm:$0x1]
    %v564 = vlaneseq
    %v565 = vshrl.u32 %v564, 7
    %v566 = vsub.s32 0, %v565
    %v567 = vrot.slane %v562, %v566
    %v569 = vadd.f32 %v559, %v567
    %v570 = vadd.f32 %v560, %v567
    %v571 = vadd.f32 %v561, %v567
    %v572 = vmax.f32 %v569, 0.0
    %v573 = vmax.f32 %v570, 0.0
    %v574 = vmax.f32 %v571, 0.0
    %575 = vst [vmem:[%s4] sm:$0xff] %v572
    %576 = vst [vmem:[%s4 + $0x8] sm:$0xff] %v573
    %577 = vst [vmem:[%s4 + $0x10] sm:$0x3] %v574
    // Predicated region
    $region30: #{_lambda_.4} parent=1 // pred_check
      _
    $region31: #{_lambda_.4} parent=1 // pred_check_branch
      %579 = sbr.rel (0) target = $region33
    $region32: #{_lambda_.4} parent=1 // pred_region
      _
    $region33: #{_lambda_.4} parent=1 // pred_fallthru
      _
    // Predicated region
    $region34: #{_lambda_.4} parent=1 // pred_check
      _
    $region35: #{_lambda_.4} parent=1 // pred_check_branch
      %581 = sbr.rel (0) target = $region37
    $region36: #{_lambda_.4} parent=1 // pred_region
      _
    $region37: #{_lambda_.4} parent=1 // pred_fallthru
      _
    %582 = vsyncpa [#allocation3], 1
    %583 = vsyncpa [#allocation5], 1

// kernel: _lambda_.5
$region0: #{_lambda_.5}
  #allocation0 [shape = 'u32[]', space=smem, size = 0x4, offset = 0x4, fixed_abs, tag = 'smem constant byte address 0x4 - core index']
  #allocation1 [shape = 'u32[144,128]{1,0:T(1,128)}', space=vmem, size = 0x12000, scoped, tag = 'internal scratch']
  %s0 = inlined_call_operand.vmem [shape: f32[98,576], index: 0, kind: input, shape index: {}]
  %s1 = inlined_call_operand.vmem [shape: bf16[576,128], index: 1, kind: input, shape index: {}]
  %s2 = inlined_call_operand.vmem [shape: f32[1,128], index: 2, kind: input, shape index: {}]
  %s3 = inlined_call_operand.vmem [shape: f32[1,128], index: 3, kind: input, shape index: {}]
  %s4 = inlined_call_operand.vmem [shape: f32[98,128], index: 4, kind: output, shape index: {}]
  %s5 = sld [smem:[#allocation0]]
  $region26: #{_lambda_.5} parent=0
    _
  %s7 = ssub.s32 1, %s5
  %s8 = scalar_select 0, %s7, %s5
  // Predicated region
  $region2: #{_lambda_.5} parent=0 // pred_check
    _
  $region3: #{_lambda_.5} parent=0 // pred_check_branch
    %10 = sbr.rel (0) target = $region5
  $region4: #{_lambda_.5} parent=0 // pred_region
    _
  $region5: #{_lambda_.5} parent=0 // pred_fallthru
    _
  // Predicated region
  $region6: #{_lambda_.5} parent=0 // pred_check
    _
  $region7: #{_lambda_.5} parent=0 // pred_check_branch
    %12 = sbr.rel (0) target = $region9
  $region8: #{_lambda_.5} parent=0 // pred_region
    _
  $region9: #{_lambda_.5} parent=0 // pred_fallthru
    _
  // Predicated region
  $region10: #{_lambda_.5} parent=0 // pred_check
    _
  $region11: #{_lambda_.5} parent=0 // pred_check_branch
    %14 = sbr.rel (0) target = $region13
  $region12: #{_lambda_.5} parent=0 // pred_region
    _
  $region13: #{_lambda_.5} parent=0 // pred_fallthru
    _
  // Predicated region
  $region14: #{_lambda_.5} parent=0 // pred_check
    _
  $region15: #{_lambda_.5} parent=0 // pred_check_branch
    %16 = sbr.rel (0) target = $region17
  $region16: #{_lambda_.5} parent=0 // pred_region
    _
  $region17: #{_lambda_.5} parent=0 // pred_fallthru
    _
  %v18 = vld [vmem:[%s0] sm:$0xff]
  %v19 = vld [vmem:[%s0 + $0x8] sm:$0xff]
  %v20 = vld [vmem:[%s0 + $0x10] sm:$0xff]
  %v21 = vld [vmem:[%s0 + $0x18] sm:$0xff]
  %v22 = vld [vmem:[%s0 + $0x20] sm:$0xff]
  %v23 = vld [vmem:[%s0 + $0x28] sm:$0xff]
  %v24 = vld [vmem:[%s0 + $0x30] sm:$0xff]
  %v25 = vld [vmem:[%s0 + $0x38] sm:$0xff]
  %v26 = vld [vmem:[%s0 + $0x40] sm:$0xff]
  %v27 = vld [vmem:[%s0 + $0x48] sm:$0xff]
  %v28 = vld [vmem:[%s0 + $0x50] sm:$0xff]
  %v29 = vld [vmem:[%s0 + $0x58] sm:$0xff]
  %v30 = vld [vmem:[%s0 + $0x60] sm:$0xff]
  %v31 = vld [vmem:[%s0 + $0x68] sm:$0xff]
  %v32 = vld [vmem:[%s0 + $0x70] sm:$0xff]
  %v33 = vld [vmem:[%s0 + $0x78] sm:$0xff]
  %v34 = vld [vmem:[%s0 + $0x80] sm:$0xff]
  %v35 = vld [vmem:[%s0 + $0x88] sm:$0xff]
  %v36 = vld [vmem:[%s0 + $0x90] sm:$0xff]
  %v37 = vld [vmem:[%s0 + $0x98] sm:$0xff]
  %v38 = vld [vmem:[%s0 + $0xa0] sm:$0xff]
  %v39 = vld [vmem:[%s0 + $0xa8] sm:$0xff]
  %v40 = vld [vmem:[%s0 + $0xb0] sm:$0xff]
  %v41 = vld [vmem:[%s0 + $0xb8] sm:$0xff]
  %v42 = vld [vmem:[%s0 + $0xc0] sm:$0xff]
  %v43 = vld [vmem:[%s0 + $0xc8] sm:$0xff]
  %v44 = vld [vmem:[%s0 + $0xd0] sm:$0xff]
  %v45 = vld [vmem:[%s0 + $0xd8] sm:$0xff]
  %v46 = vld [vmem:[%s0 + $0xe0] sm:$0xff]
  %v47 = vld [vmem:[%s0 + $0xe8] sm:$0xff]
  %v48 = vld [vmem:[%s0 + $0xf0] sm:$0xff]
  %v49 = vld [vmem:[%s0 + $0xf8] sm:$0xff]
  %v50 = vld [vmem:[%s0 + $0x100] sm:$0xff]
  %v51 = vld [vmem:[%s0 + $0x108] sm:$0xff]
  %v52 = vld [vmem:[%s0 + $0x110] sm:$0xff]
  %v53 = vld [vmem:[%s0 + $0x118] sm:$0xff]
  %v54 = vld [vmem:[%s0 + $0x120] sm:$0xff]
  %v55 = vld [vmem:[%s0 + $0x128] sm:$0xff]
  %v56 = vld [vmem:[%s0 + $0x130] sm:$0xff]
  %v57 = vld [vmem:[%s0 + $0x138] sm:$0xff]
  %v58 = vld [vmem:[%s0 + $0x140] sm:$0xff]
  %v59 = vld [vmem:[%s0 + $0x148] sm:$0xff]
  %v60 = vld [vmem:[%s0 + $0x150] sm:$0xff]
  %v61 = vld [vmem:[%s0 + $0x158] sm:$0xff]
  %v62 = vld [vmem:[%s0 + $0x160] sm:$0xff]
  %v63 = vld [vmem:[%s0 + $0x168] sm:$0xff]
  %v64 = vld [vmem:[%s0 + $0x170] sm:$0xff]
  %v65 = vld [vmem:[%s0 + $0x178] sm:$0xff]
  %v66 = vld [vmem:[%s0 + $0x180] sm:$0xff]
  %v67 = vld [vmem:[%s0 + $0x188] sm:$0xff]
  %v68 = vld [vmem:[%s0 + $0x190] sm:$0xff]
  %v69 = vld [vmem:[%s0 + $0x198] sm:$0xff]
  %v70 = vld [vmem:[%s0 + $0x1a0] sm:$0xff]
  %v71 = vld [vmem:[%s0 + $0x1a8] sm:$0xff]
  %v72 = vld [vmem:[%s0 + $0x1b0] sm:$0xff]
  %v73 = vld [vmem:[%s0 + $0x1b8] sm:$0xff]
  %v74 = vld [vmem:[%s0 + $0x1c0] sm:$0xff]
  %v75 = vld [vmem:[%s0 + $0x1c8] sm:$0xff]
  %v76 = vld [vmem:[%s0 + $0x1d0] sm:$0xff]
  %v77 = vld [vmem:[%s0 + $0x1d8] sm:$0xff]
  %v78 = vld [vmem:[%s0 + $0x1e0] sm:$0x3]
  %v79 = vld [vmem:[%s0 + $0x1e8] sm:$0x3]
  %v80 = vld [vmem:[%s0 + $0x1f0] sm:$0x3]
  %v81 = vld [vmem:[%s0 + $0x1f8] sm:$0x3]
  %v82 = vld [vmem:[%s0 + $0x200] sm:$0x3]
  %v83 = vpack.c.bf16 %v23, %v18
  %v84 = vpack.c.bf16 %v24, %v19
  %v85 = vpack.c.bf16 %v25, %v20
  %v86 = vpack.c.bf16 %v26, %v21
  %v87 = vpack.c.bf16 %v27, %v22
  %v88 = vpack.c.bf16 %v33, %v28
  %v89 = vpack.c.bf16 %v34, %v29
  %v90 = vpack.c.bf16 %v35, %v30
  %v91 = vpack.c.bf16 %v36, %v31
  %v92 = vpack.c.bf16 %v37, %v32
  %v93 = vpack.c.bf16 %v43, %v38
  %v94 = vpack.c.bf16 %v44, %v39
  %v95 = vpack.c.bf16 %v45, %v40
  %v96 = vpack.c.bf16 %v46, %v41
  %v97 = vpack.c.bf16 %v47, %v42
  %v98 = vpack.c.bf16 %v53, %v48
  %v99 = vpack.c.bf16 %v54, %v49
  %v100 = vpack.c.bf16 %v55, %v50
  %v101 = vpack.c.bf16 %v56, %v51
  %v102 = vpack.c.bf16 %v57, %v52
  %v103 = vpack.c.bf16 %v63, %v58
  %v104 = vpack.c.bf16 %v64, %v59
  %v105 = vpack.c.bf16 %v65, %v60
  %v106 = vpack.c.bf16 %v66, %v61
  %v107 = vpack.c.bf16 %v67, %v62
  %v108 = vpack.c.bf16 %v73, %v68
  %v109 = vpack.c.bf16 %v74, %v69
  %v110 = vpack.c.bf16 %v75, %v70
  %v111 = vpack.c.bf16 %v76, %v71
  %v112 = vpack.c.bf16 %v77, %v72
  %v113 = vpack.c.bf16 %v78, %v78
  %v114 = vpack.c.bf16 %v79, %v79
  %v115 = vpack.c.bf16 %v80, %v80
  %v116 = vpack.c.bf16 %v81, %v81
  %v117 = vpack.c.bf16 %v82, %v82
  %v118 = vld [vmem:[%s1] sm:$0xf]
  %v119 = vld [vmem:[%s1 + $0x4] sm:$0xf]
  %v120 = vld [vmem:[%s1 + $0x8] sm:$0xf]
  %v121 = vld [vmem:[%s1 + $0xc] sm:$0xf]
  %v122 = vld [vmem:[%s1 + $0x10] sm:$0xf]
  %v123 = vld [vmem:[%s1 + $0x14] sm:$0xf]
  %v124 = vld [vmem:[%s1 + $0x18] sm:$0xf]
  %v125 = vld [vmem:[%s1 + $0x1c] sm:$0xf]
  %v126 = vld [vmem:[%s1 + $0x20] sm:$0xf]
  %v127 = vld [vmem:[%s1 + $0x24] sm:$0xf]
  %v128 = vld [vmem:[%s1 + $0x28] sm:$0xf]
  %v129 = vld [vmem:[%s1 + $0x2c] sm:$0xf]
  %v130 = vld [vmem:[%s1 + $0x30] sm:$0xf]
  %v131 = vld [vmem:[%s1 + $0x34] sm:$0xf]
  %v132 = vld [vmem:[%s1 + $0x38] sm:$0xf]
  %v133 = vld [vmem:[%s1 + $0x3c] sm:$0xf]
  %v134 = vld [vmem:[%s1 + $0x40] sm:$0xf]
  %v135 = vld [vmem:[%s1 + $0x44] sm:$0xf]
  %v136 = vld [vmem:[%s1 + $0x48] sm:$0xf]
  %v137 = vld [vmem:[%s1 + $0x4c] sm:$0xf]
  %v138 = vld [vmem:[%s1 + $0x50] sm:$0xf]
  %v139 = vld [vmem:[%s1 + $0x54] sm:$0xf]
  %v140 = vld [vmem:[%s1 + $0x58] sm:$0xf]
  %v141 = vld [vmem:[%s1 + $0x5c] sm:$0xf]
  %v142 = vld [vmem:[%s1 + $0x60] sm:$0xf]
  %v143 = vld [vmem:[%s1 + $0x64] sm:$0xf]
  %v144 = vld [vmem:[%s1 + $0x68] sm:$0xf]
  %v145 = vld [vmem:[%s1 + $0x6c] sm:$0xf]
  %v146 = vld [vmem:[%s1 + $0x70] sm:$0xf]
  %v147 = vld [vmem:[%s1 + $0x74] sm:$0xf]
  %v148 = vld [vmem:[%s1 + $0x78] sm:$0xf]
  %v149 = vld [vmem:[%s1 + $0x7c] sm:$0xf]
  %v150 = vld [vmem:[%s1 + $0x80] sm:$0xf]
  %v151 = vld [vmem:[%s1 + $0x84] sm:$0xf]
  %v152 = vld [vmem:[%s1 + $0x88] sm:$0xf]
  %v153 = vld [vmem:[%s1 + $0x8c] sm:$0xf]
  %v154 = vld [vmem:[%s1 + $0x90] sm:$0xf]
  %v155 = vld [vmem:[%s1 + $0x94] sm:$0xf]
  %v156 = vld [vmem:[%s1 + $0x98] sm:$0xf]
  %v157 = vld [vmem:[%s1 + $0x9c] sm:$0xf]
  %v158 = vld [vmem:[%s1 + $0xa0] sm:$0xf]
  %v159 = vld [vmem:[%s1 + $0xa4] sm:$0xf]
  %v160 = vld [vmem:[%s1 + $0xa8] sm:$0xf]
  %v161 = vld [vmem:[%s1 + $0xac] sm:$0xf]
  %v162 = vld [vmem:[%s1 + $0xb0] sm:$0xf]
  %v163 = vld [vmem:[%s1 + $0xb4] sm:$0xf]
  %v164 = vld [vmem:[%s1 + $0xb8] sm:$0xf]
  %v165 = vld [vmem:[%s1 + $0xbc] sm:$0xf]
  %v166 = vld [vmem:[%s1 + $0xc0] sm:$0xf]
  %v167 = vld [vmem:[%s1 + $0xc4] sm:$0xf]
  %v168 = vld [vmem:[%s1 + $0xc8] sm:$0xf]
  %v169 = vld [vmem:[%s1 + $0xcc] sm:$0xf]
  %v170 = vld [vmem:[%s1 + $0xd0] sm:$0xf]
  %v171 = vld [vmem:[%s1 + $0xd4] sm:$0xf]
  %v172 = vld [vmem:[%s1 + $0xd8] sm:$0xf]
  %v173 = vld [vmem:[%s1 + $0xdc] sm:$0xf]
  %v174 = vld [vmem:[%s1 + $0xe0] sm:$0xf]
  %v175 = vld [vmem:[%s1 + $0xe4] sm:$0xf]
  %v176 = vld [vmem:[%s1 + $0xe8] sm:$0xf]
  %v177 = vld [vmem:[%s1 + $0xec] sm:$0xf]
  %v178 = vld [vmem:[%s1 + $0xf0] sm:$0xf]
  %v179 = vld [vmem:[%s1 + $0xf4] sm:$0xf]
  %v180 = vld [vmem:[%s1 + $0xf8] sm:$0xf]
  %v181 = vld [vmem:[%s1 + $0xfc] sm:$0xf]
  %v182 = vld [vmem:[%s1 + $0x100] sm:$0xf]
  %v183 = vld [vmem:[%s1 + $0x104] sm:$0xf]
  %v184 = vld [vmem:[%s1 + $0x108] sm:$0xf]
  %v185 = vld [vmem:[%s1 + $0x10c] sm:$0xf]
  %v186 = vld [vmem:[%s1 + $0x110] sm:$0xf]
  %v187 = vld [vmem:[%s1 + $0x114] sm:$0xf]
  %v188 = vld [vmem:[%s1 + $0x118] sm:$0xf]
  %v189 = vld [vmem:[%s1 + $0x11c] sm:$0xf]
  %v262 = vunpack.c.l.b16 %v118
  %v263 = vunpack.c.l.b16 %v119
  %v264 = vunpack.c.l.b16 %v120
  %v265 = vunpack.c.l.b16 %v121
  %v266 = vunpack.c.l.b16 %v122
  %v267 = vunpack.c.l.b16 %v123
  %v268 = vunpack.c.l.b16 %v124
  %v269 = vunpack.c.l.b16 %v125
  %v270 = vunpack.c.l.b16 %v126
  %v271 = vunpack.c.l.b16 %v127
  %v272 = vunpack.c.l.b16 %v128
  %v273 = vunpack.c.l.b16 %v129
  %v274 = vunpack.c.l.b16 %v130
  %v275 = vunpack.c.l.b16 %v131
  %v276 = vunpack.c.l.b16 %v132
  %v277 = vunpack.c.l.b16 %v133
  %v278 = vunpack.c.l.b16 %v134
  %v279 = vunpack.c.l.b16 %v135
  %v280 = vunpack.c.l.b16 %v136
  %v281 = vunpack.c.l.b16 %v137
  %v282 = vunpack.c.l.b16 %v138
  %v283 = vunpack.c.l.b16 %v139
  %v284 = vunpack.c.l.b16 %v140
  %v285 = vunpack.c.l.b16 %v141
  %v286 = vunpack.c.l.b16 %v142
  %v287 = vunpack.c.l.b16 %v143
  %v288 = vunpack.c.l.b16 %v144
  %v289 = vunpack.c.l.b16 %v145
  %v290 = vunpack.c.l.b16 %v146
  %v291 = vunpack.c.l.b16 %v147
  %v292 = vunpack.c.l.b16 %v148
  %v293 = vunpack.c.l.b16 %v149
  %v294 = vunpack.c.l.b16 %v150
  %v295 = vunpack.c.l.b16 %v151
  %v296 = vunpack.c.l.b16 %v152
  %v297 = vunpack.c.l.b16 %v153
  %v298 = vunpack.c.l.b16 %v154
  %v299 = vunpack.c.l.b16 %v155
  %v300 = vunpack.c.l.b16 %v156
  %v301 = vunpack.c.l.b16 %v157
  %v302 = vunpack.c.l.b16 %v158
  %v303 = vunpack.c.l.b16 %v159
  %v304 = vunpack.c.l.b16 %v160
  %v305 = vunpack.c.l.b16 %v161
  %v306 = vunpack.c.l.b16 %v162
  %v307 = vunpack.c.l.b16 %v163
  %v308 = vunpack.c.l.b16 %v164
  %v309 = vunpack.c.l.b16 %v165
  %v310 = vunpack.c.l.b16 %v166
  %v311 = vunpack.c.l.b16 %v167
  %v312 = vunpack.c.l.b16 %v168
  %v313 = vunpack.c.l.b16 %v169
  %v314 = vunpack.c.l.b16 %v170
  %v315 = vunpack.c.l.b16 %v171
  %v316 = vunpack.c.l.b16 %v172
  %v317 = vunpack.c.l.b16 %v173
  %v318 = vunpack.c.l.b16 %v174
  %v319 = vunpack.c.l.b16 %v175
  %v320 = vunpack.c.l.b16 %v176
  %v321 = vunpack.c.l.b16 %v177
  %v322 = vunpack.c.l.b16 %v178
  %v323 = vunpack.c.l.b16 %v179
  %v324 = vunpack.c.l.b16 %v180
  %v325 = vunpack.c.l.b16 %v181
  %v326 = vunpack.c.l.b16 %v182
  %v327 = vunpack.c.l.b16 %v183
  %v328 = vunpack.c.l.b16 %v184
  %v329 = vunpack.c.l.b16 %v185
  %v330 = vunpack.c.l.b16 %v186
  %v331 = vunpack.c.l.b16 %v187
  %v332 = vunpack.c.l.b16 %v188
  %v333 = vunpack.c.l.b16 %v189
  %v334 = vpack.c.b16 %v263, %v262
  %v335 = vpack.c.b16 %v265, %v264
  %v336 = vpack.c.b16 %v267, %v266
  %v337 = vpack.c.b16 %v269, %v268
  %v338 = vpack.c.b16 %v271, %v270
  %v339 = vpack.c.b16 %v273, %v272
  %v340 = vpack.c.b16 %v275, %v274
  %v341 = vpack.c.b16 %v277, %v276
  %v342 = vpack.c.b16 %v279, %v278
  %v343 = vpack.c.b16 %v281, %v280
  %v344 = vpack.c.b16 %v283, %v282
  %v345 = vpack.c.b16 %v285, %v284
  %v346 = vpack.c.b16 %v287, %v286
  %v347 = vpack.c.b16 %v289, %v288
  %v348 = vpack.c.b16 %v291, %v290
  %v349 = vpack.c.b16 %v293, %v292
  %v350 = vpack.c.b16 %v295, %v294
  %v351 = vpack.c.b16 %v297, %v296
  %v352 = vpack.c.b16 %v299, %v298
  %v353 = vpack.c.b16 %v301, %v300
  %v354 = vpack.c.b16 %v303, %v302
  %v355 = vpack.c.b16 %v305, %v304
  %v356 = vpack.c.b16 %v307, %v306
  %v357 = vpack.c.b16 %v309, %v308
  %v358 = vpack.c.b16 %v311, %v310
  %v359 = vpack.c.b16 %v313, %v312
  %v360 = vpack.c.b16 %v315, %v314
  %v361 = vpack.c.b16 %v317, %v316
  %v362 = vpack.c.b16 %v319, %v318
  %v363 = vpack.c.b16 %v321, %v320
  %v364 = vpack.c.b16 %v323, %v322
  %v365 = vpack.c.b16 %v325, %v324
  %v366 = vpack.c.b16 %v327, %v326
  %v367 = vpack.c.b16 %v329, %v328
  %v368 = vpack.c.b16 %v331, %v330
  %v369 = vpack.c.b16 %v333, %v332
  %vm406 = vcmask 523264
  %v408 = vsel %vm406, %v87, 0
  %v411 = vsel %vm406, %v92, 0
  %v414 = vsel %vm406, %v97, 0
  %v417 = vsel %vm406, %v102, 0
  %v420 = vsel %vm406, %v107, 0
  %v423 = vsel %vm406, %v112, 0
  %v426 = vsel %vm406, %v117, 0
  %428 = vmatprep.subr.bf16.mxu0 0
  %429 = vmatpush1.bf16.msra.mxu0 %v334
  %430 = vmatprep.subr.bf16.mxu0 0
  %431 = vmatpush1.bf16.msra.mxu0 %v335
  %432 = vmatprep.subr.bf16.mxu0 0
  %433 = vmatpush1.bf16.msra.mxu0 %v336
  %434 = vmatprep.subr.bf16.mxu0 0
  %435 = vmatpush1.bf16.msra.mxu0 %v337
  %436 = vmatprep.subr.bf16.mxu0 0
  %437 = vmatpush1.bf16.msra.mxu0 %v338
  %438 = vmatprep.subr.bf16.mxu0 0
  %439 = vmatpush1.bf16.msra.mxu0 %v339
  %440 = vmatprep.subr.bf16.mxu0 0
  %441 = vmatpush1.bf16.msra.mxu0 %v340
  %442 = vmatprep.subr.bf16.mxu0 0
  %443 = vmatpush1.bf16.msra.mxu0 %v341
  %444 = vmatprep.subr.bf16.mxu0 0
  %445 = vmatpush1.bf16.msra.mxu0 %v342
  %446 = vmatprep.subr.bf16.mxu0 0
  %447 = vmatpush1.bf16.msra.mxu0 %v343
  %448 = vmatprep.subr.bf16.mxu0 0
  %449 = vmatpush1.bf16.msra.mxu0 %v344
  %450 = vmatprep.subr.bf16.mxu0 0
  %451 = vmatpush1.bf16.msra.mxu0 %v345
  %452 = vmatprep.subr.bf16.mxu0 0
  %453 = vmatpush1.bf16.msra.mxu0 %v346
  %454 = vmatprep.subr.bf16.mxu0 0
  %455 = vmatpush1.bf16.msra.mxu0 %v347
  %456 = vmatprep.subr.bf16.mxu0 0
  %457 = vmatpush1.bf16.msra.mxu0 %v348
  %458 = vmatprep.subr.bf16.mxu0 0
  %459 = vmatpush1.bf16.msra.mxu0 %v349
  %460 = vmatprep.mubr.bf16.mxu0 %v84
  %461 = vmatmul.mubr.bf16.gmra.mrb[0].mxu0 %v83
  %v462 = vpop.f32.mrb[0].mxu0
  %v463 = vadd.f32 0.0, %v462
  %v464 = vpop.f32.mrb[0].mxu0
  %v465 = vpop.f32.mrb[0].mxu0
  %v466 = vadd.f32 0.0, %v465
  %v467 = vpop.f32.mrb[0].mxu0
  %468 = vmatprep.mubr.bf16.mxu0 %v89
  %469 = vmatmul.mubr.bf16.gmra.mrb[0].mxu0 %v88
  %v470 = vpop.f32.mrb[0].mxu0
  %v471 = vadd.f32 0.0, %v470
  %v472 = vpop.f32.mrb[0].mxu0
  %v473 = vpop.f32.mrb[0].mxu0
  %v474 = vadd.f32 0.0, %v473
  %v475 = vpop.f32.mrb[0].mxu0
  %476 = vmatprep.mubr.bf16.mxu0 %v94
  %477 = vmatmul.mubr.bf16.gmra.mrb[0].mxu0 %v93
  %v478 = vpop.f32.mrb[0].mxu0
  %v479 = vadd.f32 0.0, %v478
  %v480 = vpop.f32.mrb[0].mxu0
  %v481 = vpop.f32.mrb[0].mxu0
  %v482 = vadd.f32 0.0, %v481
  %v483 = vpop.f32.mrb[0].mxu0
  %484 = vmatprep.mubr.bf16.mxu0 %v99
  %485 = vmatmul.mubr.bf16.gmra.mrb[0].mxu0 %v98
  %v486 = vpop.f32.mrb[0].mxu0
  %v487 = vadd.f32 0.0, %v486
  %v488 = vpop.f32.mrb[0].mxu0
  %v489 = vpop.f32.mrb[0].mxu0
  %v490 = vadd.f32 0.0, %v489
  %v491 = vpop.f32.mrb[0].mxu0
  %492 = vmatprep.mubr.bf16.mxu0 %v104
  %493 = vmatmul.mubr.bf16.gmra.mrb[0].mxu0 %v103
  %v494 = vpop.f32.mrb[0].mxu0
  %v495 = vadd.f32 0.0, %v494
  %v496 = vpop.f32.mrb[0].mxu0
  %v497 = vpop.f32.mrb[0].mxu0
  %v498 = vadd.f32 0.0, %v497
  %v499 = vpop.f32.mrb[0].mxu0
  %500 = vmatprep.mubr.bf16.mxu0 %v109
  %501 = vmatmul.mubr.bf16.gmra.mrb[0].mxu0 %v108
  %v502 = vpop.f32.mrb[0].mxu0
  %v503 = vadd.f32 0.0, %v502
  %v504 = vpop.f32.mrb[0].mxu0
  %v505 = vpop.f32.mrb[0].mxu0
  %v506 = vadd.f32 0.0, %v505
  %v507 = vpop.f32.mrb[0].mxu0
  %508 = vmatprep.mubr.bf16.mxu0 %v114
  %509 = vmatmul.mubr.bf16.gmra.mrb[0].mxu0 %v113
  %v510 = vpop.f32.mrb[0].mxu0
  %v511 = vadd.f32 0.0, %v510
  %v512 = vpop.f32.mrb[0].mxu0
  %v513 = vpop.f32.mrb[0].mxu0
  %v514 = vpop.f32.mrb[0].mxu0
  %515 = vdwg.mxu0
  %516 = vmatprep.subr.bf16.mxu0 0
  %517 = vmatpush1.bf16.msra.mxu0 %v350
  %518 = vmatprep.subr.bf16.mxu0 0
  %519 = vmatpush1.bf16.msra.mxu0 %v351
  %520 = vmatprep.subr.bf16.mxu0 0
  %521 = vmatpush1.bf16.msra.mxu0 %v352
  %522 = vmatprep.subr.bf16.mxu0 0
  %523 = vmatpush1.bf16.msra.mxu0 %v353
  %524 = vmatprep.subr.bf16.mxu0 0
  %525 = vmatpush1.bf16.msra.mxu0 %v354
  %526 = vmatprep.subr.bf16.mxu0 0
  %527 = vmatpush1.bf16.msra.mxu0 %v355
  %528 = vmatprep.subr.bf16.mxu0 0
  %529 = vmatpush1.bf16.msra.mxu0 %v356
  %530 = vmatprep.subr.bf16.mxu0 0
  %531 = vmatpush1.bf16.msra.mxu0 %v357
  %532 = vmatprep.subr.bf16.mxu0 0
  %533 = vmatpush1.bf16.msra.mxu0 %v358
  %534 = vmatprep.subr.bf16.mxu0 0
  %535 = vmatpush1.bf16.msra.mxu0 %v359
  %536 = vmatprep.subr.bf16.mxu0 0
  %537 = vmatpush1.bf16.msra.mxu0 %v360
  %538 = vmatprep.subr.bf16.mxu0 0
  %539 = vmatpush1.bf16.msra.mxu0 %v361
  %540 = vmatprep.subr.bf16.mxu0 0
  %541 = vmatpush1.bf16.msra.mxu0 %v362
  %542 = vmatprep.subr.bf16.mxu0 0
  %543 = vmatpush1.bf16.msra.mxu0 %v363
  %544 = vmatprep.subr.bf16.mxu0 0
  %545 = vmatpush1.bf16.msra.mxu0 %v364
  %546 = vmatprep.subr.bf16.mxu0 0
  %547 = vmatpush1.bf16.msra.mxu0 %v365
  %548 = vmatprep.mubr.bf16.mxu0 %v86
  %549 = vmatmul.mubr.bf16.gmra.mrb[0].mxu0 %v85
  %v550 = vpop.f32.mrb[0].mxu0
  %v551 = vadd.f32 %v463, %v550
  %v552 = vpop.f32.mrb[0].mxu0
  %v553 = vpop.f32.mrb[0].mxu0
  %v554 = vadd.f32 %v466, %v553
  %v555 = vpop.f32.mrb[0].mxu0
  %556 = vmatprep.mubr.bf16.mxu0 %v91
  %557 = vmatmul.mubr.bf16.gmra.mrb[0].mxu0 %v90
  %v558 = vpop.f32.mrb[0].mxu0
  %v559 = vadd.f32 %v471, %v558
  %v560 = vpop.f32.mrb[0].mxu0
  %v561 = vpop.f32.mrb[0].mxu0
  %v562 = vadd.f32 %v474, %v561
  %v563 = vpop.f32.mrb[0].mxu0
  %564 = vmatprep.mubr.bf16.mxu0 %v96
  %565 = vmatmul.mubr.bf16.gmra.mrb[0].mxu0 %v95
  %v566 = vpop.f32.mrb[0].mxu0
  %v567 = vadd.f32 %v479, %v566
  %v568 = vpop.f32.mrb[0].mxu0
  %v569 = vpop.f32.mrb[0].mxu0
  %v570 = vadd.f32 %v482, %v569
  %v571 = vpop.f32.mrb[0].mxu0
  %572 = vmatprep.mubr.bf16.mxu0 %v101
  %573 = vmatmul.mubr.bf16.gmra.mrb[0].mxu0 %v100
  %v574 = vpop.f32.mrb[0].mxu0
  %v575 = vadd.f32 %v487, %v574
  %v576 = vpop.f32.mrb[0].mxu0
  %v577 = vpop.f32.mrb[0].mxu0
  %v578 = vadd.f32 %v490, %v577
  %v579 = vpop.f32.mrb[0].mxu0
  %580 = vmatprep.mubr.bf16.mxu0 %v106
  %581 = vmatmul.mubr.bf16.gmra.mrb[0].mxu0 %v105
  %v582 = vpop.f32.mrb[0].mxu0
  %v583 = vadd.f32 %v495, %v582
  %v584 = vpop.f32.mrb[0].mxu0
  %v585 = vpop.f32.mrb[0].mxu0
  %v586 = vadd.f32 %v498, %v585
  %v587 = vpop.f32.mrb[0].mxu0
  %588 = vmatprep.mubr.bf16.mxu0 %v111
  %589 = vmatmul.mubr.bf16.gmra.mrb[0].mxu0 %v110
  %v590 = vpop.f32.mrb[0].mxu0
  %v591 = vadd.f32 %v503, %v590
  %v592 = vpop.f32.mrb[0].mxu0
  %v593 = vpop.f32.mrb[0].mxu0
  %v594 = vadd.f32 %v506, %v593
  %v595 = vpop.f32.mrb[0].mxu0
  %596 = vmatprep.mubr.bf16.mxu0 %v116
  %597 = vmatmul.mubr.bf16.gmra.mrb[0].mxu0 %v115
  %v598 = vpop.f32.mrb[0].mxu0
  %v599 = vadd.f32 %v511, %v598
  %v600 = vpop.f32.mrb[0].mxu0
  %v601 = vpop.f32.mrb[0].mxu0
  %v602 = vpop.f32.mrb[0].mxu0
  %603 = vdwg.mxu0
  %604 = vmatprep.subr.bf16.mxu0 0
  %605 = vmatpush1.bf16.msra.mxu0 %v366
  %606 = vmatprep.subr.bf16.mxu0 0
  %607 = vmatpush1.bf16.msra.mxu0 %v367
  %608 = vmatprep.subr.bf16.mxu0 0
  %609 = vmatpush1.bf16.msra.mxu0 %v368
  %610 = vmatprep.subr.bf16.mxu0 0
  %611 = vmatpush1.bf16.msra.mxu0 %v369
  %612 = vmatprep.subr.bf16.mxu0 0
  %613 = vmatpush1.bf16.msra.mxu0 0
  %614 = vmatprep.subr.bf16.mxu0 0
  %615 = vmatpush1.bf16.msra.mxu0 0
  %616 = vmatprep.subr.bf16.mxu0 0
  %617 = vmatpush1.bf16.msra.mxu0 0
  %618 = vmatprep.subr.bf16.mxu0 0
  %619 = vmatpush1.bf16.msra.mxu0 0
  %620 = vmatprep.subr.bf16.mxu0 0
  %621 = vmatpush1.bf16.msra.mxu0 0
  %622 = vmatprep.subr.bf16.mxu0 0
  %623 = vmatpush1.bf16.msra.mxu0 0
  %624 = vmatprep.subr.bf16.mxu0 0
  %625 = vmatpush1.bf16.msra.mxu0 0
  %626 = vmatprep.subr.bf16.mxu0 0
  %627 = vmatpush1.bf16.msra.mxu0 0
  %628 = vmatprep.subr.bf16.mxu0 0
  %629 = vmatpush1.bf16.msra.mxu0 0
  %630 = vmatprep.subr.bf16.mxu0 0
  %631 = vmatpush1.bf16.msra.mxu0 0
  %632 = vmatprep.subr.bf16.mxu0 0
  %633 = vmatpush1.bf16.msra.mxu0 0
  %634 = vmatprep.subr.bf16.mxu0 0
  %635 = vmatpush1.bf16.msra.mxu0 0
  %636 = vmatprep.mubr.bf16.mxu0 0
  %637 = vmatmul.mubr.bf16.gmra.mrb[0].mxu0 %v408
  %v638 = vpop.f32.mrb[0].mxu0
  %v639 = vadd.f32 %v551, %v638
  %v640 = vpop.f32.mrb[0].mxu0
  %v641 = vpop.f32.mrb[0].mxu0
  %v642 = vadd.f32 %v554, %v641
  %v643 = vpop.f32.mrb[0].mxu0
  %644 = vmatprep.mubr.bf16.mxu0 0
  %645 = vmatmul.mubr.bf16.gmra.mrb[0].mxu0 %v411
  %v646 = vpop.f32.mrb[0].mxu0
  %v647 = vadd.f32 %v559, %v646
  %v648 = vpop.f32.mrb[0].mxu0
  %v649 = vpop.f32.mrb[0].mxu0
  %v650 = vadd.f32 %v562, %v649
  %v651 = vpop.f32.mrb[0].mxu0
  %652 = vmatprep.mubr.bf16.mxu0 0
  %653 = vmatmul.mubr.bf16.gmra.mrb[0].mxu0 %v414
  %v654 = vpop.f32.mrb[0].mxu0
  %v655 = vadd.f32 %v567, %v654
  %v656 = vpop.f32.mrb[0].mxu0
  %v657 = vpop.f32.mrb[0].mxu0
  %v658 = vadd.f32 %v570, %v657
  %v659 = vpop.f32.mrb[0].mxu0
  %660 = vmatprep.mubr.bf16.mxu0 0
  %661 = vmatmul.mubr.bf16.gmra.mrb[0].mxu0 %v417
  %v662 = vpop.f32.mrb[0].mxu0
  %v663 = vadd.f32 %v575, %v662
  %v664 = vpop.f32.mrb[0].mxu0
  %v665 = vpop.f32.mrb[0].mxu0
  %v666 = vadd.f32 %v578, %v665
  %v667 = vpop.f32.mrb[0].mxu0
  %668 = vmatprep.mubr.bf16.mxu0 0
  %669 = vmatmul.mubr.bf16.gmra.mrb[0].mxu0 %v420
  %v670 = vpop.f32.mrb[0].mxu0
  %v671 = vadd.f32 %v583, %v670
  %v672 = vpop.f32.mrb[0].mxu0
  %v673 = vpop.f32.mrb[0].mxu0
  %v674 = vadd.f32 %v586, %v673
  %v675 = vpop.f32.mrb[0].mxu0
  %676 = vmatprep.mubr.bf16.mxu0 0
  %677 = vmatmul.mubr.bf16.gmra.mrb[0].mxu0 %v423
  %v678 = vpop.f32.mrb[0].mxu0
  %v679 = vadd.f32 %v591, %v678
  %v680 = vpop.f32.mrb[0].mxu0
  %v681 = vpop.f32.mrb[0].mxu0
  %v682 = vadd.f32 %v594, %v681
  %v683 = vpop.f32.mrb[0].mxu0
  %684 = vmatprep.mubr.bf16.mxu0 0
  %685 = vmatmul.mubr.bf16.gmra.mrb[0].mxu0 %v426
  %v686 = vpop.f32.mrb[0].mxu0
  %v687 = vadd.f32 %v599, %v686
  %v688 = vpop.f32.mrb[0].mxu0
  %v689 = vpop.f32.mrb[0].mxu0
  %v690 = vpop.f32.mrb[0].mxu0
  %691 = vdwg.mxu0
  %v692 = vadd.f32 %v639, %v642
  %v693 = vadd.f32 %v692, %v647
  %v694 = vadd.f32 %v693, %v650
  %v695 = vadd.f32 %v694, %v655
  %v696 = vadd.f32 %v695, %v658
  %v697 = vadd.f32 %v696, %v663
  %v698 = vadd.f32 %v697, %v666
  %v699 = vadd.f32 %v698, %v671
  %v700 = vadd.f32 %v699, %v674
  %v701 = vadd.f32 %v700, %v679
  %v702 = vadd.f32 %v701, %v682
  %vm703 = vcmask 1041408
  %v704 = vsel %vm703, %v687, 0.0
  %v705 = vadd.f32 %v702, %v704
  %v706 = vrot.slane %v705, 4
  %v707 = vadd.f32 %v705, %v706
  %v708 = vrot.slane %v707, 2
  %v709 = vadd.f32 %v707, %v708
  %v710 = vrot.slane %v709, 1
  %v711 = vadd.f32 %v709, %v710
  %v712 = vrcp.pop 98.0
  %v713 = vmul.f32 %v711, %v712
  %v714 = vsub.f32 %v639, %v713
  %v715 = vsub.f32 %v642, %v713
  %v716 = vsub.f32 %v647, %v713
  %v717 = vsub.f32 %v650, %v713
  %v718 = vsub.f32 %v655, %v713
  %v719 = vsub.f32 %v658, %v713
  %v720 = vsub.f32 %v663, %v713
  %v721 = vsub.f32 %v666, %v713
  %v722 = vsub.f32 %v671, %v713
  %v723 = vsub.f32 %v674, %v713
  %v724 = vsub.f32 %v679, %v713
  %v725 = vsub.f32 %v682, %v713
  %v726 = vsub.f32 %v687, %v713
  %v727 = vmul.f32 %v714, %v714
  %v728 = vmul.f32 %v715, %v715
  %v729 = vmul.f32 %v716, %v716
  %v730 = vmul.f32 %v717, %v717
  %v731 = vmul.f32 %v718, %v718
  %v732 = vmul.f32 %v719, %v719
  %v733 = vmul.f32 %v720, %v720
  %v734 = vmul.f32 %v721, %v721
  %v735 = vmul.f32 %v722, %v722
  %v736 = vmul.f32 %v723, %v723
  %v737 = vmul.f32 %v724, %v724
  %v738 = vmul.f32 %v725, %v725
  %v739 = vmul.f32 %v726, %v726
  %v740 = vadd.f32 %v727, %v728
  %v741 = vadd.f32 %v740, %v729
  %v742 = vadd.f32 %v741, %v730
  %v743 = vadd.f32 %v742, %v731
  %v744 = vadd.f32 %v743, %v732
  %v745 = vadd.f32 %v744, %v733
  %v746 = vadd.f32 %v745, %v734
  %v747 = vadd.f32 %v746, %v735
  %v748 = vadd.f32 %v747, %v736
  %v749 = vadd.f32 %v748, %v737
  %v750 = vadd.f32 %v749, %v738
  %v751 = vsel %vm703, %v739, 0.0
  %v752 = vadd.f32 %v750, %v751
  %v753 = vrot.slane %v752, 4
  %v754 = vadd.f32 %v752, %v753
  %v755 = vrot.slane %v754, 2
  %v756 = vadd.f32 %v754, %v755
  %v757 = vrot.slane %v756, 1
  %v758 = vadd.f32 %v756, %v757
  %v759 = vmul.f32 %v758, %v712
  %v760 = vadd.f32 %v759, 1e-05
  %v761 = vrsqrt.pop %v760
  %v762 = vmul.f32 %v714, %v761
  %v763 = vmul.f32 %v715, %v761
  %v764 = vmul.f32 %v716, %v761
  %v765 = vmul.f32 %v717, %v761
  %v766 = vmul.f32 %v718, %v761
  %v767 = vmul.f32 %v719, %v761
  %v768 = vmul.f32 %v720, %v761
  %v769 = vmul.f32 %v721, %v761
  %v770 = vmul.f32 %v722, %v761
  %v771 = vmul.f32 %v723, %v761
  %v772 = vmul.f32 %v724, %v761
  %v773 = vmul.f32 %v725, %v761
  %v774 = vmul.f32 %v726, %v761
  %v775 = vld [vmem:[%s2] sm:$0x1]
  %v777 = vlaneseq
  %v778 = vshrl.u32 %v777, 7
  %v779 = vsub.s32 0, %v778
  %v780 = vrot.slane %v775, %v779
  %v782 = vmul.f32 %v762, %v780
  %v783 = vmul.f32 %v763, %v780
  %v784 = vmul.f32 %v764, %v780
  %v785 = vmul.f32 %v765, %v780
  %v786 = vmul.f32 %v766, %v780
  %v787 = vmul.f32 %v767, %v780
  %v788 = vmul.f32 %v768, %v780
  %v789 = vmul.f32 %v769, %v780
  %v790 = vmul.f32 %v770, %v780
  %v791 = vmul.f32 %v771, %v780
  %v792 = vmul.f32 %v772, %v780
  %v793 = vmul.f32 %v773, %v780
  %v794 = vmul.f32 %v774, %v780
  %v795 = vld [vmem:[%s3] sm:$0x1]
  %v797 = vlaneseq
  %v798 = vshrl.u32 %v797, 7
  %v799 = vsub.s32 0, %v798
  %v800 = vrot.slane %v795, %v799
  %v802 = vadd.f32 %v782, %v800
  %v803 = vadd.f32 %v783, %v800
  %v804 = vadd.f32 %v784, %v800
  %v805 = vadd.f32 %v785, %v800
  %v806 = vadd.f32 %v786, %v800
  %v807 = vadd.f32 %v787, %v800
  %v808 = vadd.f32 %v788, %v800
  %v809 = vadd.f32 %v789, %v800
  %v810 = vadd.f32 %v790, %v800
  %v811 = vadd.f32 %v791, %v800
  %v812 = vadd.f32 %v792, %v800
  %v813 = vadd.f32 %v793, %v800
  %v814 = vadd.f32 %v794, %v800
  %v815 = vmax.f32 %v802, 0.0
  %v816 = vmax.f32 %v803, 0.0
  %v817 = vmax.f32 %v804, 0.0
  %v818 = vmax.f32 %v805, 0.0
  %v819 = vmax.f32 %v806, 0.0
  %v820 = vmax.f32 %v807, 0.0
  %v821 = vmax.f32 %v808, 0.0
  %v822 = vmax.f32 %v809, 0.0
  %v823 = vmax.f32 %v810, 0.0
  %v824 = vmax.f32 %v811, 0.0
  %v825 = vmax.f32 %v812, 0.0
  %v826 = vmax.f32 %v813, 0.0
  %v827 = vmax.f32 %v814, 0.0
  %828 = vst [vmem:[%s4] sm:$0xff] %v815
  %829 = vst [vmem:[%s4 + $0x8] sm:$0xff] %v816
  %830 = vst [vmem:[%s4 + $0x10] sm:$0xff] %v817
  %831 = vst [vmem:[%s4 + $0x18] sm:$0xff] %v818
  %832 = vst [vmem:[%s4 + $0x20] sm:$0xff] %v819
  %833 = vst [vmem:[%s4 + $0x28] sm:$0xff] %v820
  %834 = vst [vmem:[%s4 + $0x30] sm:$0xff] %v821
  %835 = vst [vmem:[%s4 + $0x38] sm:$0xff] %v822
  %836 = vst [vmem:[%s4 + $0x40] sm:$0xff] %v823
  %837 = vst [vmem:[%s4 + $0x48] sm:$0xff] %v824
  %838 = vst [vmem:[%s4 + $0x50] sm:$0xff] %v825
  %839 = vst [vmem:[%s4 + $0x58] sm:$0xff] %v826
  %840 = vst [vmem:[%s4 + $0x60] sm:$0x3] %v827
  // Predicated region
  $region18: #{_lambda_.5} parent=0 // pred_check
    _
  $region19: #{_lambda_.5} parent=0 // pred_check_branch
    %842 = sbr.rel (0) target = $region21
  $region20: #{_lambda_.5} parent=0 // pred_region
    _
  $region21: #{_lambda_.5} parent=0 // pred_fallthru
    _
  // Predicated region
  $region22: #{_lambda_.5} parent=0 // pred_check
    _
  $region23: #{_lambda_.5} parent=0 // pred_check_branch
    %844 = sbr.rel (0) target = $region25
  $region24: #{_lambda_.5} parent=0 // pred_region
    _
  $region25: #{_lambda_.5} parent=0 // pred_fallthru
    _

// kernel: _lambda_.6
$region0: #{_lambda_.6}
  #allocation0 [shape = 'u32[]', space=smem, size = 0x4, offset = 0x4, fixed_abs, tag = 'smem constant byte address 0x4 - core index']
  #allocation1 [shape = 'u32[144,128]{1,0:T(1,128)}', space=vmem, size = 0x12000, scoped, tag = 'internal scratch']
  %s0 = inlined_call_operand.vmem [shape: f32[392,512], index: 0, kind: input, shape index: {}]
  %s1 = inlined_call_operand.vmem [shape: bf16[512,128], index: 1, kind: input, shape index: {}]
  %s2 = inlined_call_operand.vmem [shape: f32[1,128], index: 2, kind: input, shape index: {}]
  %s3 = inlined_call_operand.vmem [shape: f32[1,128], index: 3, kind: input, shape index: {}]
  %s4 = inlined_call_operand.vmem [shape: f32[392,128], index: 4, kind: output, shape index: {}]
  %s5 = sld [smem:[#allocation0]]
  $region26: #{_lambda_.6} parent=0
    _
  %s7 = ssub.s32 1, %s5
  %s8 = scalar_select 0, %s7, %s5
  // Predicated region
  $region2: #{_lambda_.6} parent=0 // pred_check
    _
  $region3: #{_lambda_.6} parent=0 // pred_check_branch
    %10 = sbr.rel (0) target = $region5
  $region4: #{_lambda_.6} parent=0 // pred_region
    _
  $region5: #{_lambda_.6} parent=0 // pred_fallthru
    _
  // Predicated region
  $region6: #{_lambda_.6} parent=0 // pred_check
    _
  $region7: #{_lambda_.6} parent=0 // pred_check_branch
    %12 = sbr.rel (0) target = $region9
  $region8: #{_lambda_.6} parent=0 // pred_region
    _
  $region9: #{_lambda_.6} parent=0 // pred_fallthru
    _
  // Predicated region
  $region10: #{_lambda_.6} parent=0 // pred_check
    _
  $region11: #{_lambda_.6} parent=0 // pred_check_branch
    %14 = sbr.rel (0) target = $region13
  $region12: #{_lambda_.6} parent=0 // pred_region
    _
  $region13: #{_lambda_.6} parent=0 // pred_fallthru
    _
  // Predicated region
  $region14: #{_lambda_.6} parent=0 // pred_check
    _
  $region15: #{_lambda_.6} parent=0 // pred_check_branch
    %16 = sbr.rel (0) target = $region17
  $region16: #{_lambda_.6} parent=0 // pred_region
    _
  $region17: #{_lambda_.6} parent=0 // pred_fallthru
    _
  %v18 = vld [vmem:[%s0] sm:$0xff]
  %v19 = vld [vmem:[%s0 + $0x8] sm:$0xff]
  %v20 = vld [vmem:[%s0 + $0x10] sm:$0xff]
  %v21 = vld [vmem:[%s0 + $0x18] sm:$0xff]
  %v22 = vld [vmem:[%s0 + $0x20] sm:$0xff]
  %v23 = vld [vmem:[%s0 + $0x28] sm:$0xff]
  %v24 = vld [vmem:[%s0 + $0x30] sm:$0xff]
  %v25 = vld [vmem:[%s0 + $0x38] sm:$0xff]
  %v26 = vld [vmem:[%s0 + $0x40] sm:$0xff]
  %v27 = vld [vmem:[%s0 + $0x48] sm:$0xff]
  %v28 = vld [vmem:[%s0 + $0x50] sm:$0xff]
  %v29 = vld [vmem:[%s0 + $0x58] sm:$0xff]
  %v30 = vld [vmem:[%s0 + $0x60] sm:$0xff]
  %v31 = vld [vmem:[%s0 + $0x68] sm:$0xff]
  %v32 = vld [vmem:[%s0 + $0x70] sm:$0xff]
  %v33 = vld [vmem:[%s0 + $0x78] sm:$0xff]
  %v34 = vld [vmem:[%s0 + $0x80] sm:$0xff]
  %v35 = vld [vmem:[%s0 + $0x88] sm:$0xff]
  %v36 = vld [vmem:[%s0 + $0x90] sm:$0xff]
  %v37 = vld [vmem:[%s0 + $0x98] sm:$0xff]
  %v38 = vld [vmem:[%s0 + $0xa0] sm:$0xff]
  %v39 = vld [vmem:[%s0 + $0xa8] sm:$0xff]
  %v40 = vld [vmem:[%s0 + $0xb0] sm:$0xff]
  %v41 = vld [vmem:[%s0 + $0xb8] sm:$0xff]
  %v42 = vld [vmem:[%s0 + $0xc0] sm:$0xff]
  %v43 = vld [vmem:[%s0 + $0xc8] sm:$0xff]
  %v44 = vld [vmem:[%s0 + $0xd0] sm:$0xff]
  %v45 = vld [vmem:[%s0 + $0xd8] sm:$0xff]
  %v46 = vld [vmem:[%s0 + $0xe0] sm:$0xff]
  %v47 = vld [vmem:[%s0 + $0xe8] sm:$0xff]
  %v48 = vld [vmem:[%s0 + $0xf0] sm:$0xff]
  %v49 = vld [vmem:[%s0 + $0xf8] sm:$0xff]
  %v50 = vld [vmem:[%s0 + $0x100] sm:$0xff]
  %v51 = vld [vmem:[%s0 + $0x108] sm:$0xff]
  %v52 = vld [vmem:[%s0 + $0x110] sm:$0xff]
  %v53 = vld [vmem:[%s0 + $0x118] sm:$0xff]
  %v54 = vld [vmem:[%s0 + $0x120] sm:$0xff]
  %v55 = vld [vmem:[%s0 + $0x128] sm:$0xff]
  %v56 = vld [vmem:[%s0 + $0x130] sm:$0xff]
  %v57 = vld [vmem:[%s0 + $0x138] sm:$0xff]
  %v58 = vld [vmem:[%s0 + $0x140] sm:$0xff]
  %v59 = vld [vmem:[%s0 + $0x148] sm:$0xff]
  %v60 = vld [vmem:[%s0 + $0x150] sm:$0xff]
  %v61 = vld [vmem:[%s0 + $0x158] sm:$0xff]
  %v62 = vld [vmem:[%s0 + $0x160] sm:$0xff]
  %v63 = vld [vmem:[%s0 + $0x168] sm:$0xff]
  %v64 = vld [vmem:[%s0 + $0x170] sm:$0xff]
  %v65 = vld [vmem:[%s0 + $0x178] sm:$0xff]
  %v66 = vld [vmem:[%s0 + $0x180] sm:$0xff]
  %v67 = vld [vmem:[%s0 + $0x188] sm:$0xff]
  %v68 = vld [vmem:[%s0 + $0x190] sm:$0xff]
  %v69 = vld [vmem:[%s0 + $0x198] sm:$0xff]
  %v70 = vld [vmem:[%s0 + $0x1a0] sm:$0xff]
  %v71 = vld [vmem:[%s0 + $0x1a8] sm:$0xff]
  %v72 = vld [vmem:[%s0 + $0x1b0] sm:$0xff]
  %v73 = vld [vmem:[%s0 + $0x1b8] sm:$0xff]
  %v74 = vld [vmem:[%s0 + $0x1c0] sm:$0xff]
  %v75 = vld [vmem:[%s0 + $0x1c8] sm:$0xff]
  %v76 = vld [vmem:[%s0 + $0x1d0] sm:$0xff]
  %v77 = vld [vmem:[%s0 + $0x1d8] sm:$0xff]
  %v78 = vld [vmem:[%s0 + $0x1e0] sm:$0xff]
  %v79 = vld [vmem:[%s0 + $0x1e8] sm:$0xff]
  %v80 = vld [vmem:[%s0 + $0x1f0] sm:$0xff]
  %v81 = vld [vmem:[%s0 + $0x1f8] sm:$0xff]
  %v82 = vld [vmem:[%s0 + $0x200] sm:$0xff]
  %v83 = vld [vmem:[%s0 + $0x208] sm:$0xff]
  %v84 = vld [vmem:[%s0 + $0x210] sm:$0xff]
  %v85 = vld [vmem:[%s0 + $0x218] sm:$0xff]
  %v86 = vld [vmem:[%s0 + $0x220] sm:$0xff]
  %v87 = vld [vmem:[%s0 + $0x228] sm:$0xff]
  %v88 = vld [vmem:[%s0 + $0x230] sm:$0xff]
  %v89 = vld [vmem:[%s0 + $0x238] sm:$0xff]
  %v90 = vld [vmem:[%s0 + $0x240] sm:$0xff]
  %v91 = vld [vmem:[%s0 + $0x248] sm:$0xff]
  %v92 = vld [vmem:[%s0 + $0x250] sm:$0xff]
  %v93 = vld [vmem:[%s0 + $0x258] sm:$0xff]
  %v94 = vld [vmem:[%s0 + $0x260] sm:$0xff]
  %v95 = vld [vmem:[%s0 + $0x268] sm:$0xff]
  %v96 = vld [vmem:[%s0 + $0x270] sm:$0xff]
  %v97 = vld [vmem:[%s0 + $0x278] sm:$0xff]
  %v98 = vld [vmem:[%s0 + $0x280] sm:$0xff]
  %v99 = vld [vmem:[%s0 + $0x288] sm:$0xff]
  %v100 = vld [vmem:[%s0 + $0x290] sm:$0xff]
  %v101 = vld [vmem:[%s0 + $0x298] sm:$0xff]
  %v102 = vld [vmem:[%s0 + $0x2a0] sm:$0xff]
  %v103 = vld [vmem:[%s0 + $0x2a8] sm:$0xff]
  %v104 = vld [vmem:[%s0 + $0x2b0] sm:$0xff]
  %v105 = vld [vmem:[%s0 + $0x2b8] sm:$0xff]
  %v106 = vld [vmem:[%s0 + $0x2c0] sm:$0xff]
  %v107 = vld [vmem:[%s0 + $0x2c8] sm:$0xff]
  %v108 = vld [vmem:[%s0 + $0x2d0] sm:$0xff]
  %v109 = vld [vmem:[%s0 + $0x2d8] sm:$0xff]
  %v110 = vld [vmem:[%s0 + $0x2e0] sm:$0xff]
  %v111 = vld [vmem:[%s0 + $0x2e8] sm:$0xff]
  %v112 = vld [vmem:[%s0 + $0x2f0] sm:$0xff]
  %v113 = vld [vmem:[%s0 + $0x2f8] sm:$0xff]
  %v114 = vld [vmem:[%s0 + $0x300] sm:$0xff]
  %v115 = vld [vmem:[%s0 + $0x308] sm:$0xff]
  %v116 = vld [vmem:[%s0 + $0x310] sm:$0xff]
  %v117 = vld [vmem:[%s0 + $0x318] sm:$0xff]
  %v118 = vld [vmem:[%s0 + $0x320] sm:$0xff]
  %v119 = vld [vmem:[%s0 + $0x328] sm:$0xff]
  %v120 = vld [vmem:[%s0 + $0x330] sm:$0xff]
  %v121 = vld [vmem:[%s0 + $0x338] sm:$0xff]
  %v122 = vld [vmem:[%s0 + $0x340] sm:$0xff]
  %v123 = vld [vmem:[%s0 + $0x348] sm:$0xff]
  %v124 = vld [vmem:[%s0 + $0x350] sm:$0xff]
  %v125 = vld [vmem:[%s0 + $0x358] sm:$0xff]
  %v126 = vld [vmem:[%s0 + $0x360] sm:$0xff]
  %v127 = vld [vmem:[%s0 + $0x368] sm:$0xff]
  %v128 = vld [vmem:[%s0 + $0x370] sm:$0xff]
  %v129 = vld [vmem:[%s0 + $0x378] sm:$0xff]
  %v130 = vld [vmem:[%s0 + $0x380] sm:$0xff]
  %v131 = vld [vmem:[%s0 + $0x388] sm:$0xff]
  %v132 = vld [vmem:[%s0 + $0x390] sm:$0xff]
  %v133 = vld [vmem:[%s0 + $0x398] sm:$0xff]
  %v134 = vld [vmem:[%s0 + $0x3a0] sm:$0xff]
  %v135 = vld [vmem:[%s0 + $0x3a8] sm:$0xff]
  %v136 = vld [vmem:[%s0 + $0x3b0] sm:$0xff]
  %v137 = vld [vmem:[%s0 + $0x3b8] sm:$0xff]
  %v138 = vld [vmem:[%s0 + $0x3c0] sm:$0xff]
  %v139 = vld [vmem:[%s0 + $0x3c8] sm:$0xff]
  %v140 = vld [vmem:[%s0 + $0x3d0] sm:$0xff]
  %v141 = vld [vmem:[%s0 + $0x3d8] sm:$0xff]
  %v142 = vld [vmem:[%s0 + $0x3e0] sm:$0xff]
  %v143 = vld [vmem:[%s0 + $0x3e8] sm:$0xff]
  %v144 = vld [vmem:[%s0 + $0x3f0] sm:$0xff]
  %v145 = vld [vmem:[%s0 + $0x3f8] sm:$0xff]
  %v146 = vld [vmem:[%s0 + $0x400] sm:$0xff]
  %v147 = vld [vmem:[%s0 + $0x408] sm:$0xff]
  %v148 = vld [vmem:[%s0 + $0x410] sm:$0xff]
  %v149 = vld [vmem:[%s0 + $0x418] sm:$0xff]
  %v150 = vld [vmem:[%s0 + $0x420] sm:$0xff]
  %v151 = vld [vmem:[%s0 + $0x428] sm:$0xff]
  %v152 = vld [vmem:[%s0 + $0x430] sm:$0xff]
  %v153 = vld [vmem:[%s0 + $0x438] sm:$0xff]
  %v154 = vld [vmem:[%s0 + $0x440] sm:$0xff]
  %v155 = vld [vmem:[%s0 + $0x448] sm:$0xff]
  %v156 = vld [vmem:[%s0 + $0x450] sm:$0xff]
  %v157 = vld [vmem:[%s0 + $0x458] sm:$0xff]
  %v158 = vld [vmem:[%s0 + $0x460] sm:$0xff]
  %v159 = vld [vmem:[%s0 + $0x468] sm:$0xff]
  %v160 = vld [vmem:[%s0 + $0x470] sm:$0xff]
  %v161 = vld [vmem:[%s0 + $0x478] sm:$0xff]
  %v162 = vld [vmem:[%s0 + $0x480] sm:$0xff]
  %v163 = vld [vmem:[%s0 + $0x488] sm:$0xff]
  %v164 = vld [vmem:[%s0 + $0x490] sm:$0xff]
  %v165 = vld [vmem:[%s0 + $0x498] sm:$0xff]
  %v166 = vld [vmem:[%s0 + $0x4a0] sm:$0xff]
  %v167 = vld [vmem:[%s0 + $0x4a8] sm:$0xff]
  %v168 = vld [vmem:[%s0 + $0x4b0] sm:$0xff]
  %v169 = vld [vmem:[%s0 + $0x4b8] sm:$0xff]
  %v170 = vld [vmem:[%s0 + $0x4c0] sm:$0xff]
  %v171 = vld [vmem:[%s0 + $0x4c8] sm:$0xff]
  %v172 = vld [vmem:[%s0 + $0x4d0] sm:$0xff]
  %v173 = vld [vmem:[%s0 + $0x4d8] sm:$0xff]
  %v174 = vld [vmem:[%s0 + $0x4e0] sm:$0xff]
  %v175 = vld [vmem:[%s0 + $0x4e8] sm:$0xff]
  %v176 = vld [vmem:[%s0 + $0x4f0] sm:$0xff]
  %v177 = vld [vmem:[%s0 + $0x4f8] sm:$0xff]
  %v178 = vld [vmem:[%s0 + $0x500] sm:$0xff]
  %v179 = vld [vmem:[%s0 + $0x508] sm:$0xff]
  %v180 = vld [vmem:[%s0 + $0x510] sm:$0xff]
  %v181 = vld [vmem:[%s0 + $0x518] sm:$0xff]
  %v182 = vld [vmem:[%s0 + $0x520] sm:$0xff]
  %v183 = vld [vmem:[%s0 + $0x528] sm:$0xff]
  %v184 = vld [vmem:[%s0 + $0x530] sm:$0xff]
  %v185 = vld [vmem:[%s0 + $0x538] sm:$0xff]
  %v186 = vld [vmem:[%s0 + $0x540] sm:$0xff]
  %v187 = vld [vmem:[%s0 + $0x548] sm:$0xff]
  %v188 = vld [vmem:[%s0 + $0x550] sm:$0xff]
  %v189 = vld [vmem:[%s0 + $0x558] sm:$0xff]
  %v190 = vld [vmem:[%s0 + $0x560] sm:$0xff]
  %v191 = vld [vmem:[%s0 + $0x568] sm:$0xff]
  %v192 = vld [vmem:[%s0 + $0x570] sm:$0xff]
  %v193 = vld [vmem:[%s0 + $0x578] sm:$0xff]
  %v194 = vld [vmem:[%s0 + $0x580] sm:$0xff]
  %v195 = vld [vmem:[%s0 + $0x588] sm:$0xff]
  %v196 = vld [vmem:[%s0 + $0x590] sm:$0xff]
  %v197 = vld [vmem:[%s0 + $0x598] sm:$0xff]
  %v198 = vld [vmem:[%s0 + $0x5a0] sm:$0xff]
  %v199 = vld [vmem:[%s0 + $0x5a8] sm:$0xff]
  %v200 = vld [vmem:[%s0 + $0x5b0] sm:$0xff]
  %v201 = vld [vmem:[%s0 + $0x5b8] sm:$0xff]
  %v202 = vld [vmem:[%s0 + $0x5c0] sm:$0xff]
  %v203 = vld [vmem:[%s0 + $0x5c8] sm:$0xff]
  %v204 = vld [vmem:[%s0 + $0x5d0] sm:$0xff]
  %v205 = vld [vmem:[%s0 + $0x5d8] sm:$0xff]
  %v206 = vld [vmem:[%s0 + $0x5e0] sm:$0xff]
  %v207 = vld [vmem:[%s0 + $0x5e8] sm:$0xff]
  %v208 = vld [vmem:[%s0 + $0x5f0] sm:$0xff]
  %v209 = vld [vmem:[%s0 + $0x5f8] sm:$0xff]
  %v210 = vld [vmem:[%s0 + $0x600] sm:$0xff]
  %v211 = vld [vmem:[%s0 + $0x608] sm:$0xff]
  %v212 = vld [vmem:[%s0 + $0x610] sm:$0xff]
  %v213 = vld [vmem:[%s0 + $0x618] sm:$0xff]
  %v214 = vpack.c.bf16 %v22, %v18
  %v215 = vpack.c.bf16 %v23, %v19
  %v216 = vpack.c.bf16 %v24, %v20
  %v217 = vpack.c.bf16 %v25, %v21
  %v218 = vpack.c.bf16 %v30, %v26
  %v219 = vpack.c.bf16 %v31, %v27
  %v220 = vpack.c.bf16 %v32, %v28
  %v221 = vpack.c.bf16 %v33, %v29
  %v222 = vpack.c.bf16 %v38, %v34
  %v223 = vpack.c.bf16 %v39, %v35
  %v224 = vpack.c.bf16 %v40, %v36
  %v225 = vpack.c.bf16 %v41, %v37
  %v226 = vpack.c.bf16 %v46, %v42
  %v227 = vpack.c.bf16 %v47, %v43
  %v228 = vpack.c.bf16 %v48, %v44
  %v229 = vpack.c.bf16 %v49, %v45
  %v230 = vpack.c.bf16 %v54, %v50
  %v231 = vpack.c.bf16 %v55, %v51
  %v232 = vpack.c.bf16 %v56, %v52
  %v233 = vpack.c.bf16 %v57, %v53
  %v234 = vpack.c.bf16 %v62, %v58
  %v235 = vpack.c.bf16 %v63, %v59
  %v236 = vpack.c.bf16 %v64, %v60
  %v237 = vpack.c.bf16 %v65, %v61
  %v238 = vpack.c.bf16 %v70, %v66
  %v239 = vpack.c.bf16 %v71, %v67
  %v240 = vpack.c.bf16 %v72, %v68
  %v241 = vpack.c.bf16 %v73, %v69
  %v242 = vpack.c.bf16 %v78, %v74
  %v243 = vpack.c.bf16 %v79, %v75
  %v244 = vpack.c.bf16 %v80, %v76
  %v245 = vpack.c.bf16 %v81, %v77
  %v246 = vpack.c.bf16 %v86, %v82
  %v247 = vpack.c.bf16 %v87, %v83
  %v248 = vpack.c.bf16 %v88, %v84
  %v249 = vpack.c.bf16 %v89, %v85
  %v250 = vpack.c.bf16 %v94, %v90
  %v251 = vpack.c.bf16 %v95, %v91
  %v252 = vpack.c.bf16 %v96, %v92
  %v253 = vpack.c.bf16 %v97, %v93
  %v254 = vpack.c.bf16 %v102, %v98
  %v255 = vpack.c.bf16 %v103, %v99
  %v256 = vpack.c.bf16 %v104, %v100
  %v257 = vpack.c.bf16 %v105, %v101
  %v258 = vpack.c.bf16 %v110, %v106
  %v259 = vpack.c.bf16 %v111, %v107
  %v260 = vpack.c.bf16 %v112, %v108
  %v261 = vpack.c.bf16 %v113, %v109
  %v262 = vpack.c.bf16 %v118, %v114
  %v263 = vpack.c.bf16 %v119, %v115
  %v264 = vpack.c.bf16 %v120, %v116
  %v265 = vpack.c.bf16 %v121, %v117
  %v266 = vpack.c.bf16 %v126, %v122
  %v267 = vpack.c.bf16 %v127, %v123
  %v268 = vpack.c.bf16 %v128, %v124
  %v269 = vpack.c.bf16 %v129, %v125
  %v270 = vpack.c.bf16 %v134, %v130
  %v271 = vpack.c.bf16 %v135, %v131
  %v272 = vpack.c.bf16 %v136, %v132
  %v273 = vpack.c.bf16 %v137, %v133
  %v274 = vpack.c.bf16 %v142, %v138
  %v275 = vpack.c.bf16 %v143, %v139
  %v276 = vpack.c.bf16 %v144, %v140
  %v277 = vpack.c.bf16 %v145, %v141
  %v278 = vpack.c.bf16 %v150, %v146
  %v279 = vpack.c.bf16 %v151, %v147
  %v280 = vpack.c.bf16 %v152, %v148
  %v281 = vpack.c.bf16 %v153, %v149
  %v282 = vpack.c.bf16 %v158, %v154
  %v283 = vpack.c.bf16 %v159, %v155
  %v284 = vpack.c.bf16 %v160, %v156
  %v285 = vpack.c.bf16 %v161, %v157
  %v286 = vpack.c.bf16 %v166, %v162
  %v287 = vpack.c.bf16 %v167, %v163
  %v288 = vpack.c.bf16 %v168, %v164
  %v289 = vpack.c.bf16 %v169, %v165
  %v290 = vpack.c.bf16 %v174, %v170
  %v291 = vpack.c.bf16 %v175, %v171
  %v292 = vpack.c.bf16 %v176, %v172
  %v293 = vpack.c.bf16 %v177, %v173
  %v294 = vpack.c.bf16 %v182, %v178
  %v295 = vpack.c.bf16 %v183, %v179
  %v296 = vpack.c.bf16 %v184, %v180
  %v297 = vpack.c.bf16 %v185, %v181
  %v298 = vpack.c.bf16 %v190, %v186
  %v299 = vpack.c.bf16 %v191, %v187
  %v300 = vpack.c.bf16 %v192, %v188
  %v301 = vpack.c.bf16 %v193, %v189
  %v302 = vpack.c.bf16 %v198, %v194
  %v303 = vpack.c.bf16 %v199, %v195
  %v304 = vpack.c.bf16 %v200, %v196
  %v305 = vpack.c.bf16 %v201, %v197
  %v306 = vpack.c.bf16 %v206, %v202
  %v307 = vpack.c.bf16 %v207, %v203
  %v308 = vpack.c.bf16 %v208, %v204
  %v309 = vpack.c.bf16 %v209, %v205
  %v310 = vpack.c.bf16 %v210, %v210
  %v311 = vpack.c.bf16 %v211, %v211
  %v312 = vpack.c.bf16 %v212, %v212
  %v313 = vpack.c.bf16 %v213, %v213
  %v314 = vld [vmem:[%s1] sm:$0xf]
  %v315 = vld [vmem:[%s1 + $0x4] sm:$0xf]
  %v316 = vld [vmem:[%s1 + $0x8] sm:$0xf]
  %v317 = vld [vmem:[%s1 + $0xc] sm:$0xf]
  %v318 = vld [vmem:[%s1 + $0x10] sm:$0xf]
  %v319 = vld [vmem:[%s1 + $0x14] sm:$0xf]
  %v320 = vld [vmem:[%s1 + $0x18] sm:$0xf]
  %v321 = vld [vmem:[%s1 + $0x1c] sm:$0xf]
  %v322 = vld [vmem:[%s1 + $0x20] sm:$0xf]
  %v323 = vld [vmem:[%s1 + $0x24] sm:$0xf]
  %v324 = vld [vmem:[%s1 + $0x28] sm:$0xf]
  %v325 = vld [vmem:[%s1 + $0x2c] sm:$0xf]
  %v326 = vld [vmem:[%s1 + $0x30] sm:$0xf]
  %v327 = vld [vmem:[%s1 + $0x34] sm:$0xf]
  %v328 = vld [vmem:[%s1 + $0x38] sm:$0xf]
  %v329 = vld [vmem:[%s1 + $0x3c] sm:$0xf]
  %v330 = vld [vmem:[%s1 + $0x40] sm:$0xf]
  %v331 = vld [vmem:[%s1 + $0x44] sm:$0xf]
  %v332 = vld [vmem:[%s1 + $0x48] sm:$0xf]
  %v333 = vld [vmem:[%s1 + $0x4c] sm:$0xf]
  %v334 = vld [vmem:[%s1 + $0x50] sm:$0xf]
  %v335 = vld [vmem:[%s1 + $0x54] sm:$0xf]
  %v336 = vld [vmem:[%s1 + $0x58] sm:$0xf]
  %v337 = vld [vmem:[%s1 + $0x5c] sm:$0xf]
  %v338 = vld [vmem:[%s1 + $0x60] sm:$0xf]
  %v339 = vld [vmem:[%s1 + $0x64] sm:$0xf]
  %v340 = vld [vmem:[%s1 + $0x68] sm:$0xf]
  %v341 = vld [vmem:[%s1 + $0x6c] sm:$0xf]
  %v342 = vld [vmem:[%s1 + $0x70] sm:$0xf]
  %v343 = vld [vmem:[%s1 + $0x74] sm:$0xf]
  %v344 = vld [vmem:[%s1 + $0x78] sm:$0xf]
  %v345 = vld [vmem:[%s1 + $0x7c] sm:$0xf]
  %v346 = vld [vmem:[%s1 + $0x80] sm:$0xf]
  %v347 = vld [vmem:[%s1 + $0x84] sm:$0xf]
  %v348 = vld [vmem:[%s1 + $0x88] sm:$0xf]
  %v349 = vld [vmem:[%s1 + $0x8c] sm:$0xf]
  %v350 = vld [vmem:[%s1 + $0x90] sm:$0xf]
  %v351 = vld [vmem:[%s1 + $0x94] sm:$0xf]
  %v352 = vld [vmem:[%s1 + $0x98] sm:$0xf]
  %v353 = vld [vmem:[%s1 + $0x9c] sm:$0xf]
  %v354 = vld [vmem:[%s1 + $0xa0] sm:$0xf]
  %v355 = vld [vmem:[%s1 + $0xa4] sm:$0xf]
  %v356 = vld [vmem:[%s1 + $0xa8] sm:$0xf]
  %v357 = vld [vmem:[%s1 + $0xac] sm:$0xf]
  %v358 = vld [vmem:[%s1 + $0xb0] sm:$0xf]
  %v359 = vld [vmem:[%s1 + $0xb4] sm:$0xf]
  %v360 = vld [vmem:[%s1 + $0xb8] sm:$0xf]
  %v361 = vld [vmem:[%s1 + $0xbc] sm:$0xf]
  %v362 = vld [vmem:[%s1 + $0xc0] sm:$0xf]
  %v363 = vld [vmem:[%s1 + $0xc4] sm:$0xf]
  %v364 = vld [vmem:[%s1 + $0xc8] sm:$0xf]
  %v365 = vld [vmem:[%s1 + $0xcc] sm:$0xf]
  %v366 = vld [vmem:[%s1 + $0xd0] sm:$0xf]
  %v367 = vld [vmem:[%s1 + $0xd4] sm:$0xf]
  %v368 = vld [vmem:[%s1 + $0xd8] sm:$0xf]
  %v369 = vld [vmem:[%s1 + $0xdc] sm:$0xf]
  %v370 = vld [vmem:[%s1 + $0xe0] sm:$0xf]
  %v371 = vld [vmem:[%s1 + $0xe4] sm:$0xf]
  %v372 = vld [vmem:[%s1 + $0xe8] sm:$0xf]
  %v373 = vld [vmem:[%s1 + $0xec] sm:$0xf]
  %v374 = vld [vmem:[%s1 + $0xf0] sm:$0xf]
  %v375 = vld [vmem:[%s1 + $0xf4] sm:$0xf]
  %v376 = vld [vmem:[%s1 + $0xf8] sm:$0xf]
  %v377 = vld [vmem:[%s1 + $0xfc] sm:$0xf]
  %v442 = vunpack.c.l.b16 %v314
  %v443 = vunpack.c.l.b16 %v315
  %v444 = vunpack.c.l.b16 %v316
  %v445 = vunpack.c.l.b16 %v317
  %v446 = vunpack.c.l.b16 %v318
  %v447 = vunpack.c.l.b16 %v319
  %v448 = vunpack.c.l.b16 %v320
  %v449 = vunpack.c.l.b16 %v321
  %v450 = vunpack.c.l.b16 %v322
  %v451 = vunpack.c.l.b16 %v323
  %v452 = vunpack.c.l.b16 %v324
  %v453 = vunpack.c.l.b16 %v325
  %v454 = vunpack.c.l.b16 %v326
  %v455 = vunpack.c.l.b16 %v327
  %v456 = vunpack.c.l.b16 %v328
  %v457 = vunpack.c.l.b16 %v329
  %v458 = vunpack.c.l.b16 %v330
  %v459 = vunpack.c.l.b16 %v331
  %v460 = vunpack.c.l.b16 %v332
  %v461 = vunpack.c.l.b16 %v333
  %v462 = vunpack.c.l.b16 %v334
  %v463 = vunpack.c.l.b16 %v335
  %v464 = vunpack.c.l.b16 %v336
  %v465 = vunpack.c.l.b16 %v337
  %v466 = vunpack.c.l.b16 %v338
  %v467 = vunpack.c.l.b16 %v339
  %v468 = vunpack.c.l.b16 %v340
  %v469 = vunpack.c.l.b16 %v341
  %v470 = vunpack.c.l.b16 %v342
  %v471 = vunpack.c.l.b16 %v343
  %v472 = vunpack.c.l.b16 %v344
  %v473 = vunpack.c.l.b16 %v345
  %v474 = vunpack.c.l.b16 %v346
  %v475 = vunpack.c.l.b16 %v347
  %v476 = vunpack.c.l.b16 %v348
  %v477 = vunpack.c.l.b16 %v349
  %v478 = vunpack.c.l.b16 %v350
  %v479 = vunpack.c.l.b16 %v351
  %v480 = vunpack.c.l.b16 %v352
  %v481 = vunpack.c.l.b16 %v353
  %v482 = vunpack.c.l.b16 %v354
  %v483 = vunpack.c.l.b16 %v355
  %v484 = vunpack.c.l.b16 %v356
  %v485 = vunpack.c.l.b16 %v357
  %v486 = vunpack.c.l.b16 %v358
  %v487 = vunpack.c.l.b16 %v359
  %v488 = vunpack.c.l.b16 %v360
  %v489 = vunpack.c.l.b16 %v361
  %v490 = vunpack.c.l.b16 %v362
  %v491 = vunpack.c.l.b16 %v363
  %v492 = vunpack.c.l.b16 %v364
  %v493 = vunpack.c.l.b16 %v365
  %v494 = vunpack.c.l.b16 %v366
  %v495 = vunpack.c.l.b16 %v367
  %v496 = vunpack.c.l.b16 %v368
  %v497 = vunpack.c.l.b16 %v369
  %v498 = vunpack.c.l.b16 %v370
  %v499 = vunpack.c.l.b16 %v371
  %v500 = vunpack.c.l.b16 %v372
  %v501 = vunpack.c.l.b16 %v373
  %v502 = vunpack.c.l.b16 %v374
  %v503 = vunpack.c.l.b16 %v375
  %v504 = vunpack.c.l.b16 %v376
  %v505 = vunpack.c.l.b16 %v377
  %v506 = vpack.c.b16 %v443, %v442
  %v507 = vpack.c.b16 %v445, %v444
  %v508 = vpack.c.b16 %v447, %v446
  %v509 = vpack.c.b16 %v449, %v448
  %v510 = vpack.c.b16 %v451, %v450
  %v511 = vpack.c.b16 %v453, %v452
  %v512 = vpack.c.b16 %v455, %v454
  %v513 = vpack.c.b16 %v457, %v456
  %v514 = vpack.c.b16 %v459, %v458
  %v515 = vpack.c.b16 %v461, %v460
  %v516 = vpack.c.b16 %v463, %v462
  %v517 = vpack.c.b16 %v465, %v464
  %v518 = vpack.c.b16 %v467, %v466
  %v519 = vpack.c.b16 %v469, %v468
  %v520 = vpack.c.b16 %v471, %v470
  %v521 = vpack.c.b16 %v473, %v472
  %v522 = vpack.c.b16 %v475, %v474
  %v523 = vpack.c.b16 %v477, %v476
  %v524 = vpack.c.b16 %v479, %v478
  %v525 = vpack.c.b16 %v481, %v480
  %v526 = vpack.c.b16 %v483, %v482
  %v527 = vpack.c.b16 %v485, %v484
  %v528 = vpack.c.b16 %v487, %v486
  %v529 = vpack.c.b16 %v489, %v488
  %v530 = vpack.c.b16 %v491, %v490
  %v531 = vpack.c.b16 %v493, %v492
  %v532 = vpack.c.b16 %v495, %v494
  %v533 = vpack.c.b16 %v497, %v496
  %v534 = vpack.c.b16 %v499, %v498
  %v535 = vpack.c.b16 %v501, %v500
  %v536 = vpack.c.b16 %v503, %v502
  %v537 = vpack.c.b16 %v505, %v504
  %570 = vmatprep.subr.bf16.mxu0 0
  %571 = vmatpush1.bf16.msra.mxu0 %v506
  %572 = vmatprep.subr.bf16.mxu0 0
  %573 = vmatpush1.bf16.msra.mxu0 %v507
  %574 = vmatprep.subr.bf16.mxu0 0
  %575 = vmatpush1.bf16.msra.mxu0 %v508
  %576 = vmatprep.subr.bf16.mxu0 0
  %577 = vmatpush1.bf16.msra.mxu0 %v509
  %578 = vmatprep.subr.bf16.mxu0 0
  %579 = vmatpush1.bf16.msra.mxu0 %v510
  %580 = vmatprep.subr.bf16.mxu0 0
  %581 = vmatpush1.bf16.msra.mxu0 %v511
  %582 = vmatprep.subr.bf16.mxu0 0
  %583 = vmatpush1.bf16.msra.mxu0 %v512
  %584 = vmatprep.subr.bf16.mxu0 0
  %585 = vmatpush1.bf16.msra.mxu0 %v513
  %586 = vmatprep.subr.bf16.mxu0 0
  %587 = vmatpush1.bf16.msra.mxu0 %v514
  %588 = vmatprep.subr.bf16.mxu0 0
  %589 = vmatpush1.bf16.msra.mxu0 %v515
  %590 = vmatprep.subr.bf16.mxu0 0
  %591 = vmatpush1.bf16.msra.mxu0 %v516
  %592 = vmatprep.subr.bf16.mxu0 0
  %593 = vmatpush1.bf16.msra.mxu0 %v517
  %594 = vmatprep.subr.bf16.mxu0 0
  %595 = vmatpush1.bf16.msra.mxu0 %v518
  %596 = vmatprep.subr.bf16.mxu0 0
  %597 = vmatpush1.bf16.msra.mxu0 %v519
  %598 = vmatprep.subr.bf16.mxu0 0
  %599 = vmatpush1.bf16.msra.mxu0 %v520
  %600 = vmatprep.subr.bf16.mxu0 0
  %601 = vmatpush1.bf16.msra.mxu0 %v521
  %602 = vmatprep.mubr.bf16.mxu0 %v215
  %603 = vmatmul.mubr.bf16.gmra.mrb[0].mxu0 %v214
  %v604 = vpop.f32.mrb[0].mxu0
  %v605 = vadd.f32 0.0, %v604
  %v606 = vpop.f32.mrb[0].mxu0
  %v607 = vpop.f32.mrb[0].mxu0
  %v608 = vadd.f32 0.0, %v607
  %v609 = vpop.f32.mrb[0].mxu0
  %610 = vmatprep.mubr.bf16.mxu0 %v219
  %611 = vmatmul.mubr.bf16.gmra.mrb[0].mxu0 %v218
  %v612 = vpop.f32.mrb[0].mxu0
  %v613 = vadd.f32 0.0, %v612
  %v614 = vpop.f32.mrb[0].mxu0
  %v615 = vpop.f32.mrb[0].mxu0
  %v616 = vadd.f32 0.0, %v615
  %v617 = vpop.f32.mrb[0].mxu0
  %618 = vmatprep.mubr.bf16.mxu0 %v223
  %619 = vmatmul.mubr.bf16.gmra.mrb[0].mxu0 %v222
  %v620 = vpop.f32.mrb[0].mxu0
  %v621 = vadd.f32 0.0, %v620
  %v622 = vpop.f32.mrb[0].mxu0
  %v623 = vpop.f32.mrb[0].mxu0
  %v624 = vadd.f32 0.0, %v623
  %v625 = vpop.f32.mrb[0].mxu0
  %626 = vmatprep.mubr.bf16.mxu0 %v227
  %627 = vmatmul.mubr.bf16.gmra.mrb[0].mxu0 %v226
  %v628 = vpop.f32.mrb[0].mxu0
  %v629 = vadd.f32 0.0, %v628
  %v630 = vpop.f32.mrb[0].mxu0
  %v631 = vpop.f32.mrb[0].mxu0
  %v632 = vadd.f32 0.0, %v631
  %v633 = vpop.f32.mrb[0].mxu0
  %634 = vmatprep.mubr.bf16.mxu0 %v231
  %635 = vmatmul.mubr.bf16.gmra.mrb[0].mxu0 %v230
  %v636 = vpop.f32.mrb[0].mxu0
  %v637 = vadd.f32 0.0, %v636
  %v638 = vpop.f32.mrb[0].mxu0
  %v639 = vpop.f32.mrb[0].mxu0
  %v640 = vadd.f32 0.0, %v639
  %v641 = vpop.f32.mrb[0].mxu0
  %642 = vmatprep.mubr.bf16.mxu0 %v235
  %643 = vmatmul.mubr.bf16.gmra.mrb[0].mxu0 %v234
  %v644 = vpop.f32.mrb[0].mxu0
  %v645 = vadd.f32 0.0, %v644
  %v646 = vpop.f32.mrb[0].mxu0
  %v647 = vpop.f32.mrb[0].mxu0
  %v648 = vadd.f32 0.0, %v647
  %v649 = vpop.f32.mrb[0].mxu0
  %650 = vmatprep.mubr.bf16.mxu0 %v239
  %651 = vmatmul.mubr.bf16.gmra.mrb[0].mxu0 %v238
  %v652 = vpop.f32.mrb[0].mxu0
  %v653 = vadd.f32 0.0, %v652
  %v654 = vpop.f32.mrb[0].mxu0
  %v655 = vpop.f32.mrb[0].mxu0
  %v656 = vadd.f32 0.0, %v655
  %v657 = vpop.f32.mrb[0].mxu0
  %658 = vmatprep.mubr.bf16.mxu0 %v243
  %659 = vmatmul.mubr.bf16.gmra.mrb[0].mxu0 %v242
  %v660 = vpop.f32.mrb[0].mxu0
  %v661 = vadd.f32 0.0, %v660
  %v662 = vpop.f32.mrb[0].mxu0
  %v663 = vpop.f32.mrb[0].mxu0
  %v664 = vadd.f32 0.0, %v663
  %v665 = vpop.f32.mrb[0].mxu0
  %666 = vmatprep.mubr.bf16.mxu0 %v247
  %667 = vmatmul.mubr.bf16.gmra.mrb[0].mxu0 %v246
  %v668 = vpop.f32.mrb[0].mxu0
  %v669 = vadd.f32 0.0, %v668
  %v670 = vpop.f32.mrb[0].mxu0
  %v671 = vpop.f32.mrb[0].mxu0
  %v672 = vadd.f32 0.0, %v671
  %v673 = vpop.f32.mrb[0].mxu0
  %674 = vmatprep.mubr.bf16.mxu0 %v251
  %675 = vmatmul.mubr.bf16.gmra.mrb[0].mxu0 %v250
  %v676 = vpop.f32.mrb[0].mxu0
  %v677 = vadd.f32 0.0, %v676
  %v678 = vpop.f32.mrb[0].mxu0
  %v679 = vpop.f32.mrb[0].mxu0
  %v680 = vadd.f32 0.0, %v679
  %v681 = vpop.f32.mrb[0].mxu0
  %682 = vmatprep.mubr.bf16.mxu0 %v255
  %683 = vmatmul.mubr.bf16.gmra.mrb[0].mxu0 %v254
  %v684 = vpop.f32.mrb[0].mxu0
  %v685 = vadd.f32 0.0, %v684
  %v686 = vpop.f32.mrb[0].mxu0
  %v687 = vpop.f32.mrb[0].mxu0
  %v688 = vadd.f32 0.0, %v687
  %v689 = vpop.f32.mrb[0].mxu0
  %690 = vmatprep.mubr.bf16.mxu0 %v259
  %691 = vmatmul.mubr.bf16.gmra.mrb[0].mxu0 %v258
  %v692 = vpop.f32.mrb[0].mxu0
  %v693 = vadd.f32 0.0, %v692
  %v694 = vpop.f32.mrb[0].mxu0
  %v695 = vpop.f32.mrb[0].mxu0
  %v696 = vadd.f32 0.0, %v695
  %v697 = vpop.f32.mrb[0].mxu0
  %698 = vmatprep.mubr.bf16.mxu0 %v263
  %699 = vmatmul.mubr.bf16.gmra.mrb[0].mxu0 %v262
  %v700 = vpop.f32.mrb[0].mxu0
  %v701 = vadd.f32 0.0, %v700
  %v702 = vpop.f32.mrb[0].mxu0
  %v703 = vpop.f32.mrb[0].mxu0
  %v704 = vadd.f32 0.0, %v703
  %v705 = vpop.f32.mrb[0].mxu0
  %706 = vmatprep.mubr.bf16.mxu0 %v267
  %707 = vmatmul.mubr.bf16.gmra.mrb[0].mxu0 %v266
  %v708 = vpop.f32.mrb[0].mxu0
  %v709 = vadd.f32 0.0, %v708
  %v710 = vpop.f32.mrb[0].mxu0
  %v711 = vpop.f32.mrb[0].mxu0
  %v712 = vadd.f32 0.0, %v711
  %v713 = vpop.f32.mrb[0].mxu0
  %714 = vmatprep.mubr.bf16.mxu0 %v271
  %715 = vmatmul.mubr.bf16.gmra.mrb[0].mxu0 %v270
  %v716 = vpop.f32.mrb[0].mxu0
  %v717 = vadd.f32 0.0, %v716
  %v718 = vpop.f32.mrb[0].mxu0
  %v719 = vpop.f32.mrb[0].mxu0
  %v720 = vadd.f32 0.0, %v719
  %v721 = vpop.f32.mrb[0].mxu0
  %722 = vmatprep.mubr.bf16.mxu0 %v275
  %723 = vmatmul.mubr.bf16.gmra.mrb[0].mxu0 %v274
  %v724 = vpop.f32.mrb[0].mxu0
  %v725 = vadd.f32 0.0, %v724
  %v726 = vpop.f32.mrb[0].mxu0
  %v727 = vpop.f32.mrb[0].mxu0
  %v728 = vadd.f32 0.0, %v727
  %v729 = vpop.f32.mrb[0].mxu0
  %730 = vmatprep.mubr.bf16.mxu0 %v279
  %731 = vmatmul.mubr.bf16.gmra.mrb[0].mxu0 %v278
  %v732 = vpop.f32.mrb[0].mxu0
  %v733 = vadd.f32 0.0, %v732
  %v734 = vpop.f32.mrb[0].mxu0
  %v735 = vpop.f32.mrb[0].mxu0
  %v736 = vadd.f32 0.0, %v735
  %v737 = vpop.f32.mrb[0].mxu0
  %738 = vmatprep.mubr.bf16.mxu0 %v283
  %739 = vmatmul.mubr.bf16.gmra.mrb[0].mxu0 %v282
  %v740 = vpop.f32.mrb[0].mxu0
  %v741 = vadd.f32 0.0, %v740
  %v742 = vpop.f32.mrb[0].mxu0
  %v743 = vpop.f32.mrb[0].mxu0
  %v744 = vadd.f32 0.0, %v743
  %v745 = vpop.f32.mrb[0].mxu0
  %746 = vmatprep.mubr.bf16.mxu0 %v287
  %747 = vmatmul.mubr.bf16.gmra.mrb[0].mxu0 %v286
  %v748 = vpop.f32.mrb[0].mxu0
  %v749 = vadd.f32 0.0, %v748
  %v750 = vpop.f32.mrb[0].mxu0
  %v751 = vpop.f32.mrb[0].mxu0
  %v752 = vadd.f32 0.0, %v751
  %v753 = vpop.f32.mrb[0].mxu0
  %754 = vmatprep.mubr.bf16.mxu0 %v291
  %755 = vmatmul.mubr.bf16.gmra.mrb[0].mxu0 %v290
  %v756 = vpop.f32.mrb[0].mxu0
  %v757 = vadd.f32 0.0, %v756
  %v758 = vpop.f32.mrb[0].mxu0
  %v759 = vpop.f32.mrb[0].mxu0
  %v760 = vadd.f32 0.0, %v759
  %v761 = vpop.f32.mrb[0].mxu0
  %762 = vmatprep.mubr.bf16.mxu0 %v295
  %763 = vmatmul.mubr.bf16.gmra.mrb[0].mxu0 %v294
  %v764 = vpop.f32.mrb[0].mxu0
  %v765 = vadd.f32 0.0, %v764
  %v766 = vpop.f32.mrb[0].mxu0
  %v767 = vpop.f32.mrb[0].mxu0
  %v768 = vadd.f32 0.0, %v767
  %v769 = vpop.f32.mrb[0].mxu0
  %770 = vmatprep.mubr.bf16.mxu0 %v299
  %771 = vmatmul.mubr.bf16.gmra.mrb[0].mxu0 %v298
  %v772 = vpop.f32.mrb[0].mxu0
  %v773 = vadd.f32 0.0, %v772
  %v774 = vpop.f32.mrb[0].mxu0
  %v775 = vpop.f32.mrb[0].mxu0
  %v776 = vadd.f32 0.0, %v775
  %v777 = vpop.f32.mrb[0].mxu0
  %778 = vmatprep.mubr.bf16.mxu0 %v303
  %779 = vmatmul.mubr.bf16.gmra.mrb[0].mxu0 %v302
  %v780 = vpop.f32.mrb[0].mxu0
  %v781 = vadd.f32 0.0, %v780
  %v782 = vpop.f32.mrb[0].mxu0
  %v783 = vpop.f32.mrb[0].mxu0
  %v784 = vadd.f32 0.0, %v783
  %v785 = vpop.f32.mrb[0].mxu0
  %786 = vmatprep.mubr.bf16.mxu0 %v307
  %787 = vmatmul.mubr.bf16.gmra.mrb[0].mxu0 %v306
  %v788 = vpop.f32.mrb[0].mxu0
  %v789 = vadd.f32 0.0, %v788
  %v790 = vpop.f32.mrb[0].mxu0
  %v791 = vpop.f32.mrb[0].mxu0
  %v792 = vadd.f32 0.0, %v791
  %v793 = vpop.f32.mrb[0].mxu0
  %794 = vmatprep.mubr.bf16.mxu0 %v311
  %795 = vmatmul.mubr.bf16.gmra.mrb[0].mxu0 %v310
  %v796 = vpop.f32.mrb[0].mxu0
  %v797 = vadd.f32 0.0, %v796
  %v798 = vpop.f32.mrb[0].mxu0
  %v799 = vpop.f32.mrb[0].mxu0
  %v800 = vpop.f32.mrb[0].mxu0
  %801 = vdwg.mxu0
  %802 = vmatprep.subr.bf16.mxu0 0
  %803 = vmatpush1.bf16.msra.mxu0 %v522
  %804 = vmatprep.subr.bf16.mxu0 0
  %805 = vmatpush1.bf16.msra.mxu0 %v523
  %806 = vmatprep.subr.bf16.mxu0 0
  %807 = vmatpush1.bf16.msra.mxu0 %v524
  %808 = vmatprep.subr.bf16.mxu0 0
  %809 = vmatpush1.bf16.msra.mxu0 %v525
  %810 = vmatprep.subr.bf16.mxu0 0
  %811 = vmatpush1.bf16.msra.mxu0 %v526
  %812 = vmatprep.subr.bf16.mxu0 0
  %813 = vmatpush1.bf16.msra.mxu0 %v527
  %814 = vmatprep.subr.bf16.mxu0 0
  %815 = vmatpush1.bf16.msra.mxu0 %v528
  %816 = vmatprep.subr.bf16.mxu0 0
  %817 = vmatpush1.bf16.msra.mxu0 %v529
  %818 = vmatprep.subr.bf16.mxu0 0
  %819 = vmatpush1.bf16.msra.mxu0 %v530
  %820 = vmatprep.subr.bf16.mxu0 0
  %821 = vmatpush1.bf16.msra.mxu0 %v531
  %822 = vmatprep.subr.bf16.mxu0 0
  %823 = vmatpush1.bf16.msra.mxu0 %v532
  %824 = vmatprep.subr.bf16.mxu0 0
  %825 = vmatpush1.bf16.msra.mxu0 %v533
  %826 = vmatprep.subr.bf16.mxu0 0
  %827 = vmatpush1.bf16.msra.mxu0 %v534
  %828 = vmatprep.subr.bf16.mxu0 0
  %829 = vmatpush1.bf16.msra.mxu0 %v535
  %830 = vmatprep.subr.bf16.mxu0 0
  %831 = vmatpush1.bf16.msra.mxu0 %v536
  %832 = vmatprep.subr.bf16.mxu0 0
  %833 = vmatpush1.bf16.msra.mxu0 %v537
  %834 = vmatprep.mubr.bf16.mxu0 %v217
  %835 = vmatmul.mubr.bf16.gmra.mrb[0].mxu0 %v216
  %v836 = vpop.f32.mrb[0].mxu0
  %v837 = vadd.f32 %v605, %v836
  %v838 = vpop.f32.mrb[0].mxu0
  %v839 = vpop.f32.mrb[0].mxu0
  %v840 = vadd.f32 %v608, %v839
  %v841 = vpop.f32.mrb[0].mxu0
  %842 = vmatprep.mubr.bf16.mxu0 %v221
  %843 = vmatmul.mubr.bf16.gmra.mrb[0].mxu0 %v220
  %v844 = vpop.f32.mrb[0].mxu0
  %v845 = vadd.f32 %v613, %v844
  %v846 = vpop.f32.mrb[0].mxu0
  %v847 = vpop.f32.mrb[0].mxu0
  %v848 = vadd.f32 %v616, %v847
  %v849 = vpop.f32.mrb[0].mxu0
  %850 = vmatprep.mubr.bf16.mxu0 %v225
  %851 = vmatmul.mubr.bf16.gmra.mrb[0].mxu0 %v224
  %v852 = vpop.f32.mrb[0].mxu0
  %v853 = vadd.f32 %v621, %v852
  %v854 = vpop.f32.mrb[0].mxu0
  %v855 = vpop.f32.mrb[0].mxu0
  %v856 = vadd.f32 %v624, %v855
  %v857 = vpop.f32.mrb[0].mxu0
  %858 = vmatprep.mubr.bf16.mxu0 %v229
  %859 = vmatmul.mubr.bf16.gmra.mrb[0].mxu0 %v228
  %v860 = vpop.f32.mrb[0].mxu0
  %v861 = vadd.f32 %v629, %v860
  %v862 = vpop.f32.mrb[0].mxu0
  %v863 = vpop.f32.mrb[0].mxu0
  %v864 = vadd.f32 %v632, %v863
  %v865 = vpop.f32.mrb[0].mxu0
  %866 = vmatprep.mubr.bf16.mxu0 %v233
  %867 = vmatmul.mubr.bf16.gmra.mrb[0].mxu0 %v232
  %v868 = vpop.f32.mrb[0].mxu0
  %v869 = vadd.f32 %v637, %v868
  %v870 = vpop.f32.mrb[0].mxu0
  %v871 = vpop.f32.mrb[0].mxu0
  %v872 = vadd.f32 %v640, %v871
  %v873 = vpop.f32.mrb[0].mxu0
  %874 = vmatprep.mubr.bf16.mxu0 %v237
  %875 = vmatmul.mubr.bf16.gmra.mrb[0].mxu0 %v236
  %v876 = vpop.f32.mrb[0].mxu0
  %v877 = vadd.f32 %v645, %v876
  %v878 = vpop.f32.mrb[0].mxu0
  %v879 = vpop.f32.mrb[0].mxu0
  %v880 = vadd.f32 %v648, %v879
  %v881 = vpop.f32.mrb[0].mxu0
  %882 = vmatprep.mubr.bf16.mxu0 %v241
  %883 = vmatmul.mubr.bf16.gmra.mrb[0].mxu0 %v240
  %v884 = vpop.f32.mrb[0].mxu0
  %v885 = vadd.f32 %v653, %v884
  %v886 = vpop.f32.mrb[0].mxu0
  %v887 = vpop.f32.mrb[0].mxu0
  %v888 = vadd.f32 %v656, %v887
  %v889 = vpop.f32.mrb[0].mxu0
  %890 = vmatprep.mubr.bf16.mxu0 %v245
  %891 = vmatmul.mubr.bf16.gmra.mrb[0].mxu0 %v244
  %v892 = vpop.f32.mrb[0].mxu0
  %v893 = vadd.f32 %v661, %v892
  %v894 = vpop.f32.mrb[0].mxu0
  %v895 = vpop.f32.mrb[0].mxu0
  %v896 = vadd.f32 %v664, %v895
  %v897 = vpop.f32.mrb[0].mxu0
  %898 = vmatprep.mubr.bf16.mxu0 %v249
  %899 = vmatmul.mubr.bf16.gmra.mrb[0].mxu0 %v248
  %v900 = vpop.f32.mrb[0].mxu0
  %v901 = vadd.f32 %v669, %v900
  %v902 = vpop.f32.mrb[0].mxu0
  %v903 = vpop.f32.mrb[0].mxu0
  %v904 = vadd.f32 %v672, %v903
  %v905 = vpop.f32.mrb[0].mxu0
  %906 = vmatprep.mubr.bf16.mxu0 %v253
  %907 = vmatmul.mubr.bf16.gmra.mrb[0].mxu0 %v252
  %v908 = vpop.f32.mrb[0].mxu0
  %v909 = vadd.f32 %v677, %v908
  %v910 = vpop.f32.mrb[0].mxu0
  %v911 = vpop.f32.mrb[0].mxu0
  %v912 = vadd.f32 %v680, %v911
  %v913 = vpop.f32.mrb[0].mxu0
  %914 = vmatprep.mubr.bf16.mxu0 %v257
  %915 = vmatmul.mubr.bf16.gmra.mrb[0].mxu0 %v256
  %v916 = vpop.f32.mrb[0].mxu0
  %v917 = vadd.f32 %v685, %v916
  %v918 = vpop.f32.mrb[0].mxu0
  %v919 = vpop.f32.mrb[0].mxu0
  %v920 = vadd.f32 %v688, %v919
  %v921 = vpop.f32.mrb[0].mxu0
  %922 = vmatprep.mubr.bf16.mxu0 %v261
  %923 = vmatmul.mubr.bf16.gmra.mrb[0].mxu0 %v260
  %v924 = vpop.f32.mrb[0].mxu0
  %v925 = vadd.f32 %v693, %v924
  %v926 = vpop.f32.mrb[0].mxu0
  %v927 = vpop.f32.mrb[0].mxu0
  %v928 = vadd.f32 %v696, %v927
  %v929 = vpop.f32.mrb[0].mxu0
  %930 = vmatprep.mubr.bf16.mxu0 %v265
  %931 = vmatmul.mubr.bf16.gmra.mrb[0].mxu0 %v264
  %v932 = vpop.f32.mrb[0].mxu0
  %v933 = vadd.f32 %v701, %v932
  %v934 = vpop.f32.mrb[0].mxu0
  %v935 = vpop.f32.mrb[0].mxu0
  %v936 = vadd.f32 %v704, %v935
  %v937 = vpop.f32.mrb[0].mxu0
  %938 = vmatprep.mubr.bf16.mxu0 %v269
  %939 = vmatmul.mubr.bf16.gmra.mrb[0].mxu0 %v268
  %v940 = vpop.f32.mrb[0].mxu0
  %v941 = vadd.f32 %v709, %v940
  %v942 = vpop.f32.mrb[0].mxu0
  %v943 = vpop.f32.mrb[0].mxu0
  %v944 = vadd.f32 %v712, %v943
  %v945 = vpop.f32.mrb[0].mxu0
  %946 = vmatprep.mubr.bf16.mxu0 %v273
  %947 = vmatmul.mubr.bf16.gmra.mrb[0].mxu0 %v272
  %v948 = vpop.f32.mrb[0].mxu0
  %v949 = vadd.f32 %v717, %v948
  %v950 = vpop.f32.mrb[0].mxu0
  %v951 = vpop.f32.mrb[0].mxu0
  %v952 = vadd.f32 %v720, %v951
  %v953 = vpop.f32.mrb[0].mxu0
  %954 = vmatprep.mubr.bf16.mxu0 %v277
  %955 = vmatmul.mubr.bf16.gmra.mrb[0].mxu0 %v276
  %v956 = vpop.f32.mrb[0].mxu0
  %v957 = vadd.f32 %v725, %v956
  %v958 = vpop.f32.mrb[0].mxu0
  %v959 = vpop.f32.mrb[0].mxu0
  %v960 = vadd.f32 %v728, %v959
  %v961 = vpop.f32.mrb[0].mxu0
  %962 = vmatprep.mubr.bf16.mxu0 %v281
  %963 = vmatmul.mubr.bf16.gmra.mrb[0].mxu0 %v280
  %v964 = vpop.f32.mrb[0].mxu0
  %v965 = vadd.f32 %v733, %v964
  %v966 = vpop.f32.mrb[0].mxu0
  %v967 = vpop.f32.mrb[0].mxu0
  %v968 = vadd.f32 %v736, %v967
  %v969 = vpop.f32.mrb[0].mxu0
  %970 = vmatprep.mubr.bf16.mxu0 %v285
  %971 = vmatmul.mubr.bf16.gmra.mrb[0].mxu0 %v284
  %v972 = vpop.f32.mrb[0].mxu0
  %v973 = vadd.f32 %v741, %v972
  %v974 = vpop.f32.mrb[0].mxu0
  %v975 = vpop.f32.mrb[0].mxu0
  %v976 = vadd.f32 %v744, %v975
  %v977 = vpop.f32.mrb[0].mxu0
  %978 = vmatprep.mubr.bf16.mxu0 %v289
  %979 = vmatmul.mubr.bf16.gmra.mrb[0].mxu0 %v288
  %v980 = vpop.f32.mrb[0].mxu0
  %v981 = vadd.f32 %v749, %v980
  %v982 = vpop.f32.mrb[0].mxu0
  %v983 = vpop.f32.mrb[0].mxu0
  %v984 = vadd.f32 %v752, %v983
  %v985 = vpop.f32.mrb[0].mxu0
  %986 = vmatprep.mubr.bf16.mxu0 %v293
  %987 = vmatmul.mubr.bf16.gmra.mrb[0].mxu0 %v292
  %v988 = vpop.f32.mrb[0].mxu0
  %v989 = vadd.f32 %v757, %v988
  %v990 = vpop.f32.mrb[0].mxu0
  %v991 = vpop.f32.mrb[0].mxu0
  %v992 = vadd.f32 %v760, %v991
  %v993 = vpop.f32.mrb[0].mxu0
  %994 = vmatprep.mubr.bf16.mxu0 %v297
  %995 = vmatmul.mubr.bf16.gmra.mrb[0].mxu0 %v296
  %v996 = vpop.f32.mrb[0].mxu0
  %v997 = vadd.f32 %v765, %v996
  %v998 = vpop.f32.mrb[0].mxu0
  %v999 = vpop.f32.mrb[0].mxu0
  %v1000 = vadd.f32 %v768, %v999
  %v1001 = vpop.f32.mrb[0].mxu0
  %1002 = vmatprep.mubr.bf16.mxu0 %v301
  %1003 = vmatmul.mubr.bf16.gmra.mrb[0].mxu0 %v300
  %v1004 = vpop.f32.mrb[0].mxu0
  %v1005 = vadd.f32 %v773, %v1004
  %v1006 = vpop.f32.mrb[0].mxu0
  %v1007 = vpop.f32.mrb[0].mxu0
  %v1008 = vadd.f32 %v776, %v1007
  %v1009 = vpop.f32.mrb[0].mxu0
  %1010 = vmatprep.mubr.bf16.mxu0 %v305
  %1011 = vmatmul.mubr.bf16.gmra.mrb[0].mxu0 %v304
  %v1012 = vpop.f32.mrb[0].mxu0
  %v1013 = vadd.f32 %v781, %v1012
  %v1014 = vpop.f32.mrb[0].mxu0
  %v1015 = vpop.f32.mrb[0].mxu0
  %v1016 = vadd.f32 %v784, %v1015
  %v1017 = vpop.f32.mrb[0].mxu0
  %1018 = vmatprep.mubr.bf16.mxu0 %v309
  %1019 = vmatmul.mubr.bf16.gmra.mrb[0].mxu0 %v308
  %v1020 = vpop.f32.mrb[0].mxu0
  %v1021 = vadd.f32 %v789, %v1020
  %v1022 = vpop.f32.mrb[0].mxu0
  %v1023 = vpop.f32.mrb[0].mxu0
  %v1024 = vadd.f32 %v792, %v1023
  %v1025 = vpop.f32.mrb[0].mxu0
  %1026 = vmatprep.mubr.bf16.mxu0 %v313
  %1027 = vmatmul.mubr.bf16.gmra.mrb[0].mxu0 %v312
  %v1028 = vpop.f32.mrb[0].mxu0
  %v1029 = vadd.f32 %v797, %v1028
  %v1030 = vpop.f32.mrb[0].mxu0
  %v1031 = vpop.f32.mrb[0].mxu0
  %v1032 = vpop.f32.mrb[0].mxu0
  %1033 = vdwg.mxu0
  %v1034 = vadd.f32 %v837, %v840
  %v1035 = vadd.f32 %v1034, %v845
  %v1036 = vadd.f32 %v1035, %v848
  %v1037 = vadd.f32 %v1036, %v853
  %v1038 = vadd.f32 %v1037, %v856
  %v1039 = vadd.f32 %v1038, %v861
  %v1040 = vadd.f32 %v1039, %v864
  %v1041 = vadd.f32 %v1040, %v869
  %v1042 = vadd.f32 %v1041, %v872
  %v1043 = vadd.f32 %v1042, %v877
  %v1044 = vadd.f32 %v1043, %v880
  %v1045 = vadd.f32 %v1044, %v885
  %v1046 = vadd.f32 %v1045, %v888
  %v1047 = vadd.f32 %v1046, %v893
  %v1048 = vadd.f32 %v1047, %v896
  %v1049 = vadd.f32 %v1048, %v901
  %v1050 = vadd.f32 %v1049, %v904
  %v1051 = vadd.f32 %v1050, %v909
  %v1052 = vadd.f32 %v1051, %v912
  %v1053 = vadd.f32 %v1052, %v917
  %v1054 = vadd.f32 %v1053, %v920
  %v1055 = vadd.f32 %v1054, %v925
  %v1056 = vadd.f32 %v1055, %v928
  %v1057 = vadd.f32 %v1056, %v933
  %v1058 = vadd.f32 %v1057, %v936
  %v1059 = vadd.f32 %v1058, %v941
  %v1060 = vadd.f32 %v1059, %v944
  %v1061 = vadd.f32 %v1060, %v949
  %v1062 = vadd.f32 %v1061, %v952
  %v1063 = vadd.f32 %v1062, %v957
  %v1064 = vadd.f32 %v1063, %v960
  %v1065 = vadd.f32 %v1064, %v965
  %v1066 = vadd.f32 %v1065, %v968
  %v1067 = vadd.f32 %v1066, %v973
  %v1068 = vadd.f32 %v1067, %v976
  %v1069 = vadd.f32 %v1068, %v981
  %v1070 = vadd.f32 %v1069, %v984
  %v1071 = vadd.f32 %v1070, %v989
  %v1072 = vadd.f32 %v1071, %v992
  %v1073 = vadd.f32 %v1072, %v997
  %v1074 = vadd.f32 %v1073, %v1000
  %v1075 = vadd.f32 %v1074, %v1005
  %v1076 = vadd.f32 %v1075, %v1008
  %v1077 = vadd.f32 %v1076, %v1013
  %v1078 = vadd.f32 %v1077, %v1016
  %v1079 = vadd.f32 %v1078, %v1021
  %v1080 = vadd.f32 %v1079, %v1024
  %v1081 = vadd.f32 %v1080, %v1029
  %v1082 = vrot.slane %v1081, 4
  %v1083 = vadd.f32 %v1081, %v1082
  %v1084 = vrot.slane %v1083, 2
  %v1085 = vadd.f32 %v1083, %v1084
  %v1086 = vrot.slane %v1085, 1
  %v1087 = vadd.f32 %v1085, %v1086
  %v1088 = vrcp.pop 392.0
  %v1089 = vmul.f32 %v1087, %v1088
  %v1090 = vsub.f32 %v837, %v1089
  %v1091 = vsub.f32 %v840, %v1089
  %v1092 = vsub.f32 %v845, %v1089
  %v1093 = vsub.f32 %v848, %v1089
  %v1094 = vsub.f32 %v853, %v1089
  %v1095 = vsub.f32 %v856, %v1089
  %v1096 = vsub.f32 %v861, %v1089
  %v1097 = vsub.f32 %v864, %v1089
  %v1098 = vsub.f32 %v869, %v1089
  %v1099 = vsub.f32 %v872, %v1089
  %v1100 = vsub.f32 %v877, %v1089
  %v1101 = vsub.f32 %v880, %v1089
  %v1102 = vsub.f32 %v885, %v1089
  %v1103 = vsub.f32 %v888, %v1089
  %v1104 = vsub.f32 %v893, %v1089
  %v1105 = vsub.f32 %v896, %v1089
  %v1106 = vsub.f32 %v901, %v1089
  %v1107 = vsub.f32 %v904, %v1089
  %v1108 = vsub.f32 %v909, %v1089
  %v1109 = vsub.f32 %v912, %v1089
  %v1110 = vsub.f32 %v917, %v1089
  %v1111 = vsub.f32 %v920, %v1089
  %v1112 = vsub.f32 %v925, %v1089
  %v1113 = vsub.f32 %v928, %v1089
  %v1114 = vsub.f32 %v933, %v1089
  %v1115 = vsub.f32 %v936, %v1089
  %v1116 = vsub.f32 %v941, %v1089
  %v1117 = vsub.f32 %v944, %v1089
  %v1118 = vsub.f32 %v949, %v1089
  %v1119 = vsub.f32 %v952, %v1089
  %v1120 = vsub.f32 %v957, %v1089
  %v1121 = vsub.f32 %v960, %v1089
  %v1122 = vsub.f32 %v965, %v1089
  %v1123 = vsub.f32 %v968, %v1089
  %v1124 = vsub.f32 %v973, %v1089
  %v1125 = vsub.f32 %v976, %v1089
  %v1126 = vsub.f32 %v981, %v1089
  %v1127 = vsub.f32 %v984, %v1089
  %v1128 = vsub.f32 %v989, %v1089
  %v1129 = vsub.f32 %v992, %v1089
  %v1130 = vsub.f32 %v997, %v1089
  %v1131 = vsub.f32 %v1000, %v1089
  %v1132 = vsub.f32 %v1005, %v1089
  %v1133 = vsub.f32 %v1008, %v1089
  %v1134 = vsub.f32 %v1013, %v1089
  %v1135 = vsub.f32 %v1016, %v1089
  %v1136 = vsub.f32 %v1021, %v1089
  %v1137 = vsub.f32 %v1024, %v1089
  %v1138 = vsub.f32 %v1029, %v1089
  %v1139 = vmul.f32 %v1090, %v1090
  %v1140 = vmul.f32 %v1091, %v1091
  %v1141 = vmul.f32 %v1092, %v1092
  %v1142 = vmul.f32 %v1093, %v1093
  %v1143 = vmul.f32 %v1094, %v1094
  %v1144 = vmul.f32 %v1095, %v1095
  %v1145 = vmul.f32 %v1096, %v1096
  %v1146 = vmul.f32 %v1097, %v1097
  %v1147 = vmul.f32 %v1098, %v1098
  %v1148 = vmul.f32 %v1099, %v1099
  %v1149 = vmul.f32 %v1100, %v1100
  %v1150 = vmul.f32 %v1101, %v1101
  %v1151 = vmul.f32 %v1102, %v1102
  %v1152 = vmul.f32 %v1103, %v1103
  %v1153 = vmul.f32 %v1104, %v1104
  %v1154 = vmul.f32 %v1105, %v1105
  %v1155 = vmul.f32 %v1106, %v1106
  %v1156 = vmul.f32 %v1107, %v1107
  %v1157 = vmul.f32 %v1108, %v1108
  %v1158 = vmul.f32 %v1109, %v1109
  %v1159 = vmul.f32 %v1110, %v1110
  %v1160 = vmul.f32 %v1111, %v1111
  %v1161 = vmul.f32 %v1112, %v1112
  %v1162 = vmul.f32 %v1113, %v1113
  %v1163 = vmul.f32 %v1114, %v1114
  %v1164 = vmul.f32 %v1115, %v1115
  %v1165 = vmul.f32 %v1116, %v1116
  %v1166 = vmul.f32 %v1117, %v1117
  %v1167 = vmul.f32 %v1118, %v1118
  %v1168 = vmul.f32 %v1119, %v1119
  %v1169 = vmul.f32 %v1120, %v1120
  %v1170 = vmul.f32 %v1121, %v1121
  %v1171 = vmul.f32 %v1122, %v1122
  %v1172 = vmul.f32 %v1123, %v1123
  %v1173 = vmul.f32 %v1124, %v1124
  %v1174 = vmul.f32 %v1125, %v1125
  %v1175 = vmul.f32 %v1126, %v1126
  %v1176 = vmul.f32 %v1127, %v1127
  %v1177 = vmul.f32 %v1128, %v1128
  %v1178 = vmul.f32 %v1129, %v1129
  %v1179 = vmul.f32 %v1130, %v1130
  %v1180 = vmul.f32 %v1131, %v1131
  %v1181 = vmul.f32 %v1132, %v1132
  %v1182 = vmul.f32 %v1133, %v1133
  %v1183 = vmul.f32 %v1134, %v1134
  %v1184 = vmul.f32 %v1135, %v1135
  %v1185 = vmul.f32 %v1136, %v1136
  %v1186 = vmul.f32 %v1137, %v1137
  %v1187 = vmul.f32 %v1138, %v1138
  %v1188 = vadd.f32 %v1139, %v1140
  %v1189 = vadd.f32 %v1188, %v1141
  %v1190 = vadd.f32 %v1189, %v1142
  %v1191 = vadd.f32 %v1190, %v1143
  %v1192 = vadd.f32 %v1191, %v1144
  %v1193 = vadd.f32 %v1192, %v1145
  %v1194 = vadd.f32 %v1193, %v1146
  %v1195 = vadd.f32 %v1194, %v1147
  %v1196 = vadd.f32 %v1195, %v1148
  %v1197 = vadd.f32 %v1196, %v1149
  %v1198 = vadd.f32 %v1197, %v1150
  %v1199 = vadd.f32 %v1198, %v1151
  %v1200 = vadd.f32 %v1199, %v1152
  %v1201 = vadd.f32 %v1200, %v1153
  %v1202 = vadd.f32 %v1201, %v1154
  %v1203 = vadd.f32 %v1202, %v1155
  %v1204 = vadd.f32 %v1203, %v1156
  %v1205 = vadd.f32 %v1204, %v1157
  %v1206 = vadd.f32 %v1205, %v1158
  %v1207 = vadd.f32 %v1206, %v1159
  %v1208 = vadd.f32 %v1207, %v1160
  %v1209 = vadd.f32 %v1208, %v1161
  %v1210 = vadd.f32 %v1209, %v1162
  %v1211 = vadd.f32 %v1210, %v1163
  %v1212 = vadd.f32 %v1211, %v1164
  %v1213 = vadd.f32 %v1212, %v1165
  %v1214 = vadd.f32 %v1213, %v1166
  %v1215 = vadd.f32 %v1214, %v1167
  %v1216 = vadd.f32 %v1215, %v1168
  %v1217 = vadd.f32 %v1216, %v1169
  %v1218 = vadd.f32 %v1217, %v1170
  %v1219 = vadd.f32 %v1218, %v1171
  %v1220 = vadd.f32 %v1219, %v1172
  %v1221 = vadd.f32 %v1220, %v1173
  %v1222 = vadd.f32 %v1221, %v1174
  %v1223 = vadd.f32 %v1222, %v1175
  %v1224 = vadd.f32 %v1223, %v1176
  %v1225 = vadd.f32 %v1224, %v1177
  %v1226 = vadd.f32 %v1225, %v1178
  %v1227 = vadd.f32 %v1226, %v1179
  %v1228 = vadd.f32 %v1227, %v1180
  %v1229 = vadd.f32 %v1228, %v1181
  %v1230 = vadd.f32 %v1229, %v1182
  %v1231 = vadd.f32 %v1230, %v1183
  %v1232 = vadd.f32 %v1231, %v1184
  %v1233 = vadd.f32 %v1232, %v1185
  %v1234 = vadd.f32 %v1233, %v1186
  %v1235 = vadd.f32 %v1234, %v1187
  %v1236 = vrot.slane %v1235, 4
  %v1237 = vadd.f32 %v1235, %v1236
  %v1238 = vrot.slane %v1237, 2
  %v1239 = vadd.f32 %v1237, %v1238
  %v1240 = vrot.slane %v1239, 1
  %v1241 = vadd.f32 %v1239, %v1240
  %v1242 = vmul.f32 %v1241, %v1088
  %v1243 = vadd.f32 %v1242, 1e-05
  %v1244 = vrsqrt.pop %v1243
  %v1245 = vmul.f32 %v1090, %v1244
  %v1246 = vmul.f32 %v1091, %v1244
  %v1247 = vmul.f32 %v1092, %v1244
  %v1248 = vmul.f32 %v1093, %v1244
  %v1249 = vmul.f32 %v1094, %v1244
  %v1250 = vmul.f32 %v1095, %v1244
  %v1251 = vmul.f32 %v1096, %v1244
  %v1252 = vmul.f32 %v1097, %v1244
  %v1253 = vmul.f32 %v1098, %v1244
  %v1254 = vmul.f32 %v1099, %v1244
  %v1255 = vmul.f32 %v1100, %v1244
  %v1256 = vmul.f32 %v1101, %v1244
  %v1257 = vmul.f32 %v1102, %v1244
  %v1258 = vmul.f32 %v1103, %v1244
  %v1259 = vmul.f32 %v1104, %v1244
  %v1260 = vmul.f32 %v1105, %v1244
  %v1261 = vmul.f32 %v1106, %v1244
  %v1262 = vmul.f32 %v1107, %v1244
  %v1263 = vmul.f32 %v1108, %v1244
  %v1264 = vmul.f32 %v1109, %v1244
  %v1265 = vmul.f32 %v1110, %v1244
  %v1266 = vmul.f32 %v1111, %v1244
  %v1267 = vmul.f32 %v1112, %v1244
  %v1268 = vmul.f32 %v1113, %v1244
  %v1269 = vmul.f32 %v1114, %v1244
  %v1270 = vmul.f32 %v1115, %v1244
  %v1271 = vmul.f32 %v1116, %v1244
  %v1272 = vmul.f32 %v1117, %v1244
  %v1273 = vmul.f32 %v1118, %v1244
  %v1274 = vmul.f32 %v1119, %v1244
  %v1275 = vmul.f32 %v1120, %v1244
  %v1276 = vmul.f32 %v1121, %v1244
  %v1277 = vmul.f32 %v1122, %v1244
  %v1278 = vmul.f32 %v1123, %v1244
  %v1279 = vmul.f32 %v1124, %v1244
  %v1280 = vmul.f32 %v1125, %v1244
  %v1281 = vmul.f32 %v1126, %v1244
  %v1282 = vmul.f32 %v1127, %v1244
  %v1283 = vmul.f32 %v1128, %v1244
  %v1284 = vmul.f32 %v1129, %v1244
  %v1285 = vmul.f32 %v1130, %v1244
  %v1286 = vmul.f32 %v1131, %v1244
  %v1287 = vmul.f32 %v1132, %v1244
  %v1288 = vmul.f32 %v1133, %v1244
  %v1289 = vmul.f32 %v1134, %v1244
  %v1290 = vmul.f32 %v1135, %v1244
  %v1291 = vmul.f32 %v1136, %v1244
  %v1292 = vmul.f32 %v1137, %v1244
  %v1293 = vmul.f32 %v1138, %v1244
  %v1294 = vld [vmem:[%s2] sm:$0x1]
  %v1296 = vlaneseq
  %v1297 = vshrl.u32 %v1296, 7
  %v1298 = vsub.s32 0, %v1297
  %v1299 = vrot.slane %v1294, %v1298
  %v1301 = vmul.f32 %v1245, %v1299
  %v1302 = vmul.f32 %v1246, %v1299
  %v1303 = vmul.f32 %v1247, %v1299
  %v1304 = vmul.f32 %v1248, %v1299
  %v1305 = vmul.f32 %v1249, %v1299
  %v1306 = vmul.f32 %v1250, %v1299
  %v1307 = vmul.f32 %v1251, %v1299
  %v1308 = vmul.f32 %v1252, %v1299
  %v1309 = vmul.f32 %v1253, %v1299
  %v1310 = vmul.f32 %v1254, %v1299
  %v1311 = vmul.f32 %v1255, %v1299
  %v1312 = vmul.f32 %v1256, %v1299
  %v1313 = vmul.f32 %v1257, %v1299
  %v1314 = vmul.f32 %v1258, %v1299
  %v1315 = vmul.f32 %v1259, %v1299
  %v1316 = vmul.f32 %v1260, %v1299
  %v1317 = vmul.f32 %v1261, %v1299
  %v1318 = vmul.f32 %v1262, %v1299
  %v1319 = vmul.f32 %v1263, %v1299
  %v1320 = vmul.f32 %v1264, %v1299
  %v1321 = vmul.f32 %v1265, %v1299
  %v1322 = vmul.f32 %v1266, %v1299
  %v1323 = vmul.f32 %v1267, %v1299
  %v1324 = vmul.f32 %v1268, %v1299
  %v1325 = vmul.f32 %v1269, %v1299
  %v1326 = vmul.f32 %v1270, %v1299
  %v1327 = vmul.f32 %v1271, %v1299
  %v1328 = vmul.f32 %v1272, %v1299
  %v1329 = vmul.f32 %v1273, %v1299
  %v1330 = vmul.f32 %v1274, %v1299
  %v1331 = vmul.f32 %v1275, %v1299
  %v1332 = vmul.f32 %v1276, %v1299
  %v1333 = vmul.f32 %v1277, %v1299
  %v1334 = vmul.f32 %v1278, %v1299
  %v1335 = vmul.f32 %v1279, %v1299
  %v1336 = vmul.f32 %v1280, %v1299
  %v1337 = vmul.f32 %v1281, %v1299
  %v1338 = vmul.f32 %v1282, %v1299
  %v1339 = vmul.f32 %v1283, %v1299
  %v1340 = vmul.f32 %v1284, %v1299
  %v1341 = vmul.f32 %v1285, %v1299
  %v1342 = vmul.f32 %v1286, %v1299
  %v1343 = vmul.f32 %v1287, %v1299
  %v1344 = vmul.f32 %v1288, %v1299
  %v1345 = vmul.f32 %v1289, %v1299
  %v1346 = vmul.f32 %v1290, %v1299
  %v1347 = vmul.f32 %v1291, %v1299
  %v1348 = vmul.f32 %v1292, %v1299
  %v1349 = vmul.f32 %v1293, %v1299
  %v1350 = vld [vmem:[%s3] sm:$0x1]
  %v1352 = vlaneseq
  %v1353 = vshrl.u32 %v1352, 7
  %v1354 = vsub.s32 0, %v1353
  %v1355 = vrot.slane %v1350, %v1354
  %v1357 = vadd.f32 %v1301, %v1355
  %v1358 = vadd.f32 %v1302, %v1355
  %v1359 = vadd.f32 %v1303, %v1355
  %v1360 = vadd.f32 %v1304, %v1355
  %v1361 = vadd.f32 %v1305, %v1355
  %v1362 = vadd.f32 %v1306, %v1355
  %v1363 = vadd.f32 %v1307, %v1355
  %v1364 = vadd.f32 %v1308, %v1355
  %v1365 = vadd.f32 %v1309, %v1355
  %v1366 = vadd.f32 %v1310, %v1355
  %v1367 = vadd.f32 %v1311, %v1355
  %v1368 = vadd.f32 %v1312, %v1355
  %v1369 = vadd.f32 %v1313, %v1355
  %v1370 = vadd.f32 %v1314, %v1355
  %v1371 = vadd.f32 %v1315, %v1355
  %v1372 = vadd.f32 %v1316, %v1355
  %v1373 = vadd.f32 %v1317, %v1355
  %v1374 = vadd.f32 %v1318, %v1355
  %v1375 = vadd.f32 %v1319, %v1355
  %v1376 = vadd.f32 %v1320, %v1355
  %v1377 = vadd.f32 %v1321, %v1355
  %v1378 = vadd.f32 %v1322, %v1355
  %v1379 = vadd.f32 %v1323, %v1355
  %v1380 = vadd.f32 %v1324, %v1355
  %v1381 = vadd.f32 %v1325, %v1355
  %v1382 = vadd.f32 %v1326, %v1355
  %v1383 = vadd.f32 %v1327, %v1355
  %v1384 = vadd.f32 %v1328, %v1355
  %v1385 = vadd.f32 %v1329, %v1355
  %v1386 = vadd.f32 %v1330, %v1355
  %v1387 = vadd.f32 %v1331, %v1355
  %v1388 = vadd.f32 %v1332, %v1355
  %v1389 = vadd.f32 %v1333, %v1355
  %v1390 = vadd.f32 %v1334, %v1355
  %v1391 = vadd.f32 %v1335, %v1355
  %v1392 = vadd.f32 %v1336, %v1355
  %v1393 = vadd.f32 %v1337, %v1355
  %v1394 = vadd.f32 %v1338, %v1355
  %v1395 = vadd.f32 %v1339, %v1355
  %v1396 = vadd.f32 %v1340, %v1355
  %v1397 = vadd.f32 %v1341, %v1355
  %v1398 = vadd.f32 %v1342, %v1355
  %v1399 = vadd.f32 %v1343, %v1355
  %v1400 = vadd.f32 %v1344, %v1355
  %v1401 = vadd.f32 %v1345, %v1355
  %v1402 = vadd.f32 %v1346, %v1355
  %v1403 = vadd.f32 %v1347, %v1355
  %v1404 = vadd.f32 %v1348, %v1355
  %v1405 = vadd.f32 %v1349, %v1355
  %v1406 = vmax.f32 %v1357, 0.0
  %v1407 = vmax.f32 %v1358, 0.0
  %v1408 = vmax.f32 %v1359, 0.0
  %v1409 = vmax.f32 %v1360, 0.0
  %v1410 = vmax.f32 %v1361, 0.0
  %v1411 = vmax.f32 %v1362, 0.0
  %v1412 = vmax.f32 %v1363, 0.0
  %v1413 = vmax.f32 %v1364, 0.0
  %v1414 = vmax.f32 %v1365, 0.0
  %v1415 = vmax.f32 %v1366, 0.0
  %v1416 = vmax.f32 %v1367, 0.0
  %v1417 = vmax.f32 %v1368, 0.0
  %v1418 = vmax.f32 %v1369, 0.0
  %v1419 = vmax.f32 %v1370, 0.0
  %v1420 = vmax.f32 %v1371, 0.0
  %v1421 = vmax.f32 %v1372, 0.0
  %v1422 = vmax.f32 %v1373, 0.0
  %v1423 = vmax.f32 %v1374, 0.0
  %v1424 = vmax.f32 %v1375, 0.0
  %v1425 = vmax.f32 %v1376, 0.0
  %v1426 = vmax.f32 %v1377, 0.0
  %v1427 = vmax.f32 %v1378, 0.0
  %v1428 = vmax.f32 %v1379, 0.0
  %v1429 = vmax.f32 %v1380, 0.0
  %v1430 = vmax.f32 %v1381, 0.0
  %v1431 = vmax.f32 %v1382, 0.0
  %v1432 = vmax.f32 %v1383, 0.0
  %v1433 = vmax.f32 %v1384, 0.0
  %v1434 = vmax.f32 %v1385, 0.0
  %v1435 = vmax.f32 %v1386, 0.0
  %v1436 = vmax.f32 %v1387, 0.0
  %v1437 = vmax.f32 %v1388, 0.0
  %v1438 = vmax.f32 %v1389, 0.0
  %v1439 = vmax.f32 %v1390, 0.0
  %v1440 = vmax.f32 %v1391, 0.0
  %v1441 = vmax.f32 %v1392, 0.0
  %v1442 = vmax.f32 %v1393, 0.0
  %v1443 = vmax.f32 %v1394, 0.0
  %v1444 = vmax.f32 %v1395, 0.0
  %v1445 = vmax.f32 %v1396, 0.0
  %v1446 = vmax.f32 %v1397, 0.0
  %v1447 = vmax.f32 %v1398, 0.0
  %v1448 = vmax.f32 %v1399, 0.0
  %v1449 = vmax.f32 %v1400, 0.0
  %v1450 = vmax.f32 %v1401, 0.0
  %v1451 = vmax.f32 %v1402, 0.0
  %v1452 = vmax.f32 %v1403, 0.0
  %v1453 = vmax.f32 %v1404, 0.0
  %v1454 = vmax.f32 %v1405, 0.0
  %1455 = vst [vmem:[%s4] sm:$0xff] %v1406
  %1456 = vst [vmem:[%s4 + $0x8] sm:$0xff] %v1407
  %1457 = vst [vmem:[%s4 + $0x10] sm:$0xff] %v1408
  %1458 = vst [vmem:[%s4 + $0x18] sm:$0xff] %v1409
  %1459 = vst [vmem:[%s4 + $0x20] sm:$0xff] %v1410
  %1460 = vst [vmem:[%s4 + $0x28] sm:$0xff] %v1411
  %1461 = vst [vmem:[%s4 + $0x30] sm:$0xff] %v1412
  %1462 = vst [vmem:[%s4 + $0x38] sm:$0xff] %v1413
  %1463 = vst [vmem:[%s4 + $0x40] sm:$0xff] %v1414
  %1464 = vst [vmem:[%s4 + $0x48] sm:$0xff] %v1415
  %1465 = vst [vmem:[%s4 + $0x50] sm:$0xff] %v1416
  %1466 = vst [vmem:[%s4 + $0x58] sm:$0xff] %v1417
  %1467 = vst [vmem:[%s4 + $0x60] sm:$0xff] %v1418
  %1468 = vst [vmem:[%s4 + $0x68] sm:$0xff] %v1419
  %1469 = vst [vmem:[%s4 + $0x70] sm:$0xff] %v1420
  %1470 = vst [vmem:[%s4 + $0x78] sm:$0xff] %v1421
  %1471 = vst [vmem:[%s4 + $0x80] sm:$0xff] %v1422
  %1472 = vst [vmem:[%s4 + $0x88] sm:$0xff] %v1423
  %1473 = vst [vmem:[%s4 + $0x90] sm:$0xff] %v1424
  %1474 = vst [vmem:[%s4 + $0x98] sm:$0xff] %v1425
  %1475 = vst [vmem:[%s4 + $0xa0] sm:$0xff] %v1426
  %1476 = vst [vmem:[%s4 + $0xa8] sm:$0xff] %v1427
  %1477 = vst [vmem:[%s4 + $0xb0] sm:$0xff] %v1428
  %1478 = vst [vmem:[%s4 + $0xb8] sm:$0xff] %v1429
  %1479 = vst [vmem:[%s4 + $0xc0] sm:$0xff] %v1430
  %1480 = vst [vmem:[%s4 + $0xc8] sm:$0xff] %v1431
  %1481 = vst [vmem:[%s4 + $0xd0] sm:$0xff] %v1432
  %1482 = vst [vmem:[%s4 + $0xd8] sm:$0xff] %v1433
  %1483 = vst [vmem:[%s4 + $0xe0] sm:$0xff] %v1434
  %1484 = vst [vmem:[%s4 + $0xe8] sm:$0xff] %v1435
  %1485 = vst [vmem:[%s4 + $0xf0] sm:$0xff] %v1436
  %1486 = vst [vmem:[%s4 + $0xf8] sm:$0xff] %v1437
  %1487 = vst [vmem:[%s4 + $0x100] sm:$0xff] %v1438
  %1488 = vst [vmem:[%s4 + $0x108] sm:$0xff] %v1439
  %1489 = vst [vmem:[%s4 + $0x110] sm:$0xff] %v1440
  %1490 = vst [vmem:[%s4 + $0x118] sm:$0xff] %v1441
  %1491 = vst [vmem:[%s4 + $0x120] sm:$0xff] %v1442
  %1492 = vst [vmem:[%s4 + $0x128] sm:$0xff] %v1443
  %1493 = vst [vmem:[%s4 + $0x130] sm:$0xff] %v1444
  %1494 = vst [vmem:[%s4 + $0x138] sm:$0xff] %v1445
  %1495 = vst [vmem:[%s4 + $0x140] sm:$0xff] %v1446
  %1496 = vst [vmem:[%s4 + $0x148] sm:$0xff] %v1447
  %1497 = vst [vmem:[%s4 + $0x150] sm:$0xff] %v1448
  %1498 = vst [vmem:[%s4 + $0x158] sm:$0xff] %v1449
  %1499 = vst [vmem:[%s4 + $0x160] sm:$0xff] %v1450
  %1500 = vst [vmem:[%s4 + $0x168] sm:$0xff] %v1451
  %1501 = vst [vmem:[%s4 + $0x170] sm:$0xff] %v1452
  %1502 = vst [vmem:[%s4 + $0x178] sm:$0xff] %v1453
  %1503 = vst [vmem:[%s4 + $0x180] sm:$0xff] %v1454
  // Predicated region
  $region18: #{_lambda_.6} parent=0 // pred_check
    _
  $region19: #{_lambda_.6} parent=0 // pred_check_branch
    %1505 = sbr.rel (0) target = $region21
  $region20: #{_lambda_.6} parent=0 // pred_region
    _
  $region21: #{_lambda_.6} parent=0 // pred_fallthru
    _
  // Predicated region
  $region22: #{_lambda_.6} parent=0 // pred_check
    _
  $region23: #{_lambda_.6} parent=0 // pred_check_branch
    %1507 = sbr.rel (0) target = $region25
  $region24: #{_lambda_.6} parent=0 // pred_region
    _
  $region25: #{_lambda_.6} parent=0 // pred_fallthru
    _

// kernel: _lambda_.7
$region0: #{_lambda_.7}
  #allocation0 [shape = 'u32[]', space=smem, size = 0x4, offset = 0x4, fixed_abs, tag = 'smem constant byte address 0x4 - core index']
  #allocation1 [shape = 'u32[144,128]{1,0:T(1,128)}', space=vmem, size = 0x12000, scoped, tag = 'internal scratch']
  %s0 = inlined_call_operand.vmem [shape: f32[1568,256], index: 0, kind: input, shape index: {}]
  %s1 = inlined_call_operand.vmem [shape: bf16[256,128], index: 1, kind: input, shape index: {}]
  %s2 = inlined_call_operand.vmem [shape: f32[1568,128], index: 2, kind: output, shape index: {}]
  %s3 = sld [smem:[#allocation0]]
  $region41: #{_lambda_.7} parent=0
    _
  %s5 = ssub.s32 1, %s3
  %s6 = scalar_select 0, %s5, %s3
  loop: start=0, step=1, limit=4
  $region2: #{_lambda_.7} parent=0 // loop_pre_header
    _
  $region3: #{_lambda_.7} parent=0 // loop_header
    %s8 = sphi 0, %s12
    %p9 = scmp.ge.s32.totalorder %s8, 4
    %s18 = sphi 0, %s20
    %s21 = sphi 0, %s18
    %s22 = sphi 0, %s21
    %s38 = sphi 0, %s22
    %s42 = sphi 0, %s42
    %s44 = sphi 0, %s42
    %s45 = sphi 0, %s44
    %s59 = sphi 0, %s45
    %s65 = sphi 0, %s67
    %s68 = sphi 0, %s65
    %s69 = sphi 0, %s68
    %s85 = sphi 0, %s69
  $region4: #{_lambda_.7} parent=0 // loop_header_branch
    %11 = sbr.rel (%p9) target = $region8
  $region5: #{_lambda_.7} parent=0 // loop_body
    %s13 = ssub.s32 %s8, 1
    %s14 = ssub.s32 %s8, 2
    %s15 = sadd.s32 %s8, 1
    %s16 = ssub.s32 %s8, %s15
    %p17 = scmp.eq.s32.totalorder %s16, 0
    %s19 = sadd.s32 %s18, 1
    %s20 = scalar_select %p17, %s18, %s19
    %p23 = pneg %p17
    %p24 = scmp.eq.s32.totalorder %s8, 1
    %p25 = por %p23, %p24
    %p26 = scmp.ne.s32.totalorder %s18, %s21
    %p27 = scmp.eq.s32.totalorder %s8, 0
    %p28 = por %p26, %p27
    %p29 = scmp.ne.s32.totalorder %s18, %s21
    %p30 = scmp.eq.s32.totalorder %s13, 1
    %p31 = por %p29, %p30
    %p32 = scmp.ne.s32.totalorder %s21, %s22
    %p33 = scmp.eq.s32.totalorder %s13, 0
    %p34 = por %p32, %p33
    %p35 = scmp.ne.s32.totalorder %s21, %s22
    %p36 = scmp.eq.s32.totalorder %s14, 1
    %p37 = por %p35, %p36
    %p39 = scmp.ne.s32.totalorder %s22, %s38
    %p40 = scmp.eq.s32.totalorder %s14, 0
    %p41 = por %p39, %p40
    %s43 = sadd.s32 %s42, 1
    %p46 = scmp.eq.s32.totalorder %s8, 1
    %p47 = scmp.ne.s32.totalorder %s42, %s44
    %p48 = scmp.eq.s32.totalorder %s8, 0
    %p49 = por %p47, %p48
    %p50 = scmp.ne.s32.totalorder %s42, %s44
    %p51 = scmp.eq.s32.totalorder %s13, 1
    %p52 = por %p50, %p51
    %p53 = scmp.ne.s32.totalorder %s44, %s45
    %p54 = scmp.eq.s32.totalorder %s13, 0
    %p55 = por %p53, %p54
    %p56 = scmp.ne.s32.totalorder %s44, %s45
    %p57 = scmp.eq.s32.totalorder %s14, 1
    %p58 = por %p56, %p57
    %p60 = scmp.ne.s32.totalorder %s45, %s59
    %p61 = scmp.eq.s32.totalorder %s14, 0
    %p62 = por %p60, %p61
    %s63 = ssub.s32 %s8, %s15
    %p64 = scmp.eq.s32.totalorder %s63, 0
    %s66 = sadd.s32 %s65, 1
    %s67 = scalar_select %p64, %s65, %s66
    %p70 = pneg %p64
    %p71 = scmp.eq.s32.totalorder %s8, 1
    %p72 = por %p70, %p71
    %p73 = scmp.ne.s32.totalorder %s65, %s68
    %p74 = scmp.eq.s32.totalorder %s8, 0
    %p75 = por %p73, %p74
    %p76 = scmp.ne.s32.totalorder %s65, %s68
    %p77 = scmp.eq.s32.totalorder %s13, 1
    %p78 = por %p76, %p77
    %p79 = scmp.ne.s32.totalorder %s68, %s69
    %p80 = scmp.eq.s32.totalorder %s13, 0
    %p81 = por %p79, %p80
    %p82 = scmp.ne.s32.totalorder %s68, %s69
    %p83 = scmp.eq.s32.totalorder %s14, 1
    %p84 = por %p82, %p83
    %p86 = scmp.ne.s32.totalorder %s69, %s85
    %p87 = scmp.eq.s32.totalorder %s14, 0
    %p88 = por %p86, %p87
    %p89 = scmp.le.s32.totalorder 1, %s8
    %p90 = scmp.lt.s32.totalorder %s8, 3
    %p91 = pnand %p89, %p90
    %p92 = pneg %p91
    // Predicated region
    $region9: #{_lambda_.7} parent=5 // pred_check
      _
    $region10: #{_lambda_.7} parent=5 // pred_check_branch
      %94 = sbr.rel (%p91) target = $region12
    $region11: #{_lambda_.7} parent=5 // pred_region
      %s95 = ssub.s32 %s8, 1
      // Predicated region
      $region13: #{_lambda_.7} parent=11 // pred_check
        %p96 = pneg %p55
      $region14: #{_lambda_.7} parent=11 // pred_check_branch
        %98 = sbr.rel (%p96) target = $region16
      $region15: #{_lambda_.7} parent=11 // pred_region
        _
      $region16: #{_lambda_.7} parent=11 // pred_fallthru
        _
    $region12: #{_lambda_.7} parent=5 // pred_fallthru
      _
    %p99 = scmp.lt.s32.totalorder %s8, 2
    // Predicated region
    $region17: #{_lambda_.7} parent=5 // pred_check
      %p100 = pneg %p99
    $region18: #{_lambda_.7} parent=5 // pred_check_branch
      %102 = sbr.rel (%p100) target = $region20
    $region19: #{_lambda_.7} parent=5 // pred_region
      // Predicated region
      $region21: #{_lambda_.7} parent=19 // pred_check
        %p103 = pneg %p28
      $region22: #{_lambda_.7} parent=19 // pred_check_branch
        %105 = sbr.rel (%p103) target = $region24
      $region23: #{_lambda_.7} parent=19 // pred_region
        %s106 = smul.u32 98, %s8
        %p107 = scmp.lt.s32.totalorder %s106, 195
        %s108 = scalar_select %p107, %s106, 195
        %s109 = smul.addr %s108, 2
        %s110 = smul.addr %s109, 8
        %s111 = scalar_lea.vmem %s0, %s110
        %s112 = smul.u32 98, %s8
      $region24: #{_lambda_.7} parent=19 // pred_fallthru
        _
    $region20: #{_lambda_.7} parent=5 // pred_fallthru
      _
    %p113 = scmp.le.s32.totalorder 1, %s8
    %p114 = scmp.lt.s32.totalorder %s8, 3
    %p115 = pnand %p113, %p114
    %p116 = pneg %p115
    // Predicated region
    $region25: #{_lambda_.7} parent=5 // pred_check
      _
    $region26: #{_lambda_.7} parent=5 // pred_check_branch
      %118 = sbr.rel (%p115) target = $region28
    $region27: #{_lambda_.7} parent=5 // pred_region
      %s119 = ssub.s32 %s8, 1
      %s120 = smul.u32 98, %s13
      %p121 = scmp.lt.s32.totalorder %s120, 195
      %s122 = scalar_select %p121, %s120, 195
      %s123 = smul.addr %s122, 2
      %s124 = smul.addr %s123, 8
      %s125 = scalar_lea.vmem %s0, %s124
      %p126 = pneg %p34
      %p127 = pneg %p31
      %p128 = pneg %p55
      %p129 = pneg %p52
      %p130 = pneg %p81
      %p131 = pneg %p78
      %s132 = smul.u32 98, %s13
      %p133 = scmp.lt.s32.totalorder %s132, 195
      %s134 = scalar_select %p133, %s132, 195
      %s135 = smul.addr %s134, 8
      %s136 = scalar_lea.vmem %s2, %s135
      %s137 = smul.u32 98, %s13
      %p138 = scmp.lt.s32.totalorder %s137, 195
      %s139 = scalar_select %p138, %s137, 195
      %s140 = smul.addr %s139, 2
      %s141 = smul.addr %s140, 8
      %s142 = scalar_lea.vmem %s0, %s141
      %s143 = smul.u32 98, %s13
      %s144 = smul.u32 98, %s13
      %p145 = scmp.lt.s32.totalorder %s144, 195
      %s146 = scalar_select %p145, %s144, 195
      %s147 = smul.addr %s146, 8
      %s148 = scalar_lea.vmem %s2, %s147
      %s149 = smul.u32 98, %s13
      %v151 = vld [vmem:[%s142] sm:$0xff]
      %v152 = vld [vmem:[%s142 + $0x8] sm:$0xff]
      %v153 = vld [vmem:[%s142 + $0x10] sm:$0xff]
      %v154 = vld [vmem:[%s142 + $0x18] sm:$0xff]
      %v155 = vld [vmem:[%s142 + $0x20] sm:$0xff]
      %v156 = vld [vmem:[%s142 + $0x28] sm:$0xff]
      %v157 = vld [vmem:[%s142 + $0x30] sm:$0xff]
      %v158 = vld [vmem:[%s142 + $0x38] sm:$0xff]
      %v159 = vld [vmem:[%s142 + $0x40] sm:$0xff]
      %v160 = vld [vmem:[%s142 + $0x48] sm:$0xff]
      %v161 = vld [vmem:[%s142 + $0x50] sm:$0xff]
      %v162 = vld [vmem:[%s142 + $0x58] sm:$0xff]
      %v163 = vld [vmem:[%s142 + $0x60] sm:$0xff]
      %v164 = vld [vmem:[%s142 + $0x68] sm:$0xff]
      %v165 = vld [vmem:[%s142 + $0x70] sm:$0xff]
      %v166 = vld [vmem:[%s142 + $0x78] sm:$0xff]
      %v167 = vld [vmem:[%s142 + $0x80] sm:$0xff]
      %v168 = vld [vmem:[%s142 + $0x88] sm:$0xff]
      %v169 = vld [vmem:[%s142 + $0x90] sm:$0xff]
      %v170 = vld [vmem:[%s142 + $0x98] sm:$0xff]
      %v171 = vld [vmem:[%s142 + $0xa0] sm:$0xff]
      %v172 = vld [vmem:[%s142 + $0xa8] sm:$0xff]
      %v173 = vld [vmem:[%s142 + $0xb0] sm:$0xff]
      %v174 = vld [vmem:[%s142 + $0xb8] sm:$0xff]
      %v175 = vld [vmem:[%s142 + $0xc0] sm:$0xff]
      %v176 = vld [vmem:[%s142 + $0xc8] sm:$0xff]
      %v177 = vld [vmem:[%s142 + $0xd0] sm:$0xff]
      %v178 = vld [vmem:[%s142 + $0xd8] sm:$0xff]
      %v179 = vld [vmem:[%s142 + $0xe0] sm:$0xff]
      %v180 = vld [vmem:[%s142 + $0xe8] sm:$0xff]
      %v181 = vld [vmem:[%s142 + $0xf0] sm:$0xff]
      %v182 = vld [vmem:[%s142 + $0xf8] sm:$0xff]
      %v183 = vld [vmem:[%s142 + $0x100] sm:$0xff]
      %v184 = vld [vmem:[%s142 + $0x108] sm:$0xff]
      %v185 = vld [vmem:[%s142 + $0x110] sm:$0xff]
      %v186 = vld [vmem:[%s142 + $0x118] sm:$0xff]
      %v187 = vld [vmem:[%s142 + $0x120] sm:$0xff]
      %v188 = vld [vmem:[%s142 + $0x128] sm:$0xff]
      %v189 = vld [vmem:[%s142 + $0x130] sm:$0xff]
      %v190 = vld [vmem:[%s142 + $0x138] sm:$0xff]
      %v191 = vld [vmem:[%s142 + $0x140] sm:$0xff]
      %v192 = vld [vmem:[%s142 + $0x148] sm:$0xff]
      %v193 = vld [vmem:[%s142 + $0x150] sm:$0xff]
      %v194 = vld [vmem:[%s142 + $0x158] sm:$0xff]
      %v195 = vld [vmem:[%s142 + $0x160] sm:$0xff]
      %v196 = vld [vmem:[%s142 + $0x168] sm:$0xff]
      %v197 = vld [vmem:[%s142 + $0x170] sm:$0xff]
      %v198 = vld [vmem:[%s142 + $0x178] sm:$0xff]
      %v199 = vld [vmem:[%s142 + $0x180] sm:$0xff]
      %v200 = vld [vmem:[%s142 + $0x188] sm:$0xff]
      %v201 = vld [vmem:[%s142 + $0x190] sm:$0xff]
      %v202 = vld [vmem:[%s142 + $0x198] sm:$0xff]
      %v203 = vld [vmem:[%s142 + $0x1a0] sm:$0xff]
      %v204 = vld [vmem:[%s142 + $0x1a8] sm:$0xff]
      %v205 = vld [vmem:[%s142 + $0x1b0] sm:$0xff]
      %v206 = vld [vmem:[%s142 + $0x1b8] sm:$0xff]
      %v207 = vld [vmem:[%s142 + $0x1c0] sm:$0xff]
      %v208 = vld [vmem:[%s142 + $0x1c8] sm:$0xff]
      %v209 = vld [vmem:[%s142 + $0x1d0] sm:$0xff]
      %v210 = vld [vmem:[%s142 + $0x1d8] sm:$0xff]
      %v211 = vld [vmem:[%s142 + $0x1e0] sm:$0xff]
      %v212 = vld [vmem:[%s142 + $0x1e8] sm:$0xff]
      %v213 = vld [vmem:[%s142 + $0x1f0] sm:$0xff]
      %v214 = vld [vmem:[%s142 + $0x1f8] sm:$0xff]
      %v215 = vld [vmem:[%s142 + $0x200] sm:$0xff]
      %v216 = vld [vmem:[%s142 + $0x208] sm:$0xff]
      %v217 = vld [vmem:[%s142 + $0x210] sm:$0xff]
      %v218 = vld [vmem:[%s142 + $0x218] sm:$0xff]
      %v219 = vld [vmem:[%s142 + $0x220] sm:$0xff]
      %v220 = vld [vmem:[%s142 + $0x228] sm:$0xff]
      %v221 = vld [vmem:[%s142 + $0x230] sm:$0xff]
      %v222 = vld [vmem:[%s142 + $0x238] sm:$0xff]
      %v223 = vld [vmem:[%s142 + $0x240] sm:$0xff]
      %v224 = vld [vmem:[%s142 + $0x248] sm:$0xff]
      %v225 = vld [vmem:[%s142 + $0x250] sm:$0xff]
      %v226 = vld [vmem:[%s142 + $0x258] sm:$0xff]
      %v227 = vld [vmem:[%s142 + $0x260] sm:$0xff]
      %v228 = vld [vmem:[%s142 + $0x268] sm:$0xff]
      %v229 = vld [vmem:[%s142 + $0x270] sm:$0xff]
      %v230 = vld [vmem:[%s142 + $0x278] sm:$0xff]
      %v231 = vld [vmem:[%s142 + $0x280] sm:$0xff]
      %v232 = vld [vmem:[%s142 + $0x288] sm:$0xff]
      %v233 = vld [vmem:[%s142 + $0x290] sm:$0xff]
      %v234 = vld [vmem:[%s142 + $0x298] sm:$0xff]
      %v235 = vld [vmem:[%s142 + $0x2a0] sm:$0xff]
      %v236 = vld [vmem:[%s142 + $0x2a8] sm:$0xff]
      %v237 = vld [vmem:[%s142 + $0x2b0] sm:$0xff]
      %v238 = vld [vmem:[%s142 + $0x2b8] sm:$0xff]
      %v239 = vld [vmem:[%s142 + $0x2c0] sm:$0xff]
      %v240 = vld [vmem:[%s142 + $0x2c8] sm:$0xff]
      %v241 = vld [vmem:[%s142 + $0x2d0] sm:$0xff]
      %v242 = vld [vmem:[%s142 + $0x2d8] sm:$0xff]
      %v243 = vld [vmem:[%s142 + $0x2e0] sm:$0xff]
      %v244 = vld [vmem:[%s142 + $0x2e8] sm:$0xff]
      %v245 = vld [vmem:[%s142 + $0x2f0] sm:$0xff]
      %v246 = vld [vmem:[%s142 + $0x2f8] sm:$0xff]
      %v247 = vld [vmem:[%s142 + $0x300] sm:$0xff]
      %v248 = vld [vmem:[%s142 + $0x308] sm:$0xff]
      %v249 = vld [vmem:[%s142 + $0x310] sm:$0xff]
      %v250 = vld [vmem:[%s142 + $0x318] sm:$0xff]
      %v251 = vld [vmem:[%s142 + $0x320] sm:$0xff]
      %v252 = vld [vmem:[%s142 + $0x328] sm:$0xff]
      %v253 = vld [vmem:[%s142 + $0x330] sm:$0xff]
      %v254 = vld [vmem:[%s142 + $0x338] sm:$0xff]
      %v255 = vld [vmem:[%s142 + $0x340] sm:$0xff]
      %v256 = vld [vmem:[%s142 + $0x348] sm:$0xff]
      %v257 = vld [vmem:[%s142 + $0x350] sm:$0xff]
      %v258 = vld [vmem:[%s142 + $0x358] sm:$0xff]
      %v259 = vld [vmem:[%s142 + $0x360] sm:$0xff]
      %v260 = vld [vmem:[%s142 + $0x368] sm:$0xff]
      %v261 = vld [vmem:[%s142 + $0x370] sm:$0xff]
      %v262 = vld [vmem:[%s142 + $0x378] sm:$0xff]
      %v263 = vld [vmem:[%s142 + $0x380] sm:$0xff]
      %v264 = vld [vmem:[%s142 + $0x388] sm:$0xff]
      %v265 = vld [vmem:[%s142 + $0x390] sm:$0xff]
      %v266 = vld [vmem:[%s142 + $0x398] sm:$0xff]
      %v267 = vld [vmem:[%s142 + $0x3a0] sm:$0xff]
      %v268 = vld [vmem:[%s142 + $0x3a8] sm:$0xff]
      %v269 = vld [vmem:[%s142 + $0x3b0] sm:$0xff]
      %v270 = vld [vmem:[%s142 + $0x3b8] sm:$0xff]
      %v271 = vld [vmem:[%s142 + $0x3c0] sm:$0xff]
      %v272 = vld [vmem:[%s142 + $0x3c8] sm:$0xff]
      %v273 = vld [vmem:[%s142 + $0x3d0] sm:$0xff]
      %v274 = vld [vmem:[%s142 + $0x3d8] sm:$0xff]
      %v275 = vld [vmem:[%s142 + $0x3e0] sm:$0xff]
      %v276 = vld [vmem:[%s142 + $0x3e8] sm:$0xff]
      %v277 = vld [vmem:[%s142 + $0x3f0] sm:$0xff]
      %v278 = vld [vmem:[%s142 + $0x3f8] sm:$0xff]
      %v279 = vld [vmem:[%s142 + $0x400] sm:$0xff]
      %v280 = vld [vmem:[%s142 + $0x408] sm:$0xff]
      %v281 = vld [vmem:[%s142 + $0x410] sm:$0xff]
      %v282 = vld [vmem:[%s142 + $0x418] sm:$0xff]
      %v283 = vld [vmem:[%s142 + $0x420] sm:$0xff]
      %v284 = vld [vmem:[%s142 + $0x428] sm:$0xff]
      %v285 = vld [vmem:[%s142 + $0x430] sm:$0xff]
      %v286 = vld [vmem:[%s142 + $0x438] sm:$0xff]
      %v287 = vld [vmem:[%s142 + $0x440] sm:$0xff]
      %v288 = vld [vmem:[%s142 + $0x448] sm:$0xff]
      %v289 = vld [vmem:[%s142 + $0x450] sm:$0xff]
      %v290 = vld [vmem:[%s142 + $0x458] sm:$0xff]
      %v291 = vld [vmem:[%s142 + $0x460] sm:$0xff]
      %v292 = vld [vmem:[%s142 + $0x468] sm:$0xff]
      %v293 = vld [vmem:[%s142 + $0x470] sm:$0xff]
      %v294 = vld [vmem:[%s142 + $0x478] sm:$0xff]
      %v295 = vld [vmem:[%s142 + $0x480] sm:$0xff]
      %v296 = vld [vmem:[%s142 + $0x488] sm:$0xff]
      %v297 = vld [vmem:[%s142 + $0x490] sm:$0xff]
      %v298 = vld [vmem:[%s142 + $0x498] sm:$0xff]
      %v299 = vld [vmem:[%s142 + $0x4a0] sm:$0xff]
      %v300 = vld [vmem:[%s142 + $0x4a8] sm:$0xff]
      %v301 = vld [vmem:[%s142 + $0x4b0] sm:$0xff]
      %v302 = vld [vmem:[%s142 + $0x4b8] sm:$0xff]
      %v303 = vld [vmem:[%s142 + $0x4c0] sm:$0xff]
      %v304 = vld [vmem:[%s142 + $0x4c8] sm:$0xff]
      %v305 = vld [vmem:[%s142 + $0x4d0] sm:$0xff]
      %v306 = vld [vmem:[%s142 + $0x4d8] sm:$0xff]
      %v307 = vld [vmem:[%s142 + $0x4e0] sm:$0xff]
      %v308 = vld [vmem:[%s142 + $0x4e8] sm:$0xff]
      %v309 = vld [vmem:[%s142 + $0x4f0] sm:$0xff]
      %v310 = vld [vmem:[%s142 + $0x4f8] sm:$0xff]
      %v311 = vld [vmem:[%s142 + $0x500] sm:$0xff]
      %v312 = vld [vmem:[%s142 + $0x508] sm:$0xff]
      %v313 = vld [vmem:[%s142 + $0x510] sm:$0xff]
      %v314 = vld [vmem:[%s142 + $0x518] sm:$0xff]
      %v315 = vld [vmem:[%s142 + $0x520] sm:$0xff]
      %v316 = vld [vmem:[%s142 + $0x528] sm:$0xff]
      %v317 = vld [vmem:[%s142 + $0x530] sm:$0xff]
      %v318 = vld [vmem:[%s142 + $0x538] sm:$0xff]
      %v319 = vld [vmem:[%s142 + $0x540] sm:$0xff]
      %v320 = vld [vmem:[%s142 + $0x548] sm:$0xff]
      %v321 = vld [vmem:[%s142 + $0x550] sm:$0xff]
      %v322 = vld [vmem:[%s142 + $0x558] sm:$0xff]
      %v323 = vld [vmem:[%s142 + $0x560] sm:$0xff]
      %v324 = vld [vmem:[%s142 + $0x568] sm:$0xff]
      %v325 = vld [vmem:[%s142 + $0x570] sm:$0xff]
      %v326 = vld [vmem:[%s142 + $0x578] sm:$0xff]
      %v327 = vld [vmem:[%s142 + $0x580] sm:$0xff]
      %v328 = vld [vmem:[%s142 + $0x588] sm:$0xff]
      %v329 = vld [vmem:[%s142 + $0x590] sm:$0xff]
      %v330 = vld [vmem:[%s142 + $0x598] sm:$0xff]
      %v331 = vld [vmem:[%s142 + $0x5a0] sm:$0xff]
      %v332 = vld [vmem:[%s142 + $0x5a8] sm:$0xff]
      %v333 = vld [vmem:[%s142 + $0x5b0] sm:$0xff]
      %v334 = vld [vmem:[%s142 + $0x5b8] sm:$0xff]
      %v335 = vld [vmem:[%s142 + $0x5c0] sm:$0xff]
      %v336 = vld [vmem:[%s142 + $0x5c8] sm:$0xff]
      %v337 = vld [vmem:[%s142 + $0x5d0] sm:$0xff]
      %v338 = vld [vmem:[%s142 + $0x5d8] sm:$0xff]
      %v339 = vld [vmem:[%s142 + $0x5e0] sm:$0xff]
      %v340 = vld [vmem:[%s142 + $0x5e8] sm:$0xff]
      %v341 = vld [vmem:[%s142 + $0x5f0] sm:$0xff]
      %v342 = vld [vmem:[%s142 + $0x5f8] sm:$0xff]
      %v343 = vld [vmem:[%s142 + $0x600] sm:$0xff]
      %v344 = vld [vmem:[%s142 + $0x608] sm:$0xff]
      %v345 = vld [vmem:[%s142 + $0x610] sm:$0xff]
      %v346 = vld [vmem:[%s142 + $0x618] sm:$0xff]
      %v347 = vpack.c.bf16 %v153, %v151
      %v348 = vpack.c.bf16 %v154, %v152
      %v349 = vpack.c.bf16 %v157, %v155
      %v350 = vpack.c.bf16 %v158, %v156
      %v351 = vpack.c.bf16 %v161, %v159
      %v352 = vpack.c.bf16 %v162, %v160
      %v353 = vpack.c.bf16 %v165, %v163
      %v354 = vpack.c.bf16 %v166, %v164
      %v355 = vpack.c.bf16 %v169, %v167
      %v356 = vpack.c.bf16 %v170, %v168
      %v357 = vpack.c.bf16 %v173, %v171
      %v358 = vpack.c.bf16 %v174, %v172
      %v359 = vpack.c.bf16 %v177, %v175
      %v360 = vpack.c.bf16 %v178, %v176
      %v361 = vpack.c.bf16 %v181, %v179
      %v362 = vpack.c.bf16 %v182, %v180
      %v363 = vpack.c.bf16 %v185, %v183
      %v364 = vpack.c.bf16 %v186, %v184
      %v365 = vpack.c.bf16 %v189, %v187
      %v366 = vpack.c.bf16 %v190, %v188
      %v367 = vpack.c.bf16 %v193, %v191
      %v368 = vpack.c.bf16 %v194, %v192
      %v369 = vpack.c.bf16 %v197, %v195
      %v370 = vpack.c.bf16 %v198, %v196
      %v371 = vpack.c.bf16 %v201, %v199
      %v372 = vpack.c.bf16 %v202, %v200
      %v373 = vpack.c.bf16 %v205, %v203
      %v374 = vpack.c.bf16 %v206, %v204
      %v375 = vpack.c.bf16 %v209, %v207
      %v376 = vpack.c.bf16 %v210, %v208
      %v377 = vpack.c.bf16 %v213, %v211
      %v378 = vpack.c.bf16 %v214, %v212
      %v379 = vpack.c.bf16 %v217, %v215
      %v380 = vpack.c.bf16 %v218, %v216
      %v381 = vpack.c.bf16 %v221, %v219
      %v382 = vpack.c.bf16 %v222, %v220
      %v383 = vpack.c.bf16 %v225, %v223
      %v384 = vpack.c.bf16 %v226, %v224
      %v385 = vpack.c.bf16 %v229, %v227
      %v386 = vpack.c.bf16 %v230, %v228
      %v387 = vpack.c.bf16 %v233, %v231
      %v388 = vpack.c.bf16 %v234, %v232
      %v389 = vpack.c.bf16 %v237, %v235
      %v390 = vpack.c.bf16 %v238, %v236
      %v391 = vpack.c.bf16 %v241, %v239
      %v392 = vpack.c.bf16 %v242, %v240
      %v393 = vpack.c.bf16 %v245, %v243
      %v394 = vpack.c.bf16 %v246, %v244
      %v395 = vpack.c.bf16 %v249, %v247
      %v396 = vpack.c.bf16 %v250, %v248
      %v397 = vpack.c.bf16 %v253, %v251
      %v398 = vpack.c.bf16 %v254, %v252
      %v399 = vpack.c.bf16 %v257, %v255
      %v400 = vpack.c.bf16 %v258, %v256
      %v401 = vpack.c.bf16 %v261, %v259
      %v402 = vpack.c.bf16 %v262, %v260
      %v403 = vpack.c.bf16 %v265, %v263
      %v404 = vpack.c.bf16 %v266, %v264
      %v405 = vpack.c.bf16 %v269, %v267
      %v406 = vpack.c.bf16 %v270, %v268
      %v407 = vpack.c.bf16 %v273, %v271
      %v408 = vpack.c.bf16 %v274, %v272
      %v409 = vpack.c.bf16 %v277, %v275
      %v410 = vpack.c.bf16 %v278, %v276
      %v411 = vpack.c.bf16 %v281, %v279
      %v412 = vpack.c.bf16 %v282, %v280
      %v413 = vpack.c.bf16 %v285, %v283
      %v414 = vpack.c.bf16 %v286, %v284
      %v415 = vpack.c.bf16 %v289, %v287
      %v416 = vpack.c.bf16 %v290, %v288
      %v417 = vpack.c.bf16 %v293, %v291
      %v418 = vpack.c.bf16 %v294, %v292
      %v419 = vpack.c.bf16 %v297, %v295
      %v420 = vpack.c.bf16 %v298, %v296
      %v421 = vpack.c.bf16 %v301, %v299
      %v422 = vpack.c.bf16 %v302, %v300
      %v423 = vpack.c.bf16 %v305, %v303
      %v424 = vpack.c.bf16 %v306, %v304
      %v425 = vpack.c.bf16 %v309, %v307
      %v426 = vpack.c.bf16 %v310, %v308
      %v427 = vpack.c.bf16 %v313, %v311
      %v428 = vpack.c.bf16 %v314, %v312
      %v429 = vpack.c.bf16 %v317, %v315
      %v430 = vpack.c.bf16 %v318, %v316
      %v431 = vpack.c.bf16 %v321, %v319
      %v432 = vpack.c.bf16 %v322, %v320
      %v433 = vpack.c.bf16 %v325, %v323
      %v434 = vpack.c.bf16 %v326, %v324
      %v435 = vpack.c.bf16 %v329, %v327
      %v436 = vpack.c.bf16 %v330, %v328
      %v437 = vpack.c.bf16 %v333, %v331
      %v438 = vpack.c.bf16 %v334, %v332
      %v439 = vpack.c.bf16 %v337, %v335
      %v440 = vpack.c.bf16 %v338, %v336
      %v441 = vpack.c.bf16 %v341, %v339
      %v442 = vpack.c.bf16 %v342, %v340
      %v443 = vpack.c.bf16 %v345, %v343
      %v444 = vpack.c.bf16 %v346, %v344
      %v445 = vld [vmem:[%s1] sm:$0xf]
      %v446 = vld [vmem:[%s1 + $0x4] sm:$0xf]
      %v447 = vld [vmem:[%s1 + $0x8] sm:$0xf]
      %v448 = vld [vmem:[%s1 + $0xc] sm:$0xf]
      %v449 = vld [vmem:[%s1 + $0x10] sm:$0xf]
      %v450 = vld [vmem:[%s1 + $0x14] sm:$0xf]
      %v451 = vld [vmem:[%s1 + $0x18] sm:$0xf]
      %v452 = vld [vmem:[%s1 + $0x1c] sm:$0xf]
      %v453 = vld [vmem:[%s1 + $0x20] sm:$0xf]
      %v454 = vld [vmem:[%s1 + $0x24] sm:$0xf]
      %v455 = vld [vmem:[%s1 + $0x28] sm:$0xf]
      %v456 = vld [vmem:[%s1 + $0x2c] sm:$0xf]
      %v457 = vld [vmem:[%s1 + $0x30] sm:$0xf]
      %v458 = vld [vmem:[%s1 + $0x34] sm:$0xf]
      %v459 = vld [vmem:[%s1 + $0x38] sm:$0xf]
      %v460 = vld [vmem:[%s1 + $0x3c] sm:$0xf]
      %v461 = vld [vmem:[%s1 + $0x40] sm:$0xf]
      %v462 = vld [vmem:[%s1 + $0x44] sm:$0xf]
      %v463 = vld [vmem:[%s1 + $0x48] sm:$0xf]
      %v464 = vld [vmem:[%s1 + $0x4c] sm:$0xf]
      %v465 = vld [vmem:[%s1 + $0x50] sm:$0xf]
      %v466 = vld [vmem:[%s1 + $0x54] sm:$0xf]
      %v467 = vld [vmem:[%s1 + $0x58] sm:$0xf]
      %v468 = vld [vmem:[%s1 + $0x5c] sm:$0xf]
      %v469 = vld [vmem:[%s1 + $0x60] sm:$0xf]
      %v470 = vld [vmem:[%s1 + $0x64] sm:$0xf]
      %v471 = vld [vmem:[%s1 + $0x68] sm:$0xf]
      %v472 = vld [vmem:[%s1 + $0x6c] sm:$0xf]
      %v473 = vld [vmem:[%s1 + $0x70] sm:$0xf]
      %v474 = vld [vmem:[%s1 + $0x74] sm:$0xf]
      %v475 = vld [vmem:[%s1 + $0x78] sm:$0xf]
      %v476 = vld [vmem:[%s1 + $0x7c] sm:$0xf]
      %v509 = vunpack.c.l.b16 %v445
      %v510 = vunpack.c.l.b16 %v446
      %v511 = vunpack.c.l.b16 %v447
      %v512 = vunpack.c.l.b16 %v448
      %v513 = vunpack.c.l.b16 %v449
      %v514 = vunpack.c.l.b16 %v450
      %v515 = vunpack.c.l.b16 %v451
      %v516 = vunpack.c.l.b16 %v452
      %v517 = vunpack.c.l.b16 %v453
      %v518 = vunpack.c.l.b16 %v454
      %v519 = vunpack.c.l.b16 %v455
      %v520 = vunpack.c.l.b16 %v456
      %v521 = vunpack.c.l.b16 %v457
      %v522 = vunpack.c.l.b16 %v458
      %v523 = vunpack.c.l.b16 %v459
      %v524 = vunpack.c.l.b16 %v460
      %v525 = vunpack.c.l.b16 %v461
      %v526 = vunpack.c.l.b16 %v462
      %v527 = vunpack.c.l.b16 %v463
      %v528 = vunpack.c.l.b16 %v464
      %v529 = vunpack.c.l.b16 %v465
      %v530 = vunpack.c.l.b16 %v466
      %v531 = vunpack.c.l.b16 %v467
      %v532 = vunpack.c.l.b16 %v468
      %v533 = vunpack.c.l.b16 %v469
      %v534 = vunpack.c.l.b16 %v470
      %v535 = vunpack.c.l.b16 %v471
      %v536 = vunpack.c.l.b16 %v472
      %v537 = vunpack.c.l.b16 %v473
      %v538 = vunpack.c.l.b16 %v474
      %v539 = vunpack.c.l.b16 %v475
      %v540 = vunpack.c.l.b16 %v476
      %v541 = vpack.c.b16 %v510, %v509
      %v542 = vpack.c.b16 %v512, %v511
      %v543 = vpack.c.b16 %v514, %v513
      %v544 = vpack.c.b16 %v516, %v515
      %v545 = vpack.c.b16 %v518, %v517
      %v546 = vpack.c.b16 %v520, %v519
      %v547 = vpack.c.b16 %v522, %v521
      %v548 = vpack.c.b16 %v524, %v523
      %v549 = vpack.c.b16 %v526, %v525
      %v550 = vpack.c.b16 %v528, %v527
      %v551 = vpack.c.b16 %v530, %v529
      %v552 = vpack.c.b16 %v532, %v531
      %v553 = vpack.c.b16 %v534, %v533
      %v554 = vpack.c.b16 %v536, %v535
      %v555 = vpack.c.b16 %v538, %v537
      %v556 = vpack.c.b16 %v540, %v539
      %573 = vmatprep.subr.bf16.mxu0 0
      %574 = vmatpush1.bf16.msra.mxu0 %v541
      %575 = vmatprep.subr.bf16.mxu0 0
      %576 = vmatpush1.bf16.msra.mxu0 %v542
      %577 = vmatprep.subr.bf16.mxu0 0
      %578 = vmatpush1.bf16.msra.mxu0 %v543
      %579 = vmatprep.subr.bf16.mxu0 0
      %580 = vmatpush1.bf16.msra.mxu0 %v544
      %581 = vmatprep.subr.bf16.mxu0 0
      %582 = vmatpush1.bf16.msra.mxu0 %v545
      %583 = vmatprep.subr.bf16.mxu0 0
      %584 = vmatpush1.bf16.msra.mxu0 %v546
      %585 = vmatprep.subr.bf16.mxu0 0
      %586 = vmatpush1.bf16.msra.mxu0 %v547
      %587 = vmatprep.subr.bf16.mxu0 0
      %588 = vmatpush1.bf16.msra.mxu0 %v548
      %589 = vmatprep.subr.bf16.mxu0 0
      %590 = vmatpush1.bf16.msra.mxu0 %v549
      %591 = vmatprep.subr.bf16.mxu0 0
      %592 = vmatpush1.bf16.msra.mxu0 %v550
      %593 = vmatprep.subr.bf16.mxu0 0
      %594 = vmatpush1.bf16.msra.mxu0 %v551
      %595 = vmatprep.subr.bf16.mxu0 0
      %596 = vmatpush1.bf16.msra.mxu0 %v552
      %597 = vmatprep.subr.bf16.mxu0 0
      %598 = vmatpush1.bf16.msra.mxu0 %v553
      %599 = vmatprep.subr.bf16.mxu0 0
      %600 = vmatpush1.bf16.msra.mxu0 %v554
      %601 = vmatprep.subr.bf16.mxu0 0
      %602 = vmatpush1.bf16.msra.mxu0 %v555
      %603 = vmatprep.subr.bf16.mxu0 0
      %604 = vmatpush1.bf16.msra.mxu0 %v556
      %605 = vmatprep.mubr.bf16.mxu0 %v348
      %606 = vmatmul.mubr.bf16.gmra.mrb[0].mxu0 %v347
      %v607 = vpop.f32.mrb[0].mxu0
      %v608 = vadd.f32 0.0, %v607
      %v609 = vpop.f32.mrb[0].mxu0
      %v610 = vpop.f32.mrb[0].mxu0
      %v611 = vadd.f32 0.0, %v610
      %v612 = vpop.f32.mrb[0].mxu0
      %613 = vmatprep.mubr.bf16.mxu0 %v350
      %614 = vmatmul.mubr.bf16.gmra.mrb[0].mxu0 %v349
      %v615 = vpop.f32.mrb[0].mxu0
      %v616 = vadd.f32 0.0, %v615
      %v617 = vpop.f32.mrb[0].mxu0
      %v618 = vpop.f32.mrb[0].mxu0
      %v619 = vadd.f32 0.0, %v618
      %v620 = vpop.f32.mrb[0].mxu0
      %621 = vmatprep.mubr.bf16.mxu0 %v352
      %622 = vmatmul.mubr.bf16.gmra.mrb[0].mxu0 %v351
      %v623 = vpop.f32.mrb[0].mxu0
      %v624 = vadd.f32 0.0, %v623
      %v625 = vpop.f32.mrb[0].mxu0
      %v626 = vpop.f32.mrb[0].mxu0
      %v627 = vadd.f32 0.0, %v626
      %v628 = vpop.f32.mrb[0].mxu0
      %629 = vmatprep.mubr.bf16.mxu0 %v354
      %630 = vmatmul.mubr.bf16.gmra.mrb[0].mxu0 %v353
      %v631 = vpop.f32.mrb[0].mxu0
      %v632 = vadd.f32 0.0, %v631
      %v633 = vpop.f32.mrb[0].mxu0
      %v634 = vpop.f32.mrb[0].mxu0
      %v635 = vadd.f32 0.0, %v634
      %v636 = vpop.f32.mrb[0].mxu0
      %637 = vmatprep.mubr.bf16.mxu0 %v356
      %638 = vmatmul.mubr.bf16.gmra.mrb[0].mxu0 %v355
      %v639 = vpop.f32.mrb[0].mxu0
      %v640 = vadd.f32 0.0, %v639
      %v641 = vpop.f32.mrb[0].mxu0
      %v642 = vpop.f32.mrb[0].mxu0
      %v643 = vadd.f32 0.0, %v642
      %v644 = vpop.f32.mrb[0].mxu0
      %645 = vmatprep.mubr.bf16.mxu0 %v358
      %646 = vmatmul.mubr.bf16.gmra.mrb[0].mxu0 %v357
      %v647 = vpop.f32.mrb[0].mxu0
      %v648 = vadd.f32 0.0, %v647
      %v649 = vpop.f32.mrb[0].mxu0
      %v650 = vpop.f32.mrb[0].mxu0
      %v651 = vadd.f32 0.0, %v650
      %v652 = vpop.f32.mrb[0].mxu0
      %653 = vmatprep.mubr.bf16.mxu0 %v360
      %654 = vmatmul.mubr.bf16.gmra.mrb[0].mxu0 %v359
      %v655 = vpop.f32.mrb[0].mxu0
      %v656 = vadd.f32 0.0, %v655
      %v657 = vpop.f32.mrb[0].mxu0
      %v658 = vpop.f32.mrb[0].mxu0
      %v659 = vadd.f32 0.0, %v658
      %v660 = vpop.f32.mrb[0].mxu0
      %661 = vmatprep.mubr.bf16.mxu0 %v362
      %662 = vmatmul.mubr.bf16.gmra.mrb[0].mxu0 %v361
      %v663 = vpop.f32.mrb[0].mxu0
      %v664 = vadd.f32 0.0, %v663
      %v665 = vpop.f32.mrb[0].mxu0
      %v666 = vpop.f32.mrb[0].mxu0
      %v667 = vadd.f32 0.0, %v666
      %v668 = vpop.f32.mrb[0].mxu0
      %669 = vmatprep.mubr.bf16.mxu0 %v364
      %670 = vmatmul.mubr.bf16.gmra.mrb[0].mxu0 %v363
      %v671 = vpop.f32.mrb[0].mxu0
      %v672 = vadd.f32 0.0, %v671
      %v673 = vpop.f32.mrb[0].mxu0
      %v674 = vpop.f32.mrb[0].mxu0
      %v675 = vadd.f32 0.0, %v674
      %v676 = vpop.f32.mrb[0].mxu0
      %677 = vmatprep.mubr.bf16.mxu0 %v366
      %678 = vmatmul.mubr.bf16.gmra.mrb[0].mxu0 %v365
      %v679 = vpop.f32.mrb[0].mxu0
      %v680 = vadd.f32 0.0, %v679
      %v681 = vpop.f32.mrb[0].mxu0
      %v682 = vpop.f32.mrb[0].mxu0
      %v683 = vadd.f32 0.0, %v682
      %v684 = vpop.f32.mrb[0].mxu0
      %685 = vmatprep.mubr.bf16.mxu0 %v368
      %686 = vmatmul.mubr.bf16.gmra.mrb[0].mxu0 %v367
      %v687 = vpop.f32.mrb[0].mxu0
      %v688 = vadd.f32 0.0, %v687
      %v689 = vpop.f32.mrb[0].mxu0
      %v690 = vpop.f32.mrb[0].mxu0
      %v691 = vadd.f32 0.0, %v690
      %v692 = vpop.f32.mrb[0].mxu0
      %693 = vmatprep.mubr.bf16.mxu0 %v370
      %694 = vmatmul.mubr.bf16.gmra.mrb[0].mxu0 %v369
      %v695 = vpop.f32.mrb[0].mxu0
      %v696 = vadd.f32 0.0, %v695
      %v697 = vpop.f32.mrb[0].mxu0
      %v698 = vpop.f32.mrb[0].mxu0
      %v699 = vadd.f32 0.0, %v698
      %v700 = vpop.f32.mrb[0].mxu0
      %701 = vmatprep.mubr.bf16.mxu0 %v372
      %702 = vmatmul.mubr.bf16.gmra.mrb[0].mxu0 %v371
      %v703 = vpop.f32.mrb[0].mxu0
      %v704 = vadd.f32 0.0, %v703
      %v705 = vpop.f32.mrb[0].mxu0
      %v706 = vpop.f32.mrb[0].mxu0
      %v707 = vadd.f32 0.0, %v706
      %v708 = vpop.f32.mrb[0].mxu0
      %709 = vmatprep.mubr.bf16.mxu0 %v374
      %710 = vmatmul.mubr.bf16.gmra.mrb[0].mxu0 %v373
      %v711 = vpop.f32.mrb[0].mxu0
      %v712 = vadd.f32 0.0, %v711
      %v713 = vpop.f32.mrb[0].mxu0
      %v714 = vpop.f32.mrb[0].mxu0
      %v715 = vadd.f32 0.0, %v714
      %v716 = vpop.f32.mrb[0].mxu0
      %717 = vmatprep.mubr.bf16.mxu0 %v376
      %718 = vmatmul.mubr.bf16.gmra.mrb[0].mxu0 %v375
      %v719 = vpop.f32.mrb[0].mxu0
      %v720 = vadd.f32 0.0, %v719
      %v721 = vpop.f32.mrb[0].mxu0
      %v722 = vpop.f32.mrb[0].mxu0
      %v723 = vadd.f32 0.0, %v722
      %v724 = vpop.f32.mrb[0].mxu0
      %725 = vmatprep.mubr.bf16.mxu0 %v378
      %726 = vmatmul.mubr.bf16.gmra.mrb[0].mxu0 %v377
      %v727 = vpop.f32.mrb[0].mxu0
      %v728 = vadd.f32 0.0, %v727
      %v729 = vpop.f32.mrb[0].mxu0
      %v730 = vpop.f32.mrb[0].mxu0
      %v731 = vadd.f32 0.0, %v730
      %v732 = vpop.f32.mrb[0].mxu0
      %733 = vmatprep.mubr.bf16.mxu0 %v380
      %734 = vmatmul.mubr.bf16.gmra.mrb[0].mxu0 %v379
      %v735 = vpop.f32.mrb[0].mxu0
      %v736 = vadd.f32 0.0, %v735
      %v737 = vpop.f32.mrb[0].mxu0
      %v738 = vpop.f32.mrb[0].mxu0
      %v739 = vadd.f32 0.0, %v738
      %v740 = vpop.f32.mrb[0].mxu0
      %741 = vmatprep.mubr.bf16.mxu0 %v382
      %742 = vmatmul.mubr.bf16.gmra.mrb[0].mxu0 %v381
      %v743 = vpop.f32.mrb[0].mxu0
      %v744 = vadd.f32 0.0, %v743
      %v745 = vpop.f32.mrb[0].mxu0
      %v746 = vpop.f32.mrb[0].mxu0
      %v747 = vadd.f32 0.0, %v746
      %v748 = vpop.f32.mrb[0].mxu0
      %749 = vmatprep.mubr.bf16.mxu0 %v384
      %750 = vmatmul.mubr.bf16.gmra.mrb[0].mxu0 %v383
      %v751 = vpop.f32.mrb[0].mxu0
      %v752 = vadd.f32 0.0, %v751
      %v753 = vpop.f32.mrb[0].mxu0
      %v754 = vpop.f32.mrb[0].mxu0
      %v755 = vadd.f32 0.0, %v754
      %v756 = vpop.f32.mrb[0].mxu0
      %757 = vmatprep.mubr.bf16.mxu0 %v386
      %758 = vmatmul.mubr.bf16.gmra.mrb[0].mxu0 %v385
      %v759 = vpop.f32.mrb[0].mxu0
      %v760 = vadd.f32 0.0, %v759
      %v761 = vpop.f32.mrb[0].mxu0
      %v762 = vpop.f32.mrb[0].mxu0
      %v763 = vadd.f32 0.0, %v762
      %v764 = vpop.f32.mrb[0].mxu0
      %765 = vmatprep.mubr.bf16.mxu0 %v388
      %766 = vmatmul.mubr.bf16.gmra.mrb[0].mxu0 %v387
      %v767 = vpop.f32.mrb[0].mxu0
      %v768 = vadd.f32 0.0, %v767
      %v769 = vpop.f32.mrb[0].mxu0
      %v770 = vpop.f32.mrb[0].mxu0
      %v771 = vadd.f32 0.0, %v770
      %v772 = vpop.f32.mrb[0].mxu0
      %773 = vmatprep.mubr.bf16.mxu0 %v390
      %774 = vmatmul.mubr.bf16.gmra.mrb[0].mxu0 %v389
      %v775 = vpop.f32.mrb[0].mxu0
      %v776 = vadd.f32 0.0, %v775
      %v777 = vpop.f32.mrb[0].mxu0
      %v778 = vpop.f32.mrb[0].mxu0
      %v779 = vadd.f32 0.0, %v778
      %v780 = vpop.f32.mrb[0].mxu0
      %781 = vmatprep.mubr.bf16.mxu0 %v392
      %782 = vmatmul.mubr.bf16.gmra.mrb[0].mxu0 %v391
      %v783 = vpop.f32.mrb[0].mxu0
      %v784 = vadd.f32 0.0, %v783
      %v785 = vpop.f32.mrb[0].mxu0
      %v786 = vpop.f32.mrb[0].mxu0
      %v787 = vadd.f32 0.0, %v786
      %v788 = vpop.f32.mrb[0].mxu0
      %789 = vmatprep.mubr.bf16.mxu0 %v394
      %790 = vmatmul.mubr.bf16.gmra.mrb[0].mxu0 %v393
      %v791 = vpop.f32.mrb[0].mxu0
      %v792 = vadd.f32 0.0, %v791
      %v793 = vpop.f32.mrb[0].mxu0
      %v794 = vpop.f32.mrb[0].mxu0
      %v795 = vadd.f32 0.0, %v794
      %v796 = vpop.f32.mrb[0].mxu0
      %797 = vmatprep.mubr.bf16.mxu0 %v396
      %798 = vmatmul.mubr.bf16.gmra.mrb[0].mxu0 %v395
      %v799 = vpop.f32.mrb[0].mxu0
      %v800 = vadd.f32 0.0, %v799
      %v801 = vpop.f32.mrb[0].mxu0
      %v802 = vpop.f32.mrb[0].mxu0
      %v803 = vadd.f32 0.0, %v802
      %v804 = vpop.f32.mrb[0].mxu0
      %805 = vmatprep.mubr.bf16.mxu0 %v398
      %806 = vmatmul.mubr.bf16.gmra.mrb[0].mxu0 %v397
      %v807 = vpop.f32.mrb[0].mxu0
      %v808 = vadd.f32 0.0, %v807
      %v809 = vpop.f32.mrb[0].mxu0
      %v810 = vpop.f32.mrb[0].mxu0
      %v811 = vadd.f32 0.0, %v810
      %v812 = vpop.f32.mrb[0].mxu0
      %813 = vmatprep.mubr.bf16.mxu0 %v400
      %814 = vmatmul.mubr.bf16.gmra.mrb[0].mxu0 %v399
      %v815 = vpop.f32.mrb[0].mxu0
      %v816 = vadd.f32 0.0, %v815
      %v817 = vpop.f32.mrb[0].mxu0
      %v818 = vpop.f32.mrb[0].mxu0
      %v819 = vadd.f32 0.0, %v818
      %v820 = vpop.f32.mrb[0].mxu0
      %821 = vmatprep.mubr.bf16.mxu0 %v402
      %822 = vmatmul.mubr.bf16.gmra.mrb[0].mxu0 %v401
      %v823 = vpop.f32.mrb[0].mxu0
      %v824 = vadd.f32 0.0, %v823
      %v825 = vpop.f32.mrb[0].mxu0
      %v826 = vpop.f32.mrb[0].mxu0
      %v827 = vadd.f32 0.0, %v826
      %v828 = vpop.f32.mrb[0].mxu0
      %829 = vmatprep.mubr.bf16.mxu0 %v404
      %830 = vmatmul.mubr.bf16.gmra.mrb[0].mxu0 %v403
      %v831 = vpop.f32.mrb[0].mxu0
      %v832 = vadd.f32 0.0, %v831
      %v833 = vpop.f32.mrb[0].mxu0
      %v834 = vpop.f32.mrb[0].mxu0
      %v835 = vadd.f32 0.0, %v834
      %v836 = vpop.f32.mrb[0].mxu0
      %837 = vmatprep.mubr.bf16.mxu0 %v406
      %838 = vmatmul.mubr.bf16.gmra.mrb[0].mxu0 %v405
      %v839 = vpop.f32.mrb[0].mxu0
      %v840 = vadd.f32 0.0, %v839
      %v841 = vpop.f32.mrb[0].mxu0
      %v842 = vpop.f32.mrb[0].mxu0
      %v843 = vadd.f32 0.0, %v842
      %v844 = vpop.f32.mrb[0].mxu0
      %845 = vmatprep.mubr.bf16.mxu0 %v408
      %846 = vmatmul.mubr.bf16.gmra.mrb[0].mxu0 %v407
      %v847 = vpop.f32.mrb[0].mxu0
      %v848 = vadd.f32 0.0, %v847
      %v849 = vpop.f32.mrb[0].mxu0
      %v850 = vpop.f32.mrb[0].mxu0
      %v851 = vadd.f32 0.0, %v850
      %v852 = vpop.f32.mrb[0].mxu0
      %853 = vmatprep.mubr.bf16.mxu0 %v410
      %854 = vmatmul.mubr.bf16.gmra.mrb[0].mxu0 %v409
      %v855 = vpop.f32.mrb[0].mxu0
      %v856 = vadd.f32 0.0, %v855
      %v857 = vpop.f32.mrb[0].mxu0
      %v858 = vpop.f32.mrb[0].mxu0
      %v859 = vadd.f32 0.0, %v858
      %v860 = vpop.f32.mrb[0].mxu0
      %861 = vmatprep.mubr.bf16.mxu0 %v412
      %862 = vmatmul.mubr.bf16.gmra.mrb[0].mxu0 %v411
      %v863 = vpop.f32.mrb[0].mxu0
      %v864 = vadd.f32 0.0, %v863
      %v865 = vpop.f32.mrb[0].mxu0
      %v866 = vpop.f32.mrb[0].mxu0
      %v867 = vadd.f32 0.0, %v866
      %v868 = vpop.f32.mrb[0].mxu0
      %869 = vmatprep.mubr.bf16.mxu0 %v414
      %870 = vmatmul.mubr.bf16.gmra.mrb[0].mxu0 %v413
      %v871 = vpop.f32.mrb[0].mxu0
      %v872 = vadd.f32 0.0, %v871
      %v873 = vpop.f32.mrb[0].mxu0
      %v874 = vpop.f32.mrb[0].mxu0
      %v875 = vadd.f32 0.0, %v874
      %v876 = vpop.f32.mrb[0].mxu0
      %877 = vmatprep.mubr.bf16.mxu0 %v416
      %878 = vmatmul.mubr.bf16.gmra.mrb[0].mxu0 %v415
      %v879 = vpop.f32.mrb[0].mxu0
      %v880 = vadd.f32 0.0, %v879
      %v881 = vpop.f32.mrb[0].mxu0
      %v882 = vpop.f32.mrb[0].mxu0
      %v883 = vadd.f32 0.0, %v882
      %v884 = vpop.f32.mrb[0].mxu0
      %885 = vmatprep.mubr.bf16.mxu0 %v418
      %886 = vmatmul.mubr.bf16.gmra.mrb[0].mxu0 %v417
      %v887 = vpop.f32.mrb[0].mxu0
      %v888 = vadd.f32 0.0, %v887
      %v889 = vpop.f32.mrb[0].mxu0
      %v890 = vpop.f32.mrb[0].mxu0
      %v891 = vadd.f32 0.0, %v890
      %v892 = vpop.f32.mrb[0].mxu0
      %893 = vmatprep.mubr.bf16.mxu0 %v420
      %894 = vmatmul.mubr.bf16.gmra.mrb[0].mxu0 %v419
      %v895 = vpop.f32.mrb[0].mxu0
      %v896 = vadd.f32 0.0, %v895
      %v897 = vpop.f32.mrb[0].mxu0
      %v898 = vpop.f32.mrb[0].mxu0
      %v899 = vadd.f32 0.0, %v898
      %v900 = vpop.f32.mrb[0].mxu0
      %901 = vmatprep.mubr.bf16.mxu0 %v422
      %902 = vmatmul.mubr.bf16.gmra.mrb[0].mxu0 %v421
      %v903 = vpop.f32.mrb[0].mxu0
      %v904 = vadd.f32 0.0, %v903
      %v905 = vpop.f32.mrb[0].mxu0
      %v906 = vpop.f32.mrb[0].mxu0
      %v907 = vadd.f32 0.0, %v906
      %v908 = vpop.f32.mrb[0].mxu0
      %909 = vmatprep.mubr.bf16.mxu0 %v424
      %910 = vmatmul.mubr.bf16.gmra.mrb[0].mxu0 %v423
      %v911 = vpop.f32.mrb[0].mxu0
      %v912 = vadd.f32 0.0, %v911
      %v913 = vpop.f32.mrb[0].mxu0
      %v914 = vpop.f32.mrb[0].mxu0
      %v915 = vadd.f32 0.0, %v914
      %v916 = vpop.f32.mrb[0].mxu0
      %917 = vmatprep.mubr.bf16.mxu0 %v426
      %918 = vmatmul.mubr.bf16.gmra.mrb[0].mxu0 %v425
      %v919 = vpop.f32.mrb[0].mxu0
      %v920 = vadd.f32 0.0, %v919
      %v921 = vpop.f32.mrb[0].mxu0
      %v922 = vpop.f32.mrb[0].mxu0
      %v923 = vadd.f32 0.0, %v922
      %v924 = vpop.f32.mrb[0].mxu0
      %925 = vmatprep.mubr.bf16.mxu0 %v428
      %926 = vmatmul.mubr.bf16.gmra.mrb[0].mxu0 %v427
      %v927 = vpop.f32.mrb[0].mxu0
      %v928 = vadd.f32 0.0, %v927
      %v929 = vpop.f32.mrb[0].mxu0
      %v930 = vpop.f32.mrb[0].mxu0
      %v931 = vadd.f32 0.0, %v930
      %v932 = vpop.f32.mrb[0].mxu0
      %933 = vmatprep.mubr.bf16.mxu0 %v430
      %934 = vmatmul.mubr.bf16.gmra.mrb[0].mxu0 %v429
      %v935 = vpop.f32.mrb[0].mxu0
      %v936 = vadd.f32 0.0, %v935
      %v937 = vpop.f32.mrb[0].mxu0
      %v938 = vpop.f32.mrb[0].mxu0
      %v939 = vadd.f32 0.0, %v938
      %v940 = vpop.f32.mrb[0].mxu0
      %941 = vmatprep.mubr.bf16.mxu0 %v432
      %942 = vmatmul.mubr.bf16.gmra.mrb[0].mxu0 %v431
      %v943 = vpop.f32.mrb[0].mxu0
      %v944 = vadd.f32 0.0, %v943
      %v945 = vpop.f32.mrb[0].mxu0
      %v946 = vpop.f32.mrb[0].mxu0
      %v947 = vadd.f32 0.0, %v946
      %v948 = vpop.f32.mrb[0].mxu0
      %949 = vmatprep.mubr.bf16.mxu0 %v434
      %950 = vmatmul.mubr.bf16.gmra.mrb[0].mxu0 %v433
      %v951 = vpop.f32.mrb[0].mxu0
      %v952 = vadd.f32 0.0, %v951
      %v953 = vpop.f32.mrb[0].mxu0
      %v954 = vpop.f32.mrb[0].mxu0
      %v955 = vadd.f32 0.0, %v954
      %v956 = vpop.f32.mrb[0].mxu0
      %957 = vmatprep.mubr.bf16.mxu0 %v436
      %958 = vmatmul.mubr.bf16.gmra.mrb[0].mxu0 %v435
      %v959 = vpop.f32.mrb[0].mxu0
      %v960 = vadd.f32 0.0, %v959
      %v961 = vpop.f32.mrb[0].mxu0
      %v962 = vpop.f32.mrb[0].mxu0
      %v963 = vadd.f32 0.0, %v962
      %v964 = vpop.f32.mrb[0].mxu0
      %965 = vmatprep.mubr.bf16.mxu0 %v438
      %966 = vmatmul.mubr.bf16.gmra.mrb[0].mxu0 %v437
      %v967 = vpop.f32.mrb[0].mxu0
      %v968 = vadd.f32 0.0, %v967
      %v969 = vpop.f32.mrb[0].mxu0
      %v970 = vpop.f32.mrb[0].mxu0
      %v971 = vadd.f32 0.0, %v970
      %v972 = vpop.f32.mrb[0].mxu0
      %973 = vmatprep.mubr.bf16.mxu0 %v440
      %974 = vmatmul.mubr.bf16.gmra.mrb[0].mxu0 %v439
      %v975 = vpop.f32.mrb[0].mxu0
      %v976 = vadd.f32 0.0, %v975
      %v977 = vpop.f32.mrb[0].mxu0
      %v978 = vpop.f32.mrb[0].mxu0
      %v979 = vadd.f32 0.0, %v978
      %v980 = vpop.f32.mrb[0].mxu0
      %981 = vmatprep.mubr.bf16.mxu0 %v442
      %982 = vmatmul.mubr.bf16.gmra.mrb[0].mxu0 %v441
      %v983 = vpop.f32.mrb[0].mxu0
      %v984 = vadd.f32 0.0, %v983
      %v985 = vpop.f32.mrb[0].mxu0
      %v986 = vpop.f32.mrb[0].mxu0
      %v987 = vadd.f32 0.0, %v986
      %v988 = vpop.f32.mrb[0].mxu0
      %989 = vmatprep.mubr.bf16.mxu0 %v444
      %990 = vmatmul.mubr.bf16.gmra.mrb[0].mxu0 %v443
      %v991 = vpop.f32.mrb[0].mxu0
      %v992 = vadd.f32 0.0, %v991
      %v993 = vpop.f32.mrb[0].mxu0
      %v994 = vpop.f32.mrb[0].mxu0
      %v995 = vadd.f32 0.0, %v994
      %v996 = vpop.f32.mrb[0].mxu0
      %997 = vdwg.mxu0
      %v998 = vtanh.pop %v608
      %v999 = vtanh.pop %v611
      %v1000 = vtanh.pop %v616
      %v1001 = vtanh.pop %v619
      %v1002 = vtanh.pop %v624
      %v1003 = vtanh.pop %v627
      %v1004 = vtanh.pop %v632
      %v1005 = vtanh.pop %v635
      %v1006 = vtanh.pop %v640
      %v1007 = vtanh.pop %v643
      %v1008 = vtanh.pop %v648
      %v1009 = vtanh.pop %v651
      %v1010 = vtanh.pop %v656
      %v1011 = vtanh.pop %v659
      %v1012 = vtanh.pop %v664
      %v1013 = vtanh.pop %v667
      %v1014 = vtanh.pop %v672
      %v1015 = vtanh.pop %v675
      %v1016 = vtanh.pop %v680
      %v1017 = vtanh.pop %v683
      %v1018 = vtanh.pop %v688
      %v1019 = vtanh.pop %v691
      %v1020 = vtanh.pop %v696
      %v1021 = vtanh.pop %v699
      %v1022 = vtanh.pop %v704
      %v1023 = vtanh.pop %v707
      %v1024 = vtanh.pop %v712
      %v1025 = vtanh.pop %v715
      %v1026 = vtanh.pop %v720
      %v1027 = vtanh.pop %v723
      %v1028 = vtanh.pop %v728
      %v1029 = vtanh.pop %v731
      %v1030 = vtanh.pop %v736
      %v1031 = vtanh.pop %v739
      %v1032 = vtanh.pop %v744
      %v1033 = vtanh.pop %v747
      %v1034 = vtanh.pop %v752
      %v1035 = vtanh.pop %v755
      %v1036 = vtanh.pop %v760
      %v1037 = vtanh.pop %v763
      %v1038 = vtanh.pop %v768
      %v1039 = vtanh.pop %v771
      %v1040 = vtanh.pop %v776
      %v1041 = vtanh.pop %v779
      %v1042 = vtanh.pop %v784
      %v1043 = vtanh.pop %v787
      %v1044 = vtanh.pop %v792
      %v1045 = vtanh.pop %v795
      %v1046 = vtanh.pop %v800
      %v1047 = vtanh.pop %v803
      %v1048 = vtanh.pop %v808
      %v1049 = vtanh.pop %v811
      %v1050 = vtanh.pop %v816
      %v1051 = vtanh.pop %v819
      %v1052 = vtanh.pop %v824
      %v1053 = vtanh.pop %v827
      %v1054 = vtanh.pop %v832
      %v1055 = vtanh.pop %v835
      %v1056 = vtanh.pop %v840
      %v1057 = vtanh.pop %v843
      %v1058 = vtanh.pop %v848
      %v1059 = vtanh.pop %v851
      %v1060 = vtanh.pop %v856
      %v1061 = vtanh.pop %v859
      %v1062 = vtanh.pop %v864
      %v1063 = vtanh.pop %v867
      %v1064 = vtanh.pop %v872
      %v1065 = vtanh.pop %v875
      %v1066 = vtanh.pop %v880
      %v1067 = vtanh.pop %v883
      %v1068 = vtanh.pop %v888
      %v1069 = vtanh.pop %v891
      %v1070 = vtanh.pop %v896
      %v1071 = vtanh.pop %v899
      %v1072 = vtanh.pop %v904
      %v1073 = vtanh.pop %v907
      %v1074 = vtanh.pop %v912
      %v1075 = vtanh.pop %v915
      %v1076 = vtanh.pop %v920
      %v1077 = vtanh.pop %v923
      %v1078 = vtanh.pop %v928
      %v1079 = vtanh.pop %v931
      %v1080 = vtanh.pop %v936
      %v1081 = vtanh.pop %v939
      %v1082 = vtanh.pop %v944
      %v1083 = vtanh.pop %v947
      %v1084 = vtanh.pop %v952
      %v1085 = vtanh.pop %v955
      %v1086 = vtanh.pop %v960
      %v1087 = vtanh.pop %v963
      %v1088 = vtanh.pop %v968
      %v1089 = vtanh.pop %v971
      %v1090 = vtanh.pop %v976
      %v1091 = vtanh.pop %v979
      %v1092 = vtanh.pop %v984
      %v1093 = vtanh.pop %v987
      %v1094 = vtanh.pop %v992
      %v1095 = vtanh.pop %v995
      %1096 = vst [vmem:[%s148] sm:$0xff] %v998
      %1097 = vst [vmem:[%s148 + $0x8] sm:$0xff] %v999
      %1098 = vst [vmem:[%s148 + $0x10] sm:$0xff] %v1000
      %1099 = vst [vmem:[%s148 + $0x18] sm:$0xff] %v1001
      %1100 = vst [vmem:[%s148 + $0x20] sm:$0xff] %v1002
      %1101 = vst [vmem:[%s148 + $0x28] sm:$0xff] %v1003
      %1102 = vst [vmem:[%s148 + $0x30] sm:$0xff] %v1004
      %1103 = vst [vmem:[%s148 + $0x38] sm:$0xff] %v1005
      %1104 = vst [vmem:[%s148 + $0x40] sm:$0xff] %v1006
      %1105 = vst [vmem:[%s148 + $0x48] sm:$0xff] %v1007
      %1106 = vst [vmem:[%s148 + $0x50] sm:$0xff] %v1008
      %1107 = vst [vmem:[%s148 + $0x58] sm:$0xff] %v1009
      %1108 = vst [vmem:[%s148 + $0x60] sm:$0xff] %v1010
      %1109 = vst [vmem:[%s148 + $0x68] sm:$0xff] %v1011
      %1110 = vst [vmem:[%s148 + $0x70] sm:$0xff] %v1012
      %1111 = vst [vmem:[%s148 + $0x78] sm:$0xff] %v1013
      %1112 = vst [vmem:[%s148 + $0x80] sm:$0xff] %v1014
      %1113 = vst [vmem:[%s148 + $0x88] sm:$0xff] %v1015
      %1114 = vst [vmem:[%s148 + $0x90] sm:$0xff] %v1016
      %1115 = vst [vmem:[%s148 + $0x98] sm:$0xff] %v1017
      %1116 = vst [vmem:[%s148 + $0xa0] sm:$0xff] %v1018
      %1117 = vst [vmem:[%s148 + $0xa8] sm:$0xff] %v1019
      %1118 = vst [vmem:[%s148 + $0xb0] sm:$0xff] %v1020
      %1119 = vst [vmem:[%s148 + $0xb8] sm:$0xff] %v1021
      %1120 = vst [vmem:[%s148 + $0xc0] sm:$0xff] %v1022
      %1121 = vst [vmem:[%s148 + $0xc8] sm:$0xff] %v1023
      %1122 = vst [vmem:[%s148 + $0xd0] sm:$0xff] %v1024
      %1123 = vst [vmem:[%s148 + $0xd8] sm:$0xff] %v1025
      %1124 = vst [vmem:[%s148 + $0xe0] sm:$0xff] %v1026
      %1125 = vst [vmem:[%s148 + $0xe8] sm:$0xff] %v1027
      %1126 = vst [vmem:[%s148 + $0xf0] sm:$0xff] %v1028
      %1127 = vst [vmem:[%s148 + $0xf8] sm:$0xff] %v1029
      %1128 = vst [vmem:[%s148 + $0x100] sm:$0xff] %v1030
      %1129 = vst [vmem:[%s148 + $0x108] sm:$0xff] %v1031
      %1130 = vst [vmem:[%s148 + $0x110] sm:$0xff] %v1032
      %1131 = vst [vmem:[%s148 + $0x118] sm:$0xff] %v1033
      %1132 = vst [vmem:[%s148 + $0x120] sm:$0xff] %v1034
      %1133 = vst [vmem:[%s148 + $0x128] sm:$0xff] %v1035
      %1134 = vst [vmem:[%s148 + $0x130] sm:$0xff] %v1036
      %1135 = vst [vmem:[%s148 + $0x138] sm:$0xff] %v1037
      %1136 = vst [vmem:[%s148 + $0x140] sm:$0xff] %v1038
      %1137 = vst [vmem:[%s148 + $0x148] sm:$0xff] %v1039
      %1138 = vst [vmem:[%s148 + $0x150] sm:$0xff] %v1040
      %1139 = vst [vmem:[%s148 + $0x158] sm:$0xff] %v1041
      %1140 = vst [vmem:[%s148 + $0x160] sm:$0xff] %v1042
      %1141 = vst [vmem:[%s148 + $0x168] sm:$0xff] %v1043
      %1142 = vst [vmem:[%s148 + $0x170] sm:$0xff] %v1044
      %1143 = vst [vmem:[%s148 + $0x178] sm:$0xff] %v1045
      %1144 = vst [vmem:[%s148 + $0x180] sm:$0xff] %v1046
      %1145 = vst [vmem:[%s148 + $0x188] sm:$0xff] %v1047
      %1146 = vst [vmem:[%s148 + $0x190] sm:$0xff] %v1048
      %1147 = vst [vmem:[%s148 + $0x198] sm:$0xff] %v1049
      %1148 = vst [vmem:[%s148 + $0x1a0] sm:$0xff] %v1050
      %1149 = vst [vmem:[%s148 + $0x1a8] sm:$0xff] %v1051
      %1150 = vst [vmem:[%s148 + $0x1b0] sm:$0xff] %v1052
      %1151 = vst [vmem:[%s148 + $0x1b8] sm:$0xff] %v1053
      %1152 = vst [vmem:[%s148 + $0x1c0] sm:$0xff] %v1054
      %1153 = vst [vmem:[%s148 + $0x1c8] sm:$0xff] %v1055
      %1154 = vst [vmem:[%s148 + $0x1d0] sm:$0xff] %v1056
      %1155 = vst [vmem:[%s148 + $0x1d8] sm:$0xff] %v1057
      %1156 = vst [vmem:[%s148 + $0x1e0] sm:$0xff] %v1058
      %1157 = vst [vmem:[%s148 + $0x1e8] sm:$0xff] %v1059
      %1158 = vst [vmem:[%s148 + $0x1f0] sm:$0xff] %v1060
      %1159 = vst [vmem:[%s148 + $0x1f8] sm:$0xff] %v1061
      %1160 = vst [vmem:[%s148 + $0x200] sm:$0xff] %v1062
      %1161 = vst [vmem:[%s148 + $0x208] sm:$0xff] %v1063
      %1162 = vst [vmem:[%s148 + $0x210] sm:$0xff] %v1064
      %1163 = vst [vmem:[%s148 + $0x218] sm:$0xff] %v1065
      %1164 = vst [vmem:[%s148 + $0x220] sm:$0xff] %v1066
      %1165 = vst [vmem:[%s148 + $0x228] sm:$0xff] %v1067
      %1166 = vst [vmem:[%s148 + $0x230] sm:$0xff] %v1068
      %1167 = vst [vmem:[%s148 + $0x238] sm:$0xff] %v1069
      %1168 = vst [vmem:[%s148 + $0x240] sm:$0xff] %v1070
      %1169 = vst [vmem:[%s148 + $0x248] sm:$0xff] %v1071
      %1170 = vst [vmem:[%s148 + $0x250] sm:$0xff] %v1072
      %1171 = vst [vmem:[%s148 + $0x258] sm:$0xff] %v1073
      %1172 = vst [vmem:[%s148 + $0x260] sm:$0xff] %v1074
      %1173 = vst [vmem:[%s148 + $0x268] sm:$0xff] %v1075
      %1174 = vst [vmem:[%s148 + $0x270] sm:$0xff] %v1076
      %1175 = vst [vmem:[%s148 + $0x278] sm:$0xff] %v1077
      %1176 = vst [vmem:[%s148 + $0x280] sm:$0xff] %v1078
      %1177 = vst [vmem:[%s148 + $0x288] sm:$0xff] %v1079
      %1178 = vst [vmem:[%s148 + $0x290] sm:$0xff] %v1080
      %1179 = vst [vmem:[%s148 + $0x298] sm:$0xff] %v1081
      %1180 = vst [vmem:[%s148 + $0x2a0] sm:$0xff] %v1082
      %1181 = vst [vmem:[%s148 + $0x2a8] sm:$0xff] %v1083
      %1182 = vst [vmem:[%s148 + $0x2b0] sm:$0xff] %v1084
      %1183 = vst [vmem:[%s148 + $0x2b8] sm:$0xff] %v1085
      %1184 = vst [vmem:[%s148 + $0x2c0] sm:$0xff] %v1086
      %1185 = vst [vmem:[%s148 + $0x2c8] sm:$0xff] %v1087
      %1186 = vst [vmem:[%s148 + $0x2d0] sm:$0xff] %v1088
      %1187 = vst [vmem:[%s148 + $0x2d8] sm:$0xff] %v1089
      %1188 = vst [vmem:[%s148 + $0x2e0] sm:$0xff] %v1090
      %1189 = vst [vmem:[%s148 + $0x2e8] sm:$0xff] %v1091
      %1190 = vst [vmem:[%s148 + $0x2f0] sm:$0xff] %v1092
      %1191 = vst [vmem:[%s148 + $0x2f8] sm:$0xff] %v1093
      %1192 = vst [vmem:[%s148 + $0x300] sm:$0xff] %v1094
      %1193 = vst [vmem:[%s148 + $0x308] sm:$0xff] %v1095
      %s1194 = smul.u32 98, %s13
      %p1195 = scmp.lt.s32.totalorder %s1194, 195
      %s1196 = scalar_select %p1195, %s1194, 195
      %s1197 = smul.addr %s1196, 8
      %s1198 = scalar_lea.vmem %s2, %s1197
      // Predicated region
      $region29: #{_lambda_.7} parent=27 // pred_check
        %p1199 = pneg %p78
      $region30: #{_lambda_.7} parent=27 // pred_check_branch
        %1201 = sbr.rel (%p1199) target = $region32
      $region31: #{_lambda_.7} parent=27 // pred_region
        %s1202 = smul.u32 98, %s13
      $region32: #{_lambda_.7} parent=27 // pred_fallthru
        _
    $region28: #{_lambda_.7} parent=5 // pred_fallthru
      _
    %p1203 = scmp.le.s32.totalorder 2, %s8
    // Predicated region
    $region33: #{_lambda_.7} parent=5 // pred_check
      %p1204 = pneg %p1203
    $region34: #{_lambda_.7} parent=5 // pred_check_branch
      %1206 = sbr.rel (%p1204) target = $region36
    $region35: #{_lambda_.7} parent=5 // pred_region
      %s1207 = ssub.s32 %s8, 2
      // Predicated region
      $region37: #{_lambda_.7} parent=35 // pred_check
        %p1208 = pneg %p84
      $region38: #{_lambda_.7} parent=35 // pred_check_branch
        %1210 = sbr.rel (%p1208) target = $region40
      $region39: #{_lambda_.7} parent=35 // pred_region
        %s1211 = smul.u32 98, %s14
        %p1212 = scmp.lt.s32.totalorder %s1211, 195
        %s1213 = scalar_select %p1212, %s1211, 195
        %s1214 = smul.addr %s1213, 8
        %s1215 = scalar_lea.vmem %s2, %s1214
      $region40: #{_lambda_.7} parent=35 // pred_fallthru
        _
    $region36: #{_lambda_.7} parent=5 // pred_fallthru
      _
  $region6: #{_lambda_.7} parent=0 // loop_footer
    %s12 = sadd.s32 1, %s8
  $region7: #{_lambda_.7} parent=0 // loop_footer_branch
    %7 = sbr.rel target = $region3
  $region8: #{_lambda_.7} parent=0 // loop_exit
    _

</llo_original>
